<compile_context>
chip_gen: v7x
topology: tpu7x:2x2x1
jax: 0.10.0
libtpu: 0.0.40
codegen_flags: <defaults>
</compile_context>

<pallas_src>
import functools

import jax
import jax.numpy as jnp
from jax import lax
from jax.experimental import pallas as pl
from jax.experimental.pallas import tpu as pltpu


# Row layout of the packed (16, W) f32 bias / layernorm slab.
(_R_BQKV1, _R_BO1, _R_G1, _R_BE1,
 _R_BQ2, _R_BKV2, _R_BO2, _R_G2, _R_BE2,
 _R_BFF1, _R_BFF2, _R_G3, _R_BE3) = range(13)
_SLAB_ROWS = 16  # padded to a sublane-friendly row count

_BIAS_ORDER = ("bqkv1", "bo1", "g1", "be1",
               "bq2", "bkv2", "bo2", "g2", "be2",
               "bff1", "bff2", "g3", "be3")
_WEIGHT_ORDER = ("wqkv1", "wo1", "wq2", "wkv2", "wo2", "wff1")  # all (D, *)


# ----------------------------------------------------------------------------
# Fused whole-decoder kernel: one batch element per grid step, all N layers
# inside, everything VMEM/vreg resident between layers.
# ----------------------------------------------------------------------------
def _decoder_stack_kernel(*refs, num_heads, num_layers, eps, has_mask):
    if has_mask:
        mask_ref, refs = refs[0], refs[1:]
    else:
        mask_ref = None
    x_ref, mem_ref, wd_ref, wff2_ref, b_ref, o_ref = refs

    T, D = x_ref.shape[1], x_ref.shape[2]
    FF = wff2_ref.shape[0]
    H = num_heads
    d = D // H
    scale = 1.0 / float(d) ** 0.5

    # Static lane offsets into the packed (D, 8D+FF) bf16 weight slab.
    c_qkv1 = 0
    c_o1 = c_qkv1 + 3 * D
    c_q2 = c_o1 + D
    c_kv2 = c_q2 + D
    c_o2 = c_kv2 + 2 * D
    c_ff1 = c_o2 + D

    def wcol(off, width):                      # (D, width) bf16 weight slice
        return wd_ref[:, off:off + width]

    def bvec(row, width):                      # (1, width) f32 bias/ln slice
        return b_ref[row:row + 1, :width]

    def mm(a, w, b):
        # bf16 MXU inputs, f32 accumulation; bias add in f32.
        y = jnp.dot(a.astype(jnp.bfloat16), w,
                    preferred_element_type=jnp.float32)
        return y + b

    def layer_norm(z, g, be):
        mu = jnp.mean(z, axis=-1, keepdims=True)
        var = jnp.mean((z - mu) ** 2, axis=-1, keepdims=True)
        return (z - mu) * lax.rsqrt(var + eps) * g + be

    def split_heads(z):
        # (L, D) f32 -> (H, L, d) bf16: one cast + one relayout per tensor.
        zb = z.astype(jnp.bfloat16)
        return jnp.concatenate(
            [zb[:, h * d:(h + 1) * d][None] for h in range(H)], axis=0)

    def merge_heads(o):
        # (H, T, d) f32 -> (T, D): one lane-dense merge per attention block.
        return jnp.concatenate([o[h] for h in range(H)], axis=-1)

    def mha(q, k_h, v_h, mask):
        # q: (T, D) f32 (already projected); k_h / v_h: (H, L, d) bf16.
        q_h = split_heads(q * scale)           # fold 1/sqrt(d) in once (f32)
        s = jnp.einsum("htd,hsd->hts", q_h, k_h,
                       preferred_element_type=jnp.float32)    # (H, T, L)
        if mask is not None:
            s = s + mask                       # (T, L) broadcasts over heads
        s = s - jnp.max(s, axis=-1, keepdims=True)
        p = jnp.exp(s)
        p = p * pl.reciprocal(jnp.sum(p, axis=-1, keepdims=True), approx=True)
        o = jnp.einsum("hts,hsd->htd", p.astype(jnp.bfloat16), v_h,
                       preferred_element_type=jnp.float32)    # (H, T, d)
        return merge_heads(o)

    mask = mask_ref[...] if has_mask else None
    mem = mem_ref[0]                                          # (S, D) f32

    # Cross-attention K/V of `memory` is identical for every layer (deepcopy
    # => shared weights): project once per batch element, reuse in the loop.
    kv2 = mm(mem, wcol(c_kv2, 2 * D), bvec(_R_BKV2, 2 * D))   # (S, 2D)
    k2_h = split_heads(kv2[:, :D])
    v2_h = split_heads(kv2[:, D:])

    def layer_fn(x):
        # --- masked self-attention + add & layernorm ---
        qkv = mm(x, wcol(c_qkv1, 3 * D), bvec(_R_BQKV1, 3 * D))  # (T, 3D)
        att = mha(qkv[:, :D],
                  split_heads(qkv[:, D:2 * D]),
                  split_heads(qkv[:, 2 * D:]),
                  mask)
        x = layer_norm(x + mm(att, wcol(c_o1, D), bvec(_R_BO1, D)),
                       bvec(_R_G1, D), bvec(_R_BE1, D))

        # --- cross-attention over cached memory K/V + add & layernorm ---
        q = mm(x, wcol(c_q2, D), bvec(_R_BQ2, D))
        att = mha(q, k2_h, v2_h, None)
        x = layer_norm(x + mm(att, wcol(c_o2, D), bvec(_R_BO2, D)),
                       bvec(_R_G2, D), bvec(_R_BE2, D))

        # --- feed-forward + add & layernorm ---
        h1 = jnp.maximum(mm(x, wcol(c_ff1, FF), bvec(_R_BFF1, FF)), 0.0)
        x = layer_norm(x + mm(h1, wff2_ref[...], bvec(_R_BFF2, D)),
                       bvec(_R_G3, D), bvec(_R_BE3, D))
        return x

    # Layer stack fused inside one kernel invocation: x never round-trips HBM
    # between layers.  num_layers is a small static constant -> unrolled
    # (switch to lax.fori_loop for large N to bound code size).
    x = x_ref[0]                                              # (T, D) f32
    for _ in range(num_layers):
        x = layer_fn(x)
    o_ref[0] = x


# ----------------------------------------------------------------------------
# Host-side wrappers.
# ----------------------------------------------------------------------------
def pack_params(params):
    """Pack the per-tensor parameter dict into 3 DMA-friendly slabs."""
    D = params["wo1"].shape[0]
    FF = params["wff2"].shape[0]
    w_d = jnp.concatenate([params[k].astype(jnp.bfloat16)
                           for k in _WEIGHT_ORDER], axis=1)    # (D, 8D+FF)
    w_ff2 = params["wff2"].astype(jnp.bfloat16)                # (FF, D)
    width = max(3 * D, 2 * D, FF)
    rows = []
    for k in _BIAS_ORDER:
        v = params[k].reshape(1, -1).astype(jnp.float32)
        rows.append(jnp.pad(v, ((0, 0), (0, width - v.shape[1]))))
    slab = jnp.concatenate(rows, axis=0)
    slab = jnp.pad(slab, ((0, _SLAB_ROWS - slab.shape[0]), (0, 0)))
    return w_d, w_ff2, slab


def transformer_decoder(x, memory, mask_fill, params, num_layers, eps=1e-5):
    """Equivalent of TransformerDecoder.forward: N identical layers, fused."""
    B, T, D = x.shape
    S = memory.shape[1]
    H = params["num_heads"]
    w_d, w_ff2, b_slab = pack_params(params)
    has_mask = mask_fill is not None

    in_specs, args = [], []
    if has_mask:
        # mask_fill: boolean (T, T); True = position blocked -> additive -1e9.
        mask_add = jnp.where(mask_fill, jnp.float32(-1e9), jnp.float32(0.0))
        in_specs.append(pl.BlockSpec((T, T), lambda b: (0, 0)))
        args.append(mask_add)
    in_specs += [
        pl.BlockSpec((1, T, D), lambda b: (b, 0, 0)),
        pl.BlockSpec((1, S, D), lambda b: (b, 0, 0)),
        pl.BlockSpec(w_d.shape, lambda b: (0, 0)),      # constant block index:
        pl.BlockSpec(w_ff2.shape, lambda b: (0, 0)),    # fetched once, reused
        pl.BlockSpec(b_slab.shape, lambda b: (0, 0)),   # across grid steps
    ]
    args += [x, memory, w_d, w_ff2, b_slab]

    kernel = functools.partial(_decoder_stack_kernel, num_heads=H,
                               num_layers=num_layers, eps=eps,
                               has_mask=has_mask)
    return pl.pallas_call(
        kernel,
        out_shape=jax.ShapeDtypeStruct((B, T, D), jnp.float32),
        grid=(B,),
        in_specs=in_specs,
        out_specs=pl.BlockSpec((1, T, D), lambda b: (b, 0, 0)),
        compiler_params=pltpu.CompilerParams(
            dimension_semantics=("parallel",)),   # batch axis -> 2 TCs on v7x
    )(*args)


# ----------------------------------------------------------------------------
# Deterministic parameter init (one layer's worth: deepcopy => shared).
# ----------------------------------------------------------------------------
def init_params(key, D, H, FF):
    keys = jax.random.split(key, 7)

    def w(k, shape):
        return 0.02 * jax.random.normal(k, shape, jnp.float32)

    p = {"num_heads": H}
    p["wqkv1"] = w(keys[0], (D, 3 * D)); p["bqkv1"] = jnp.zeros((3 * D,), jnp.float32)
    p["wo1"] = w(keys[1], (D, D));       p["bo1"] = jnp.zeros((D,), jnp.float32)
    p["wq2"] = w(keys[2], (D, D));       p["bq2"] = jnp.zeros((D,), jnp.float32)
    p["wkv2"] = w(keys[3], (D, 2 * D));  p["bkv2"] = jnp.zeros((2 * D,), jnp.float32)
    p["wo2"] = w(keys[4], (D, D));       p["bo2"] = jnp.zeros((D,), jnp.float32)
    p["wff1"] = w(keys[5], (D, FF));     p["bff1"] = jnp.zeros((FF,), jnp.float32)
    p["wff2"] = w(keys[6], (FF, D));     p["bff2"] = jnp.zeros((D,), jnp.float32)
    for i in (1, 2, 3):
        p[f"g{i}"] = jnp.ones((D,), jnp.float32)
        p[f"be{i}"] = jnp.zeros((D,), jnp.float32)
    return p


# ----------------------------------------------------------------------------
if __name__ == "__main__":
    # Small but lane-dense shapes: D, FF multiples of 128 -> unmasked stores.
    B, T, S, D, H, FF, N_LAYERS = 2, 8, 16, 128, 4, 256, 2

    root = jax.random.PRNGKey(0)
    k_x, k_m, k_p = jax.random.split(root, 3)

    x = jax.random.normal(k_x, (B, T, D), jnp.float32)
    memory = jax.random.normal(k_m, (B, S, D), jnp.float32)
    params = init_params(k_p, D, H, FF)

    # causal mask_fill: True above the diagonal = "mask this position out"
    mask_fill = jnp.triu(jnp.ones((T, T), jnp.bool_), k=1)

    out = transformer_decoder(x, memory, mask_fill, params, N_LAYERS)
    out = jax.block_until_ready(out)

    assert out.shape == (B, T, D) and out.dtype == jnp.float32
    assert bool(jnp.all(jnp.isfinite(out)))
    print("KERNEL_OK")
</pallas_src>

<mosaic_0001>
module attributes {stable_mosaic.version = 11 : i64} {
  func.func @_decoder_stack_kernel(%arg0: i32, %arg1: memref<8x8xf32, #tpu.memory_space<vmem>>, %arg2: memref<1x8x128xf32, #tpu.memory_space<vmem>>, %arg3: memref<1x16x128xf32, #tpu.memory_space<vmem>>, %arg4: memref<128x1280xbf16, #tpu.memory_space<vmem>>, %arg5: memref<256x128xbf16, #tpu.memory_space<vmem>>, %arg6: memref<16x384xf32, #tpu.memory_space<vmem>>, %arg7: memref<1x8x128xf32, #tpu.memory_space<vmem>>) attributes {dimension_semantics = [#tpu.dimension_semantics<parallel>], iteration_bounds = array<i64: 2>, scalar_prefetch = 0 : i64, scratch_operands = 0 : i64, tpu.core_type = #tpu.core_type<tc>, window_params = [{pipeline_mode = #tpu.pipeline_mode<synchronous>, transform_indices = @transform_0, window_bounds = array<i64: 8, 8>}, {transform_indices = @transform_1, window_bounds = array<i64: 1, 8, 128>}, {transform_indices = @transform_2, window_bounds = array<i64: 1, 16, 128>}, {pipeline_mode = #tpu.pipeline_mode<synchronous>, transform_indices = @transform_3, window_bounds = array<i64: 128, 1280>}, {pipeline_mode = #tpu.pipeline_mode<synchronous>, transform_indices = @transform_4, window_bounds = array<i64: 256, 128>}, {pipeline_mode = #tpu.pipeline_mode<synchronous>, transform_indices = @transform_5, window_bounds = array<i64: 16, 384>}, {transform_indices = @transform_6, window_bounds = array<i64: 1, 8, 128>}]} {
    %c0 = arith.constant 0 : index
    %c0_0 = arith.constant 0 : index
    %0 = vector.load %arg1[%c0, %c0_0] : memref<8x8xf32, #tpu.memory_space<vmem>>, vector<8x8xf32>
    %c0_1 = arith.constant 0 : index
    %c0_2 = arith.constant 0 : index
    %c0_3 = arith.constant 0 : index
    %1 = vector.load %arg3[%c0_1, %c0_2, %c0_3] : memref<1x16x128xf32, #tpu.memory_space<vmem>>, vector<1x16x128xf32>
    %2 = vector.shape_cast %1 : vector<1x16x128xf32> to vector<16x128xf32>
    %c0_4 = arith.constant 0 : index
    %c640 = arith.constant 640 : index
    %3 = vector.load %arg4[%c0_4, %c640] : memref<128x1280xbf16, #tpu.memory_space<vmem>>, vector<128x256xbf16>
    %c5 = arith.constant 5 : index
    %c0_5 = arith.constant 0 : index
    %4 = vector.load %arg6[%c5, %c0_5] : memref<16x384xf32, #tpu.memory_space<vmem>>, vector<1x256xf32>
    %5 = arith.truncf %2 : vector<16x128xf32> to vector<16x128xbf16>
    %cst = arith.constant dense<0.000000e+00> : vector<16x256xf32>
    %6 = tpu.matmul %5, %3, %cst {dimension_numbers = #tpu.dot_dimension_numbers<[1], [0], [0], [1], [0, 0, 1, 1], [], []>} : vector<16x128xbf16>, vector<128x256xbf16>, vector<16x256xf32> -> vector<16x256xf32>
    %7 = vector.broadcast %4 : vector<1x256xf32> to vector<16x256xf32>
    %8 = arith.addf %6, %7 : vector<16x256xf32>
    %9 = vector.extract_strided_slice %8 {offsets = [0, 0], sizes = [16, 128], strides = [1, 1]} : vector<16x256xf32> to vector<16x128xf32>
    %10 = arith.truncf %9 : vector<16x128xf32> to vector<16x128xbf16>
    %11 = vector.extract_strided_slice %10 {offsets = [0, 0], sizes = [16, 32], strides = [1, 1]} : vector<16x128xbf16> to vector<16x32xbf16>
    %12 = vector.shape_cast %11 : vector<16x32xbf16> to vector<1x16x32xbf16>
    %13 = vector.extract_strided_slice %10 {offsets = [0, 32], sizes = [16, 32], strides = [1, 1]} : vector<16x128xbf16> to vector<16x32xbf16>
    %14 = vector.shape_cast %13 : vector<16x32xbf16> to vector<1x16x32xbf16>
    %15 = vector.extract_strided_slice %10 {offsets = [0, 64], sizes = [16, 32], strides = [1, 1]} : vector<16x128xbf16> to vector<16x32xbf16>
    %16 = vector.shape_cast %15 : vector<16x32xbf16> to vector<1x16x32xbf16>
    %17 = vector.extract_strided_slice %10 {offsets = [0, 96], sizes = [16, 32], strides = [1, 1]} : vector<16x128xbf16> to vector<16x32xbf16>
    %18 = vector.shape_cast %17 : vector<16x32xbf16> to vector<1x16x32xbf16>
    %19 = tpu.concatenate %12, %14, %16, %18 in 0 : vector<1x16x32xbf16>, vector<1x16x32xbf16>, vector<1x16x32xbf16>, vector<1x16x32xbf16> -> vector<4x16x32xbf16>
    %20 = vector.extract_strided_slice %8 {offsets = [0, 128], sizes = [16, 128], strides = [1, 1]} : vector<16x256xf32> to vector<16x128xf32>
    %21 = arith.truncf %20 : vector<16x128xf32> to vector<16x128xbf16>
    %22 = vector.extract_strided_slice %21 {offsets = [0, 0], sizes = [16, 32], strides = [1, 1]} : vector<16x128xbf16> to vector<16x32xbf16>
    %23 = vector.shape_cast %22 : vector<16x32xbf16> to vector<1x16x32xbf16>
    %24 = vector.extract_strided_slice %21 {offsets = [0, 32], sizes = [16, 32], strides = [1, 1]} : vector<16x128xbf16> to vector<16x32xbf16>
    %25 = vector.shape_cast %24 : vector<16x32xbf16> to vector<1x16x32xbf16>
    %26 = vector.extract_strided_slice %21 {offsets = [0, 64], sizes = [16, 32], strides = [1, 1]} : vector<16x128xbf16> to vector<16x32xbf16>
    %27 = vector.shape_cast %26 : vector<16x32xbf16> to vector<1x16x32xbf16>
    %28 = vector.extract_strided_slice %21 {offsets = [0, 96], sizes = [16, 32], strides = [1, 1]} : vector<16x128xbf16> to vector<16x32xbf16>
    %29 = vector.shape_cast %28 : vector<16x32xbf16> to vector<1x16x32xbf16>
    %30 = tpu.concatenate %23, %25, %27, %29 in 0 : vector<1x16x32xbf16>, vector<1x16x32xbf16>, vector<1x16x32xbf16>, vector<1x16x32xbf16> -> vector<4x16x32xbf16>
    %c0_6 = arith.constant 0 : index
    %c0_7 = arith.constant 0 : index
    %c0_8 = arith.constant 0 : index
    %31 = vector.load %arg2[%c0_6, %c0_7, %c0_8] : memref<1x8x128xf32, #tpu.memory_space<vmem>>, vector<1x8x128xf32>
    %32 = vector.shape_cast %31 : vector<1x8x128xf32> to vector<8x128xf32>
    %c0_9 = arith.constant 0 : index
    %c0_10 = arith.constant 0 : index
    %33 = vector.load %arg4[%c0_9, %c0_10] : memref<128x1280xbf16, #tpu.memory_space<vmem>>, vector<128x384xbf16>
    %c0_11 = arith.constant 0 : index
    %c0_12 = arith.constant 0 : index
    %34 = vector.load %arg6[%c0_11, %c0_12] : memref<16x384xf32, #tpu.memory_space<vmem>>, vector<1x384xf32>
    %35 = arith.truncf %32 : vector<8x128xf32> to vector<8x128xbf16>
    %cst_13 = arith.constant dense<0.000000e+00> : vector<8x384xf32>
    %36 = tpu.matmul %35, %33, %cst_13 {dimension_numbers = #tpu.dot_dimension_numbers<[1], [0], [0], [1], [0, 0, 1, 1], [], []>} : vector<8x128xbf16>, vector<128x384xbf16>, vector<8x384xf32> -> vector<8x384xf32>
    %37 = vector.broadcast %34 : vector<1x384xf32> to vector<8x384xf32>
    %38 = arith.addf %36, %37 : vector<8x384xf32>
    %39 = vector.extract_strided_slice %38 {offsets = [0, 0], sizes = [8, 128], strides = [1, 1]} : vector<8x384xf32> to vector<8x128xf32>
    %40 = vector.extract_strided_slice %38 {offsets = [0, 128], sizes = [8, 128], strides = [1, 1]} : vector<8x384xf32> to vector<8x128xf32>
    %41 = arith.truncf %40 : vector<8x128xf32> to vector<8x128xbf16>
    %42 = vector.extract_strided_slice %41 {offsets = [0, 0], sizes = [8, 32], strides = [1, 1]} : vector<8x128xbf16> to vector<8x32xbf16>
    %43 = vector.shape_cast %42 : vector<8x32xbf16> to vector<1x8x32xbf16>
    %44 = vector.extract_strided_slice %41 {offsets = [0, 32], sizes = [8, 32], strides = [1, 1]} : vector<8x128xbf16> to vector<8x32xbf16>
    %45 = vector.shape_cast %44 : vector<8x32xbf16> to vector<1x8x32xbf16>
    %46 = vector.extract_strided_slice %41 {offsets = [0, 64], sizes = [8, 32], strides = [1, 1]} : vector<8x128xbf16> to vector<8x32xbf16>
    %47 = vector.shape_cast %46 : vector<8x32xbf16> to vector<1x8x32xbf16>
    %48 = vector.extract_strided_slice %41 {offsets = [0, 96], sizes = [8, 32], strides = [1, 1]} : vector<8x128xbf16> to vector<8x32xbf16>
    %49 = vector.shape_cast %48 : vector<8x32xbf16> to vector<1x8x32xbf16>
    %50 = tpu.concatenate %43, %45, %47, %49 in 0 : vector<1x8x32xbf16>, vector<1x8x32xbf16>, vector<1x8x32xbf16>, vector<1x8x32xbf16> -> vector<4x8x32xbf16>
    %51 = vector.extract_strided_slice %38 {offsets = [0, 256], sizes = [8, 128], strides = [1, 1]} : vector<8x384xf32> to vector<8x128xf32>
    %52 = arith.truncf %51 : vector<8x128xf32> to vector<8x128xbf16>
    %53 = vector.extract_strided_slice %52 {offsets = [0, 0], sizes = [8, 32], strides = [1, 1]} : vector<8x128xbf16> to vector<8x32xbf16>
    %54 = vector.shape_cast %53 : vector<8x32xbf16> to vector<1x8x32xbf16>
    %55 = vector.extract_strided_slice %52 {offsets = [0, 32], sizes = [8, 32], strides = [1, 1]} : vector<8x128xbf16> to vector<8x32xbf16>
    %56 = vector.shape_cast %55 : vector<8x32xbf16> to vector<1x8x32xbf16>
    %57 = vector.extract_strided_slice %52 {offsets = [0, 64], sizes = [8, 32], strides = [1, 1]} : vector<8x128xbf16> to vector<8x32xbf16>
    %58 = vector.shape_cast %57 : vector<8x32xbf16> to vector<1x8x32xbf16>
    %59 = vector.extract_strided_slice %52 {offsets = [0, 96], sizes = [8, 32], strides = [1, 1]} : vector<8x128xbf16> to vector<8x32xbf16>
    %60 = vector.shape_cast %59 : vector<8x32xbf16> to vector<1x8x32xbf16>
    %61 = tpu.concatenate %54, %56, %58, %60 in 0 : vector<1x8x32xbf16>, vector<1x8x32xbf16>, vector<1x8x32xbf16>, vector<1x8x32xbf16> -> vector<4x8x32xbf16>
    %cst_14 = arith.constant 0.176776692 : f32
    %62 = vector.broadcast %cst_14 : f32 to vector<8x128xf32>
    %63 = arith.mulf %39, %62 : vector<8x128xf32>
    %64 = arith.truncf %63 : vector<8x128xf32> to vector<8x128xbf16>
    %65 = vector.extract_strided_slice %64 {offsets = [0, 0], sizes = [8, 32], strides = [1, 1]} : vector<8x128xbf16> to vector<8x32xbf16>
    %66 = vector.shape_cast %65 : vector<8x32xbf16> to vector<1x8x32xbf16>
    %67 = vector.extract_strided_slice %64 {offsets = [0, 32], sizes = [8, 32], strides = [1, 1]} : vector<8x128xbf16> to vector<8x32xbf16>
    %68 = vector.shape_cast %67 : vector<8x32xbf16> to vector<1x8x32xbf16>
    %69 = vector.extract_strided_slice %64 {offsets = [0, 64], sizes = [8, 32], strides = [1, 1]} : vector<8x128xbf16> to vector<8x32xbf16>
    %70 = vector.shape_cast %69 : vector<8x32xbf16> to vector<1x8x32xbf16>
    %71 = vector.extract_strided_slice %64 {offsets = [0, 96], sizes = [8, 32], strides = [1, 1]} : vector<8x128xbf16> to vector<8x32xbf16>
    %72 = vector.shape_cast %71 : vector<8x32xbf16> to vector<1x8x32xbf16>
    %73 = tpu.concatenate %66, %68, %70, %72 in 0 : vector<1x8x32xbf16>, vector<1x8x32xbf16>, vector<1x8x32xbf16>, vector<1x8x32xbf16> -> vector<4x8x32xbf16>
    "tpu.trace_start"() <{level = 10 : i32, message = "htd,hsd->hts"}> : () -> ()
    %cst_15 = arith.constant dense<0.000000e+00> : vector<4x8x8xf32>
    %74 = tpu.matmul %73, %50, %cst_15 {dimension_numbers = #tpu.dot_dimension_numbers<[2], [2], [1], [1], [0, 0, 0, 1, 1, 1], [0], [0]>} : vector<4x8x32xbf16>, vector<4x8x32xbf16>, vector<4x8x8xf32> -> vector<4x8x8xf32>
    "tpu.trace_stop"() : () -> ()
    %75 = vector.shape_cast %0 : vector<8x8xf32> to vector<1x8x8xf32>
    %76 = vector.broadcast %75 : vector<1x8x8xf32> to vector<4x8x8xf32>
    %77 = arith.addf %74, %76 : vector<4x8x8xf32>
    %cst_16 = arith.constant dense<0xFF800000> : vector<4x8xf32>
    %78 = vector.multi_reduction <maximumf>, %77, %cst_16 [2] : vector<4x8x8xf32> to vector<4x8xf32>
    %79 = vector.shape_cast %78 : vector<4x8xf32> to vector<4x8x1xf32>
    %80 = vector.broadcast %79 : vector<4x8x1xf32> to vector<4x8x8xf32>
    %81 = arith.subf %77, %80 : vector<4x8x8xf32>
    %82 = math.exp %81 : vector<4x8x8xf32>
    %cst_17 = arith.constant dense<0.000000e+00> : vector<4x8xf32>
    %83 = vector.multi_reduction <add>, %82, %cst_17 [2] : vector<4x8x8xf32> to vector<4x8xf32>
    %84 = vector.shape_cast %83 : vector<4x8xf32> to vector<4x8x1xf32>
    %85 = tpu.reciprocal %84 {approx = true} : vector<4x8x1xf32> -> vector<4x8x1xf32>
    %86 = vector.broadcast %85 : vector<4x8x1xf32> to vector<4x8x8xf32>
    %87 = arith.mulf %82, %86 : vector<4x8x8xf32>
    %88 = arith.truncf %87 : vector<4x8x8xf32> to vector<4x8x8xbf16>
    "tpu.trace_start"() <{level = 10 : i32, message = "hts,hsd->htd"}> : () -> ()
    %cst_18 = arith.constant dense<0.000000e+00> : vector<4x8x32xf32>
    %89 = tpu.matmul %88, %61, %cst_18 {dimension_numbers = #tpu.dot_dimension_numbers<[2], [1], [1], [2], [0, 0, 0, 1, 1, 2], [0], [0]>} : vector<4x8x8xbf16>, vector<4x8x32xbf16>, vector<4x8x32xf32> -> vector<4x8x32xf32>
    "tpu.trace_stop"() : () -> ()
    %90 = vector.extract_strided_slice %89 {offsets = [0, 0, 0], sizes = [1, 8, 32], strides = [1, 1, 1]} : vector<4x8x32xf32> to vector<1x8x32xf32>
    %91 = vector.shape_cast %90 : vector<1x8x32xf32> to vector<8x32xf32>
    %92 = vector.extract_strided_slice %89 {offsets = [1, 0, 0], sizes = [1, 8, 32], strides = [1, 1, 1]} : vector<4x8x32xf32> to vector<1x8x32xf32>
    %93 = vector.shape_cast %92 : vector<1x8x32xf32> to vector<8x32xf32>
    %94 = vector.extract_strided_slice %89 {offsets = [2, 0, 0], sizes = [1, 8, 32], strides = [1, 1, 1]} : vector<4x8x32xf32> to vector<1x8x32xf32>
    %95 = vector.shape_cast %94 : vector<1x8x32xf32> to vector<8x32xf32>
    %96 = vector.extract_strided_slice %89 {offsets = [3, 0, 0], sizes = [1, 8, 32], strides = [1, 1, 1]} : vector<4x8x32xf32> to vector<1x8x32xf32>
    %97 = vector.shape_cast %96 : vector<1x8x32xf32> to vector<8x32xf32>
    %98 = tpu.concatenate %91, %93, %95, %97 in 1 : vector<8x32xf32>, vector<8x32xf32>, vector<8x32xf32>, vector<8x32xf32> -> vector<8x128xf32>
    %c0_19 = arith.constant 0 : index
    %c384 = arith.constant 384 : index
    %99 = vector.load %arg4[%c0_19, %c384] : memref<128x1280xbf16, #tpu.memory_space<vmem>>, vector<128x128xbf16>
    %c1 = arith.constant 1 : index
    %c0_20 = arith.constant 0 : index
    %100 = vector.load %arg6[%c1, %c0_20] : memref<16x384xf32, #tpu.memory_space<vmem>>, vector<1x128xf32>
    %101 = arith.truncf %98 : vector<8x128xf32> to vector<8x128xbf16>
    %cst_21 = arith.constant dense<0.000000e+00> : vector<8x128xf32>
    %102 = tpu.matmul %101, %99, %cst_21 {dimension_numbers = #tpu.dot_dimension_numbers<[1], [0], [0], [1], [0, 0, 1, 1], [], []>} : vector<8x128xbf16>, vector<128x128xbf16>, vector<8x128xf32> -> vector<8x128xf32>
    %103 = vector.broadcast %100 : vector<1x128xf32> to vector<8x128xf32>
    %104 = arith.addf %102, %103 : vector<8x128xf32>
    %105 = arith.addf %32, %104 : vector<8x128xf32>
    %c2 = arith.constant 2 : index
    %c0_22 = arith.constant 0 : index
    %106 = vector.load %arg6[%c2, %c0_22] : memref<16x384xf32, #tpu.memory_space<vmem>>, vector<1x128xf32>
    %c3 = arith.constant 3 : index
    %c0_23 = arith.constant 0 : index
    %107 = vector.load %arg6[%c3, %c0_23] : memref<16x384xf32, #tpu.memory_space<vmem>>, vector<1x128xf32>
    %cst_24 = arith.constant dense<0.000000e+00> : vector<8xf32>
    %108 = vector.multi_reduction <add>, %105, %cst_24 [1] : vector<8x128xf32> to vector<8xf32>
    %109 = vector.shape_cast %108 : vector<8xf32> to vector<8x1xf32>
    %cst_25 = arith.constant 1.280000e+02 : f32
    %110 = vector.broadcast %cst_25 : f32 to vector<8x1xf32>
    %111 = arith.divf %109, %110 : vector<8x1xf32>
    %112 = vector.broadcast %111 : vector<8x1xf32> to vector<8x128xf32>
    %113 = arith.subf %105, %112 : vector<8x128xf32>
    %114 = arith.mulf %113, %113 : vector<8x128xf32>
    %cst_26 = arith.constant dense<0.000000e+00> : vector<8xf32>
    %115 = vector.multi_reduction <add>, %114, %cst_26 [1] : vector<8x128xf32> to vector<8xf32>
    %116 = vector.shape_cast %115 : vector<8xf32> to vector<8x1xf32>
    %cst_27 = arith.constant 1.280000e+02 : f32
    %117 = vector.broadcast %cst_27 : f32 to vector<8x1xf32>
    %118 = arith.divf %116, %117 : vector<8x1xf32>
    %119 = vector.broadcast %111 : vector<8x1xf32> to vector<8x128xf32>
    %120 = arith.subf %105, %119 : vector<8x128xf32>
    %cst_28 = arith.constant 9.99999974E-6 : f32
    %121 = vector.broadcast %cst_28 : f32 to vector<8x1xf32>
    %122 = arith.addf %118, %121 : vector<8x1xf32>
    %123 = math.rsqrt %122 : vector<8x1xf32>
    %124 = vector.broadcast %123 : vector<8x1xf32> to vector<8x128xf32>
    %125 = arith.mulf %120, %124 : vector<8x128xf32>
    %126 = vector.broadcast %106 : vector<1x128xf32> to vector<8x128xf32>
    %127 = arith.mulf %125, %126 : vector<8x128xf32>
    %128 = vector.broadcast %107 : vector<1x128xf32> to vector<8x128xf32>
    %129 = arith.addf %127, %128 : vector<8x128xf32>
    %c0_29 = arith.constant 0 : index
    %c512 = arith.constant 512 : index
    %130 = vector.load %arg4[%c0_29, %c512] : memref<128x1280xbf16, #tpu.memory_space<vmem>>, vector<128x128xbf16>
    %c4 = arith.constant 4 : index
    %c0_30 = arith.constant 0 : index
    %131 = vector.load %arg6[%c4, %c0_30] : memref<16x384xf32, #tpu.memory_space<vmem>>, vector<1x128xf32>
    %132 = arith.truncf %129 : vector<8x128xf32> to vector<8x128xbf16>
    %cst_31 = arith.constant dense<0.000000e+00> : vector<8x128xf32>
    %133 = tpu.matmul %132, %130, %cst_31 {dimension_numbers = #tpu.dot_dimension_numbers<[1], [0], [0], [1], [0, 0, 1, 1], [], []>} : vector<8x128xbf16>, vector<128x128xbf16>, vector<8x128xf32> -> vector<8x128xf32>
    %134 = vector.broadcast %131 : vector<1x128xf32> to vector<8x128xf32>
    %135 = arith.addf %133, %134 : vector<8x128xf32>
    %cst_32 = arith.constant 0.176776692 : f32
    %136 = vector.broadcast %cst_32 : f32 to vector<8x128xf32>
    %137 = arith.mulf %135, %136 : vector<8x128xf32>
    %138 = arith.truncf %137 : vector<8x128xf32> to vector<8x128xbf16>
    %139 = vector.extract_strided_slice %138 {offsets = [0, 0], sizes = [8, 32], strides = [1, 1]} : vector<8x128xbf16> to vector<8x32xbf16>
    %140 = vector.shape_cast %139 : vector<8x32xbf16> to vector<1x8x32xbf16>
    %141 = vector.extract_strided_slice %138 {offsets = [0, 32], sizes = [8, 32], strides = [1, 1]} : vector<8x128xbf16> to vector<8x32xbf16>
    %142 = vector.shape_cast %141 : vector<8x32xbf16> to vector<1x8x32xbf16>
    %143 = vector.extract_strided_slice %138 {offsets = [0, 64], sizes = [8, 32], strides = [1, 1]} : vector<8x128xbf16> to vector<8x32xbf16>
    %144 = vector.shape_cast %143 : vector<8x32xbf16> to vector<1x8x32xbf16>
    %145 = vector.extract_strided_slice %138 {offsets = [0, 96], sizes = [8, 32], strides = [1, 1]} : vector<8x128xbf16> to vector<8x32xbf16>
    %146 = vector.shape_cast %145 : vector<8x32xbf16> to vector<1x8x32xbf16>
    %147 = tpu.concatenate %140, %142, %144, %146 in 0 : vector<1x8x32xbf16>, vector<1x8x32xbf16>, vector<1x8x32xbf16>, vector<1x8x32xbf16> -> vector<4x8x32xbf16>
    "tpu.trace_start"() <{level = 10 : i32, message = "htd,hsd->hts"}> : () -> ()
    %cst_33 = arith.constant dense<0.000000e+00> : vector<4x8x16xf32>
    %148 = tpu.matmul %147, %19, %cst_33 {dimension_numbers = #tpu.dot_dimension_numbers<[2], [2], [1], [1], [0, 0, 0, 1, 1, 1], [0], [0]>} : vector<4x8x32xbf16>, vector<4x16x32xbf16>, vector<4x8x16xf32> -> vector<4x8x16xf32>
    "tpu.trace_stop"() : () -> ()
    %cst_34 = arith.constant dense<0xFF800000> : vector<4x8xf32>
    %149 = vector.multi_reduction <maximumf>, %148, %cst_34 [2] : vector<4x8x16xf32> to vector<4x8xf32>
    %150 = vector.shape_cast %149 : vector<4x8xf32> to vector<4x8x1xf32>
    %151 = vector.broadcast %150 : vector<4x8x1xf32> to vector<4x8x16xf32>
    %152 = arith.subf %148, %151 : vector<4x8x16xf32>
    %153 = math.exp %152 : vector<4x8x16xf32>
    %cst_35 = arith.constant dense<0.000000e+00> : vector<4x8xf32>
    %154 = vector.multi_reduction <add>, %153, %cst_35 [2] : vector<4x8x16xf32> to vector<4x8xf32>
    %155 = vector.shape_cast %154 : vector<4x8xf32> to vector<4x8x1xf32>
    %156 = tpu.reciprocal %155 {approx = true} : vector<4x8x1xf32> -> vector<4x8x1xf32>
    %157 = vector.broadcast %156 : vector<4x8x1xf32> to vector<4x8x16xf32>
    %158 = arith.mulf %153, %157 : vector<4x8x16xf32>
    %159 = arith.truncf %158 : vector<4x8x16xf32> to vector<4x8x16xbf16>
    "tpu.trace_start"() <{level = 10 : i32, message = "hts,hsd->htd"}> : () -> ()
    %cst_36 = arith.constant dense<0.000000e+00> : vector<4x8x32xf32>
    %160 = tpu.matmul %159, %30, %cst_36 {dimension_numbers = #tpu.dot_dimension_numbers<[2], [1], [1], [2], [0, 0, 0, 1, 1, 2], [0], [0]>} : vector<4x8x16xbf16>, vector<4x16x32xbf16>, vector<4x8x32xf32> -> vector<4x8x32xf32>
    "tpu.trace_stop"() : () -> ()
    %161 = vector.extract_strided_slice %160 {offsets = [0, 0, 0], sizes = [1, 8, 32], strides = [1, 1, 1]} : vector<4x8x32xf32> to vector<1x8x32xf32>
    %162 = vector.shape_cast %161 : vector<1x8x32xf32> to vector<8x32xf32>
    %163 = vector.extract_strided_slice %160 {offsets = [1, 0, 0], sizes = [1, 8, 32], strides = [1, 1, 1]} : vector<4x8x32xf32> to vector<1x8x32xf32>
    %164 = vector.shape_cast %163 : vector<1x8x32xf32> to vector<8x32xf32>
    %165 = vector.extract_strided_slice %160 {offsets = [2, 0, 0], sizes = [1, 8, 32], strides = [1, 1, 1]} : vector<4x8x32xf32> to vector<1x8x32xf32>
    %166 = vector.shape_cast %165 : vector<1x8x32xf32> to vector<8x32xf32>
    %167 = vector.extract_strided_slice %160 {offsets = [3, 0, 0], sizes = [1, 8, 32], strides = [1, 1, 1]} : vector<4x8x32xf32> to vector<1x8x32xf32>
    %168 = vector.shape_cast %167 : vector<1x8x32xf32> to vector<8x32xf32>
    %169 = tpu.concatenate %162, %164, %166, %168 in 1 : vector<8x32xf32>, vector<8x32xf32>, vector<8x32xf32>, vector<8x32xf32> -> vector<8x128xf32>
    %c0_37 = arith.constant 0 : index
    %c896 = arith.constant 896 : index
    %170 = vector.load %arg4[%c0_37, %c896] : memref<128x1280xbf16, #tpu.memory_space<vmem>>, vector<128x128xbf16>
    %c6 = arith.constant 6 : index
    %c0_38 = arith.constant 0 : index
    %171 = vector.load %arg6[%c6, %c0_38] : memref<16x384xf32, #tpu.memory_space<vmem>>, vector<1x128xf32>
    %172 = arith.truncf %169 : vector<8x128xf32> to vector<8x128xbf16>
    %cst_39 = arith.constant dense<0.000000e+00> : vector<8x128xf32>
    %173 = tpu.matmul %172, %170, %cst_39 {dimension_numbers = #tpu.dot_dimension_numbers<[1], [0], [0], [1], [0, 0, 1, 1], [], []>} : vector<8x128xbf16>, vector<128x128xbf16>, vector<8x128xf32> -> vector<8x128xf32>
    %174 = vector.broadcast %171 : vector<1x128xf32> to vector<8x128xf32>
    %175 = arith.addf %173, %174 : vector<8x128xf32>
    %176 = arith.addf %129, %175 : vector<8x128xf32>
    %c7 = arith.constant 7 : index
    %c0_40 = arith.constant 0 : index
    %177 = vector.load %arg6[%c7, %c0_40] : memref<16x384xf32, #tpu.memory_space<vmem>>, vector<1x128xf32>
    %c8 = arith.constant 8 : index
    %c0_41 = arith.constant 0 : index
    %178 = vector.load %arg6[%c8, %c0_41] : memref<16x384xf32, #tpu.memory_space<vmem>>, vector<1x128xf32>
    %cst_42 = arith.constant dense<0.000000e+00> : vector<8xf32>
    %179 = vector.multi_reduction <add>, %176, %cst_42 [1] : vector<8x128xf32> to vector<8xf32>
    %180 = vector.shape_cast %179 : vector<8xf32> to vector<8x1xf32>
    %cst_43 = arith.constant 1.280000e+02 : f32
    %181 = vector.broadcast %cst_43 : f32 to vector<8x1xf32>
    %182 = arith.divf %180, %181 : vector<8x1xf32>
    %183 = vector.broadcast %182 : vector<8x1xf32> to vector<8x128xf32>
    %184 = arith.subf %176, %183 : vector<8x128xf32>
    %185 = arith.mulf %184, %184 : vector<8x128xf32>
    %cst_44 = arith.constant dense<0.000000e+00> : vector<8xf32>
    %186 = vector.multi_reduction <add>, %185, %cst_44 [1] : vector<8x128xf32> to vector<8xf32>
    %187 = vector.shape_cast %186 : vector<8xf32> to vector<8x1xf32>
    %cst_45 = arith.constant 1.280000e+02 : f32
    %188 = vector.broadcast %cst_45 : f32 to vector<8x1xf32>
    %189 = arith.divf %187, %188 : vector<8x1xf32>
    %190 = vector.broadcast %182 : vector<8x1xf32> to vector<8x128xf32>
    %191 = arith.subf %176, %190 : vector<8x128xf32>
    %cst_46 = arith.constant 9.99999974E-6 : f32
    %192 = vector.broadcast %cst_46 : f32 to vector<8x1xf32>
    %193 = arith.addf %189, %192 : vector<8x1xf32>
    %194 = math.rsqrt %193 : vector<8x1xf32>
    %195 = vector.broadcast %194 : vector<8x1xf32> to vector<8x128xf32>
    %196 = arith.mulf %191, %195 : vector<8x128xf32>
    %197 = vector.broadcast %177 : vector<1x128xf32> to vector<8x128xf32>
    %198 = arith.mulf %196, %197 : vector<8x128xf32>
    %199 = vector.broadcast %178 : vector<1x128xf32> to vector<8x128xf32>
    %200 = arith.addf %198, %199 : vector<8x128xf32>
    %c0_47 = arith.constant 0 : index
    %c1024 = arith.constant 1024 : index
    %201 = vector.load %arg4[%c0_47, %c1024] : memref<128x1280xbf16, #tpu.memory_space<vmem>>, vector<128x256xbf16>
    %c9 = arith.constant 9 : index
    %c0_48 = arith.constant 0 : index
    %202 = vector.load %arg6[%c9, %c0_48] : memref<16x384xf32, #tpu.memory_space<vmem>>, vector<1x256xf32>
    %203 = arith.truncf %200 : vector<8x128xf32> to vector<8x128xbf16>
    %cst_49 = arith.constant dense<0.000000e+00> : vector<8x256xf32>
    %204 = tpu.matmul %203, %201, %cst_49 {dimension_numbers = #tpu.dot_dimension_numbers<[1], [0], [0], [1], [0, 0, 1, 1], [], []>} : vector<8x128xbf16>, vector<128x256xbf16>, vector<8x256xf32> -> vector<8x256xf32>
    %205 = vector.broadcast %202 : vector<1x256xf32> to vector<8x256xf32>
    %206 = arith.addf %204, %205 : vector<8x256xf32>
    %cst_50 = arith.constant 0.000000e+00 : f32
    %207 = vector.broadcast %cst_50 : f32 to vector<8x256xf32>
    %208 = arith.maximumf %206, %207 : vector<8x256xf32>
    %c0_51 = arith.constant 0 : index
    %c0_52 = arith.constant 0 : index
    %209 = vector.load %arg5[%c0_51, %c0_52] : memref<256x128xbf16, #tpu.memory_space<vmem>>, vector<256x128xbf16>
    %c10 = arith.constant 10 : index
    %c0_53 = arith.constant 0 : index
    %210 = vector.load %arg6[%c10, %c0_53] : memref<16x384xf32, #tpu.memory_space<vmem>>, vector<1x128xf32>
    %211 = arith.truncf %208 : vector<8x256xf32> to vector<8x256xbf16>
    %cst_54 = arith.constant dense<0.000000e+00> : vector<8x128xf32>
    %212 = tpu.matmul %211, %209, %cst_54 {dimension_numbers = #tpu.dot_dimension_numbers<[1], [0], [0], [1], [0, 0, 1, 1], [], []>} : vector<8x256xbf16>, vector<256x128xbf16>, vector<8x128xf32> -> vector<8x128xf32>
    %213 = vector.broadcast %210 : vector<1x128xf32> to vector<8x128xf32>
    %214 = arith.addf %212, %213 : vector<8x128xf32>
    %215 = arith.addf %200, %214 : vector<8x128xf32>
    %c11 = arith.constant 11 : index
    %c0_55 = arith.constant 0 : index
    %216 = vector.load %arg6[%c11, %c0_55] : memref<16x384xf32, #tpu.memory_space<vmem>>, vector<1x128xf32>
    %c12 = arith.constant 12 : index
    %c0_56 = arith.constant 0 : index
    %217 = vector.load %arg6[%c12, %c0_56] : memref<16x384xf32, #tpu.memory_space<vmem>>, vector<1x128xf32>
    %cst_57 = arith.constant dense<0.000000e+00> : vector<8xf32>
    %218 = vector.multi_reduction <add>, %215, %cst_57 [1] : vector<8x128xf32> to vector<8xf32>
    %219 = vector.shape_cast %218 : vector<8xf32> to vector<8x1xf32>
    %cst_58 = arith.constant 1.280000e+02 : f32
    %220 = vector.broadcast %cst_58 : f32 to vector<8x1xf32>
    %221 = arith.divf %219, %220 : vector<8x1xf32>
    %222 = vector.broadcast %221 : vector<8x1xf32> to vector<8x128xf32>
    %223 = arith.subf %215, %222 : vector<8x128xf32>
    %224 = arith.mulf %223, %223 : vector<8x128xf32>
    %cst_59 = arith.constant dense<0.000000e+00> : vector<8xf32>
    %225 = vector.multi_reduction <add>, %224, %cst_59 [1] : vector<8x128xf32> to vector<8xf32>
    %226 = vector.shape_cast %225 : vector<8xf32> to vector<8x1xf32>
    %cst_60 = arith.constant 1.280000e+02 : f32
    %227 = vector.broadcast %cst_60 : f32 to vector<8x1xf32>
    %228 = arith.divf %226, %227 : vector<8x1xf32>
    %229 = vector.broadcast %221 : vector<8x1xf32> to vector<8x128xf32>
    %230 = arith.subf %215, %229 : vector<8x128xf32>
    %cst_61 = arith.constant 9.99999974E-6 : f32
    %231 = vector.broadcast %cst_61 : f32 to vector<8x1xf32>
    %232 = arith.addf %228, %231 : vector<8x1xf32>
    %233 = math.rsqrt %232 : vector<8x1xf32>
    %234 = vector.broadcast %233 : vector<8x1xf32> to vector<8x128xf32>
    %235 = arith.mulf %230, %234 : vector<8x128xf32>
    %236 = vector.broadcast %216 : vector<1x128xf32> to vector<8x128xf32>
    %237 = arith.mulf %235, %236 : vector<8x128xf32>
    %238 = vector.broadcast %217 : vector<1x128xf32> to vector<8x128xf32>
    %239 = arith.addf %237, %238 : vector<8x128xf32>
    %c0_62 = arith.constant 0 : index
    %c0_63 = arith.constant 0 : index
    %240 = vector.load %arg4[%c0_62, %c0_63] : memref<128x1280xbf16, #tpu.memory_space<vmem>>, vector<128x384xbf16>
    %c0_64 = arith.constant 0 : index
    %c0_65 = arith.constant 0 : index
    %241 = vector.load %arg6[%c0_64, %c0_65] : memref<16x384xf32, #tpu.memory_space<vmem>>, vector<1x384xf32>
    %242 = arith.truncf %239 : vector<8x128xf32> to vector<8x128xbf16>
    %cst_66 = arith.constant dense<0.000000e+00> : vector<8x384xf32>
    %243 = tpu.matmul %242, %240, %cst_66 {dimension_numbers = #tpu.dot_dimension_numbers<[1], [0], [0], [1], [0, 0, 1, 1], [], []>} : vector<8x128xbf16>, vector<128x384xbf16>, vector<8x384xf32> -> vector<8x384xf32>
    %244 = vector.broadcast %241 : vector<1x384xf32> to vector<8x384xf32>
    %245 = arith.addf %243, %244 : vector<8x384xf32>
    %246 = vector.extract_strided_slice %245 {offsets = [0, 0], sizes = [8, 128], strides = [1, 1]} : vector<8x384xf32> to vector<8x128xf32>
    %247 = vector.extract_strided_slice %245 {offsets = [0, 128], sizes = [8, 128], strides = [1, 1]} : vector<8x384xf32> to vector<8x128xf32>
    %248 = arith.truncf %247 : vector<8x128xf32> to vector<8x128xbf16>
    %249 = vector.extract_strided_slice %248 {offsets = [0, 0], sizes = [8, 32], strides = [1, 1]} : vector<8x128xbf16> to vector<8x32xbf16>
    %250 = vector.shape_cast %249 : vector<8x32xbf16> to vector<1x8x32xbf16>
    %251 = vector.extract_strided_slice %248 {offsets = [0, 32], sizes = [8, 32], strides = [1, 1]} : vector<8x128xbf16> to vector<8x32xbf16>
    %252 = vector.shape_cast %251 : vector<8x32xbf16> to vector<1x8x32xbf16>
    %253 = vector.extract_strided_slice %248 {offsets = [0, 64], sizes = [8, 32], strides = [1, 1]} : vector<8x128xbf16> to vector<8x32xbf16>
    %254 = vector.shape_cast %253 : vector<8x32xbf16> to vector<1x8x32xbf16>
    %255 = vector.extract_strided_slice %248 {offsets = [0, 96], sizes = [8, 32], strides = [1, 1]} : vector<8x128xbf16> to vector<8x32xbf16>
    %256 = vector.shape_cast %255 : vector<8x32xbf16> to vector<1x8x32xbf16>
    %257 = tpu.concatenate %250, %252, %254, %256 in 0 : vector<1x8x32xbf16>, vector<1x8x32xbf16>, vector<1x8x32xbf16>, vector<1x8x32xbf16> -> vector<4x8x32xbf16>
    %258 = vector.extract_strided_slice %245 {offsets = [0, 256], sizes = [8, 128], strides = [1, 1]} : vector<8x384xf32> to vector<8x128xf32>
    %259 = arith.truncf %258 : vector<8x128xf32> to vector<8x128xbf16>
    %260 = vector.extract_strided_slice %259 {offsets = [0, 0], sizes = [8, 32], strides = [1, 1]} : vector<8x128xbf16> to vector<8x32xbf16>
    %261 = vector.shape_cast %260 : vector<8x32xbf16> to vector<1x8x32xbf16>
    %262 = vector.extract_strided_slice %259 {offsets = [0, 32], sizes = [8, 32], strides = [1, 1]} : vector<8x128xbf16> to vector<8x32xbf16>
    %263 = vector.shape_cast %262 : vector<8x32xbf16> to vector<1x8x32xbf16>
    %264 = vector.extract_strided_slice %259 {offsets = [0, 64], sizes = [8, 32], strides = [1, 1]} : vector<8x128xbf16> to vector<8x32xbf16>
    %265 = vector.shape_cast %264 : vector<8x32xbf16> to vector<1x8x32xbf16>
    %266 = vector.extract_strided_slice %259 {offsets = [0, 96], sizes = [8, 32], strides = [1, 1]} : vector<8x128xbf16> to vector<8x32xbf16>
    %267 = vector.shape_cast %266 : vector<8x32xbf16> to vector<1x8x32xbf16>
    %268 = tpu.concatenate %261, %263, %265, %267 in 0 : vector<1x8x32xbf16>, vector<1x8x32xbf16>, vector<1x8x32xbf16>, vector<1x8x32xbf16> -> vector<4x8x32xbf16>
    %cst_67 = arith.constant 0.176776692 : f32
    %269 = vector.broadcast %cst_67 : f32 to vector<8x128xf32>
    %270 = arith.mulf %246, %269 : vector<8x128xf32>
    %271 = arith.truncf %270 : vector<8x128xf32> to vector<8x128xbf16>
    %272 = vector.extract_strided_slice %271 {offsets = [0, 0], sizes = [8, 32], strides = [1, 1]} : vector<8x128xbf16> to vector<8x32xbf16>
    %273 = vector.shape_cast %272 : vector<8x32xbf16> to vector<1x8x32xbf16>
    %274 = vector.extract_strided_slice %271 {offsets = [0, 32], sizes = [8, 32], strides = [1, 1]} : vector<8x128xbf16> to vector<8x32xbf16>
    %275 = vector.shape_cast %274 : vector<8x32xbf16> to vector<1x8x32xbf16>
    %276 = vector.extract_strided_slice %271 {offsets = [0, 64], sizes = [8, 32], strides = [1, 1]} : vector<8x128xbf16> to vector<8x32xbf16>
    %277 = vector.shape_cast %276 : vector<8x32xbf16> to vector<1x8x32xbf16>
    %278 = vector.extract_strided_slice %271 {offsets = [0, 96], sizes = [8, 32], strides = [1, 1]} : vector<8x128xbf16> to vector<8x32xbf16>
    %279 = vector.shape_cast %278 : vector<8x32xbf16> to vector<1x8x32xbf16>
    %280 = tpu.concatenate %273, %275, %277, %279 in 0 : vector<1x8x32xbf16>, vector<1x8x32xbf16>, vector<1x8x32xbf16>, vector<1x8x32xbf16> -> vector<4x8x32xbf16>
    "tpu.trace_start"() <{level = 10 : i32, message = "htd,hsd->hts"}> : () -> ()
    %cst_68 = arith.constant dense<0.000000e+00> : vector<4x8x8xf32>
    %281 = tpu.matmul %280, %257, %cst_68 {dimension_numbers = #tpu.dot_dimension_numbers<[2], [2], [1], [1], [0, 0, 0, 1, 1, 1], [0], [0]>} : vector<4x8x32xbf16>, vector<4x8x32xbf16>, vector<4x8x8xf32> -> vector<4x8x8xf32>
    "tpu.trace_stop"() : () -> ()
    %282 = vector.shape_cast %0 : vector<8x8xf32> to vector<1x8x8xf32>
    %283 = vector.broadcast %282 : vector<1x8x8xf32> to vector<4x8x8xf32>
    %284 = arith.addf %281, %283 : vector<4x8x8xf32>
    %cst_69 = arith.constant dense<0xFF800000> : vector<4x8xf32>
    %285 = vector.multi_reduction <maximumf>, %284, %cst_69 [2] : vector<4x8x8xf32> to vector<4x8xf32>
    %286 = vector.shape_cast %285 : vector<4x8xf32> to vector<4x8x1xf32>
    %287 = vector.broadcast %286 : vector<4x8x1xf32> to vector<4x8x8xf32>
    %288 = arith.subf %284, %287 : vector<4x8x8xf32>
    %289 = math.exp %288 : vector<4x8x8xf32>
    %cst_70 = arith.constant dense<0.000000e+00> : vector<4x8xf32>
    %290 = vector.multi_reduction <add>, %289, %cst_70 [2] : vector<4x8x8xf32> to vector<4x8xf32>
    %291 = vector.shape_cast %290 : vector<4x8xf32> to vector<4x8x1xf32>
    %292 = tpu.reciprocal %291 {approx = true} : vector<4x8x1xf32> -> vector<4x8x1xf32>
    %293 = vector.broadcast %292 : vector<4x8x1xf32> to vector<4x8x8xf32>
    %294 = arith.mulf %289, %293 : vector<4x8x8xf32>
    %295 = arith.truncf %294 : vector<4x8x8xf32> to vector<4x8x8xbf16>
    "tpu.trace_start"() <{level = 10 : i32, message = "hts,hsd->htd"}> : () -> ()
    %cst_71 = arith.constant dense<0.000000e+00> : vector<4x8x32xf32>
    %296 = tpu.matmul %295, %268, %cst_71 {dimension_numbers = #tpu.dot_dimension_numbers<[2], [1], [1], [2], [0, 0, 0, 1, 1, 2], [0], [0]>} : vector<4x8x8xbf16>, vector<4x8x32xbf16>, vector<4x8x32xf32> -> vector<4x8x32xf32>
    "tpu.trace_stop"() : () -> ()
    %297 = vector.extract_strided_slice %296 {offsets = [0, 0, 0], sizes = [1, 8, 32], strides = [1, 1, 1]} : vector<4x8x32xf32> to vector<1x8x32xf32>
    %298 = vector.shape_cast %297 : vector<1x8x32xf32> to vector<8x32xf32>
    %299 = vector.extract_strided_slice %296 {offsets = [1, 0, 0], sizes = [1, 8, 32], strides = [1, 1, 1]} : vector<4x8x32xf32> to vector<1x8x32xf32>
    %300 = vector.shape_cast %299 : vector<1x8x32xf32> to vector<8x32xf32>
    %301 = vector.extract_strided_slice %296 {offsets = [2, 0, 0], sizes = [1, 8, 32], strides = [1, 1, 1]} : vector<4x8x32xf32> to vector<1x8x32xf32>
    %302 = vector.shape_cast %301 : vector<1x8x32xf32> to vector<8x32xf32>
    %303 = vector.extract_strided_slice %296 {offsets = [3, 0, 0], sizes = [1, 8, 32], strides = [1, 1, 1]} : vector<4x8x32xf32> to vector<1x8x32xf32>
    %304 = vector.shape_cast %303 : vector<1x8x32xf32> to vector<8x32xf32>
    %305 = tpu.concatenate %298, %300, %302, %304 in 1 : vector<8x32xf32>, vector<8x32xf32>, vector<8x32xf32>, vector<8x32xf32> -> vector<8x128xf32>
    %c0_72 = arith.constant 0 : index
    %c384_73 = arith.constant 384 : index
    %306 = vector.load %arg4[%c0_72, %c384_73] : memref<128x1280xbf16, #tpu.memory_space<vmem>>, vector<128x128xbf16>
    %c1_74 = arith.constant 1 : index
    %c0_75 = arith.constant 0 : index
    %307 = vector.load %arg6[%c1_74, %c0_75] : memref<16x384xf32, #tpu.memory_space<vmem>>, vector<1x128xf32>
    %308 = arith.truncf %305 : vector<8x128xf32> to vector<8x128xbf16>
    %cst_76 = arith.constant dense<0.000000e+00> : vector<8x128xf32>
    %309 = tpu.matmul %308, %306, %cst_76 {dimension_numbers = #tpu.dot_dimension_numbers<[1], [0], [0], [1], [0, 0, 1, 1], [], []>} : vector<8x128xbf16>, vector<128x128xbf16>, vector<8x128xf32> -> vector<8x128xf32>
    %310 = vector.broadcast %307 : vector<1x128xf32> to vector<8x128xf32>
    %311 = arith.addf %309, %310 : vector<8x128xf32>
    %312 = arith.addf %239, %311 : vector<8x128xf32>
    %c2_77 = arith.constant 2 : index
    %c0_78 = arith.constant 0 : index
    %313 = vector.load %arg6[%c2_77, %c0_78] : memref<16x384xf32, #tpu.memory_space<vmem>>, vector<1x128xf32>
    %c3_79 = arith.constant 3 : index
    %c0_80 = arith.constant 0 : index
    %314 = vector.load %arg6[%c3_79, %c0_80] : memref<16x384xf32, #tpu.memory_space<vmem>>, vector<1x128xf32>
    %cst_81 = arith.constant dense<0.000000e+00> : vector<8xf32>
    %315 = vector.multi_reduction <add>, %312, %cst_81 [1] : vector<8x128xf32> to vector<8xf32>
    %316 = vector.shape_cast %315 : vector<8xf32> to vector<8x1xf32>
    %cst_82 = arith.constant 1.280000e+02 : f32
    %317 = vector.broadcast %cst_82 : f32 to vector<8x1xf32>
    %318 = arith.divf %316, %317 : vector<8x1xf32>
    %319 = vector.broadcast %318 : vector<8x1xf32> to vector<8x128xf32>
    %320 = arith.subf %312, %319 : vector<8x128xf32>
    %321 = arith.mulf %320, %320 : vector<8x128xf32>
    %cst_83 = arith.constant dense<0.000000e+00> : vector<8xf32>
    %322 = vector.multi_reduction <add>, %321, %cst_83 [1] : vector<8x128xf32> to vector<8xf32>
    %323 = vector.shape_cast %322 : vector<8xf32> to vector<8x1xf32>
    %cst_84 = arith.constant 1.280000e+02 : f32
    %324 = vector.broadcast %cst_84 : f32 to vector<8x1xf32>
    %325 = arith.divf %323, %324 : vector<8x1xf32>
    %326 = vector.broadcast %318 : vector<8x1xf32> to vector<8x128xf32>
    %327 = arith.subf %312, %326 : vector<8x128xf32>
    %cst_85 = arith.constant 9.99999974E-6 : f32
    %328 = vector.broadcast %cst_85 : f32 to vector<8x1xf32>
    %329 = arith.addf %325, %328 : vector<8x1xf32>
    %330 = math.rsqrt %329 : vector<8x1xf32>
    %331 = vector.broadcast %330 : vector<8x1xf32> to vector<8x128xf32>
    %332 = arith.mulf %327, %331 : vector<8x128xf32>
    %333 = vector.broadcast %313 : vector<1x128xf32> to vector<8x128xf32>
    %334 = arith.mulf %332, %333 : vector<8x128xf32>
    %335 = vector.broadcast %314 : vector<1x128xf32> to vector<8x128xf32>
    %336 = arith.addf %334, %335 : vector<8x128xf32>
    %c0_86 = arith.constant 0 : index
    %c512_87 = arith.constant 512 : index
    %337 = vector.load %arg4[%c0_86, %c512_87] : memref<128x1280xbf16, #tpu.memory_space<vmem>>, vector<128x128xbf16>
    %c4_88 = arith.constant 4 : index
    %c0_89 = arith.constant 0 : index
    %338 = vector.load %arg6[%c4_88, %c0_89] : memref<16x384xf32, #tpu.memory_space<vmem>>, vector<1x128xf32>
    %339 = arith.truncf %336 : vector<8x128xf32> to vector<8x128xbf16>
    %cst_90 = arith.constant dense<0.000000e+00> : vector<8x128xf32>
    %340 = tpu.matmul %339, %337, %cst_90 {dimension_numbers = #tpu.dot_dimension_numbers<[1], [0], [0], [1], [0, 0, 1, 1], [], []>} : vector<8x128xbf16>, vector<128x128xbf16>, vector<8x128xf32> -> vector<8x128xf32>
    %341 = vector.broadcast %338 : vector<1x128xf32> to vector<8x128xf32>
    %342 = arith.addf %340, %341 : vector<8x128xf32>
    %cst_91 = arith.constant 0.176776692 : f32
    %343 = vector.broadcast %cst_91 : f32 to vector<8x128xf32>
    %344 = arith.mulf %342, %343 : vector<8x128xf32>
    %345 = arith.truncf %344 : vector<8x128xf32> to vector<8x128xbf16>
    %346 = vector.extract_strided_slice %345 {offsets = [0, 0], sizes = [8, 32], strides = [1, 1]} : vector<8x128xbf16> to vector<8x32xbf16>
    %347 = vector.shape_cast %346 : vector<8x32xbf16> to vector<1x8x32xbf16>
    %348 = vector.extract_strided_slice %345 {offsets = [0, 32], sizes = [8, 32], strides = [1, 1]} : vector<8x128xbf16> to vector<8x32xbf16>
    %349 = vector.shape_cast %348 : vector<8x32xbf16> to vector<1x8x32xbf16>
    %350 = vector.extract_strided_slice %345 {offsets = [0, 64], sizes = [8, 32], strides = [1, 1]} : vector<8x128xbf16> to vector<8x32xbf16>
    %351 = vector.shape_cast %350 : vector<8x32xbf16> to vector<1x8x32xbf16>
    %352 = vector.extract_strided_slice %345 {offsets = [0, 96], sizes = [8, 32], strides = [1, 1]} : vector<8x128xbf16> to vector<8x32xbf16>
    %353 = vector.shape_cast %352 : vector<8x32xbf16> to vector<1x8x32xbf16>
    %354 = tpu.concatenate %347, %349, %351, %353 in 0 : vector<1x8x32xbf16>, vector<1x8x32xbf16>, vector<1x8x32xbf16>, vector<1x8x32xbf16> -> vector<4x8x32xbf16>
    "tpu.trace_start"() <{level = 10 : i32, message = "htd,hsd->hts"}> : () -> ()
    %cst_92 = arith.constant dense<0.000000e+00> : vector<4x8x16xf32>
    %355 = tpu.matmul %354, %19, %cst_92 {dimension_numbers = #tpu.dot_dimension_numbers<[2], [2], [1], [1], [0, 0, 0, 1, 1, 1], [0], [0]>} : vector<4x8x32xbf16>, vector<4x16x32xbf16>, vector<4x8x16xf32> -> vector<4x8x16xf32>
    "tpu.trace_stop"() : () -> ()
    %cst_93 = arith.constant dense<0xFF800000> : vector<4x8xf32>
    %356 = vector.multi_reduction <maximumf>, %355, %cst_93 [2] : vector<4x8x16xf32> to vector<4x8xf32>
    %357 = vector.shape_cast %356 : vector<4x8xf32> to vector<4x8x1xf32>
    %358 = vector.broadcast %357 : vector<4x8x1xf32> to vector<4x8x16xf32>
    %359 = arith.subf %355, %358 : vector<4x8x16xf32>
    %360 = math.exp %359 : vector<4x8x16xf32>
    %cst_94 = arith.constant dense<0.000000e+00> : vector<4x8xf32>
    %361 = vector.multi_reduction <add>, %360, %cst_94 [2] : vector<4x8x16xf32> to vector<4x8xf32>
    %362 = vector.shape_cast %361 : vector<4x8xf32> to vector<4x8x1xf32>
    %363 = tpu.reciprocal %362 {approx = true} : vector<4x8x1xf32> -> vector<4x8x1xf32>
    %364 = vector.broadcast %363 : vector<4x8x1xf32> to vector<4x8x16xf32>
    %365 = arith.mulf %360, %364 : vector<4x8x16xf32>
    %366 = arith.truncf %365 : vector<4x8x16xf32> to vector<4x8x16xbf16>
    "tpu.trace_start"() <{level = 10 : i32, message = "hts,hsd->htd"}> : () -> ()
    %cst_95 = arith.constant dense<0.000000e+00> : vector<4x8x32xf32>
    %367 = tpu.matmul %366, %30, %cst_95 {dimension_numbers = #tpu.dot_dimension_numbers<[2], [1], [1], [2], [0, 0, 0, 1, 1, 2], [0], [0]>} : vector<4x8x16xbf16>, vector<4x16x32xbf16>, vector<4x8x32xf32> -> vector<4x8x32xf32>
    "tpu.trace_stop"() : () -> ()
    %368 = vector.extract_strided_slice %367 {offsets = [0, 0, 0], sizes = [1, 8, 32], strides = [1, 1, 1]} : vector<4x8x32xf32> to vector<1x8x32xf32>
    %369 = vector.shape_cast %368 : vector<1x8x32xf32> to vector<8x32xf32>
    %370 = vector.extract_strided_slice %367 {offsets = [1, 0, 0], sizes = [1, 8, 32], strides = [1, 1, 1]} : vector<4x8x32xf32> to vector<1x8x32xf32>
    %371 = vector.shape_cast %370 : vector<1x8x32xf32> to vector<8x32xf32>
    %372 = vector.extract_strided_slice %367 {offsets = [2, 0, 0], sizes = [1, 8, 32], strides = [1, 1, 1]} : vector<4x8x32xf32> to vector<1x8x32xf32>
    %373 = vector.shape_cast %372 : vector<1x8x32xf32> to vector<8x32xf32>
    %374 = vector.extract_strided_slice %367 {offsets = [3, 0, 0], sizes = [1, 8, 32], strides = [1, 1, 1]} : vector<4x8x32xf32> to vector<1x8x32xf32>
    %375 = vector.shape_cast %374 : vector<1x8x32xf32> to vector<8x32xf32>
    %376 = tpu.concatenate %369, %371, %373, %375 in 1 : vector<8x32xf32>, vector<8x32xf32>, vector<8x32xf32>, vector<8x32xf32> -> vector<8x128xf32>
    %c0_96 = arith.constant 0 : index
    %c896_97 = arith.constant 896 : index
    %377 = vector.load %arg4[%c0_96, %c896_97] : memref<128x1280xbf16, #tpu.memory_space<vmem>>, vector<128x128xbf16>
    %c6_98 = arith.constant 6 : index
    %c0_99 = arith.constant 0 : index
    %378 = vector.load %arg6[%c6_98, %c0_99] : memref<16x384xf32, #tpu.memory_space<vmem>>, vector<1x128xf32>
    %379 = arith.truncf %376 : vector<8x128xf32> to vector<8x128xbf16>
    %cst_100 = arith.constant dense<0.000000e+00> : vector<8x128xf32>
    %380 = tpu.matmul %379, %377, %cst_100 {dimension_numbers = #tpu.dot_dimension_numbers<[1], [0], [0], [1], [0, 0, 1, 1], [], []>} : vector<8x128xbf16>, vector<128x128xbf16>, vector<8x128xf32> -> vector<8x128xf32>
    %381 = vector.broadcast %378 : vector<1x128xf32> to vector<8x128xf32>
    %382 = arith.addf %380, %381 : vector<8x128xf32>
    %383 = arith.addf %336, %382 : vector<8x128xf32>
    %c7_101 = arith.constant 7 : index
    %c0_102 = arith.constant 0 : index
    %384 = vector.load %arg6[%c7_101, %c0_102] : memref<16x384xf32, #tpu.memory_space<vmem>>, vector<1x128xf32>
    %c8_103 = arith.constant 8 : index
    %c0_104 = arith.constant 0 : index
    %385 = vector.load %arg6[%c8_103, %c0_104] : memref<16x384xf32, #tpu.memory_space<vmem>>, vector<1x128xf32>
    %cst_105 = arith.constant dense<0.000000e+00> : vector<8xf32>
    %386 = vector.multi_reduction <add>, %383, %cst_105 [1] : vector<8x128xf32> to vector<8xf32>
    %387 = vector.shape_cast %386 : vector<8xf32> to vector<8x1xf32>
    %cst_106 = arith.constant 1.280000e+02 : f32
    %388 = vector.broadcast %cst_106 : f32 to vector<8x1xf32>
    %389 = arith.divf %387, %388 : vector<8x1xf32>
    %390 = vector.broadcast %389 : vector<8x1xf32> to vector<8x128xf32>
    %391 = arith.subf %383, %390 : vector<8x128xf32>
    %392 = arith.mulf %391, %391 : vector<8x128xf32>
    %cst_107 = arith.constant dense<0.000000e+00> : vector<8xf32>
    %393 = vector.multi_reduction <add>, %392, %cst_107 [1] : vector<8x128xf32> to vector<8xf32>
    %394 = vector.shape_cast %393 : vector<8xf32> to vector<8x1xf32>
    %cst_108 = arith.constant 1.280000e+02 : f32
    %395 = vector.broadcast %cst_108 : f32 to vector<8x1xf32>
    %396 = arith.divf %394, %395 : vector<8x1xf32>
    %397 = vector.broadcast %389 : vector<8x1xf32> to vector<8x128xf32>
    %398 = arith.subf %383, %397 : vector<8x128xf32>
    %cst_109 = arith.constant 9.99999974E-6 : f32
    %399 = vector.broadcast %cst_109 : f32 to vector<8x1xf32>
    %400 = arith.addf %396, %399 : vector<8x1xf32>
    %401 = math.rsqrt %400 : vector<8x1xf32>
    %402 = vector.broadcast %401 : vector<8x1xf32> to vector<8x128xf32>
    %403 = arith.mulf %398, %402 : vector<8x128xf32>
    %404 = vector.broadcast %384 : vector<1x128xf32> to vector<8x128xf32>
    %405 = arith.mulf %403, %404 : vector<8x128xf32>
    %406 = vector.broadcast %385 : vector<1x128xf32> to vector<8x128xf32>
    %407 = arith.addf %405, %406 : vector<8x128xf32>
    %c0_110 = arith.constant 0 : index
    %c1024_111 = arith.constant 1024 : index
    %408 = vector.load %arg4[%c0_110, %c1024_111] : memref<128x1280xbf16, #tpu.memory_space<vmem>>, vector<128x256xbf16>
    %c9_112 = arith.constant 9 : index
    %c0_113 = arith.constant 0 : index
    %409 = vector.load %arg6[%c9_112, %c0_113] : memref<16x384xf32, #tpu.memory_space<vmem>>, vector<1x256xf32>
    %410 = arith.truncf %407 : vector<8x128xf32> to vector<8x128xbf16>
    %cst_114 = arith.constant dense<0.000000e+00> : vector<8x256xf32>
    %411 = tpu.matmul %410, %408, %cst_114 {dimension_numbers = #tpu.dot_dimension_numbers<[1], [0], [0], [1], [0, 0, 1, 1], [], []>} : vector<8x128xbf16>, vector<128x256xbf16>, vector<8x256xf32> -> vector<8x256xf32>
    %412 = vector.broadcast %409 : vector<1x256xf32> to vector<8x256xf32>
    %413 = arith.addf %411, %412 : vector<8x256xf32>
    %cst_115 = arith.constant 0.000000e+00 : f32
    %414 = vector.broadcast %cst_115 : f32 to vector<8x256xf32>
    %415 = arith.maximumf %413, %414 : vector<8x256xf32>
    %c0_116 = arith.constant 0 : index
    %c0_117 = arith.constant 0 : index
    %416 = vector.load %arg5[%c0_116, %c0_117] : memref<256x128xbf16, #tpu.memory_space<vmem>>, vector<256x128xbf16>
    %c10_118 = arith.constant 10 : index
    %c0_119 = arith.constant 0 : index
    %417 = vector.load %arg6[%c10_118, %c0_119] : memref<16x384xf32, #tpu.memory_space<vmem>>, vector<1x128xf32>
    %418 = arith.truncf %415 : vector<8x256xf32> to vector<8x256xbf16>
    %cst_120 = arith.constant dense<0.000000e+00> : vector<8x128xf32>
    %419 = tpu.matmul %418, %416, %cst_120 {dimension_numbers = #tpu.dot_dimension_numbers<[1], [0], [0], [1], [0, 0, 1, 1], [], []>} : vector<8x256xbf16>, vector<256x128xbf16>, vector<8x128xf32> -> vector<8x128xf32>
    %420 = vector.broadcast %417 : vector<1x128xf32> to vector<8x128xf32>
    %421 = arith.addf %419, %420 : vector<8x128xf32>
    %422 = arith.addf %407, %421 : vector<8x128xf32>
    %c11_121 = arith.constant 11 : index
    %c0_122 = arith.constant 0 : index
    %423 = vector.load %arg6[%c11_121, %c0_122] : memref<16x384xf32, #tpu.memory_space<vmem>>, vector<1x128xf32>
    %c12_123 = arith.constant 12 : index
    %c0_124 = arith.constant 0 : index
    %424 = vector.load %arg6[%c12_123, %c0_124] : memref<16x384xf32, #tpu.memory_space<vmem>>, vector<1x128xf32>
    %cst_125 = arith.constant dense<0.000000e+00> : vector<8xf32>
    %425 = vector.multi_reduction <add>, %422, %cst_125 [1] : vector<8x128xf32> to vector<8xf32>
    %426 = vector.shape_cast %425 : vector<8xf32> to vector<8x1xf32>
    %cst_126 = arith.constant 1.280000e+02 : f32
    %427 = vector.broadcast %cst_126 : f32 to vector<8x1xf32>
    %428 = arith.divf %426, %427 : vector<8x1xf32>
    %429 = vector.broadcast %428 : vector<8x1xf32> to vector<8x128xf32>
    %430 = arith.subf %422, %429 : vector<8x128xf32>
    %431 = arith.mulf %430, %430 : vector<8x128xf32>
    %cst_127 = arith.constant dense<0.000000e+00> : vector<8xf32>
    %432 = vector.multi_reduction <add>, %431, %cst_127 [1] : vector<8x128xf32> to vector<8xf32>
    %433 = vector.shape_cast %432 : vector<8xf32> to vector<8x1xf32>
    %cst_128 = arith.constant 1.280000e+02 : f32
    %434 = vector.broadcast %cst_128 : f32 to vector<8x1xf32>
    %435 = arith.divf %433, %434 : vector<8x1xf32>
    %436 = vector.broadcast %428 : vector<8x1xf32> to vector<8x128xf32>
    %437 = arith.subf %422, %436 : vector<8x128xf32>
    %cst_129 = arith.constant 9.99999974E-6 : f32
    %438 = vector.broadcast %cst_129 : f32 to vector<8x1xf32>
    %439 = arith.addf %435, %438 : vector<8x1xf32>
    %440 = math.rsqrt %439 : vector<8x1xf32>
    %441 = vector.broadcast %440 : vector<8x1xf32> to vector<8x128xf32>
    %442 = arith.mulf %437, %441 : vector<8x128xf32>
    %443 = vector.broadcast %423 : vector<1x128xf32> to vector<8x128xf32>
    %444 = arith.mulf %442, %443 : vector<8x128xf32>
    %445 = vector.broadcast %424 : vector<1x128xf32> to vector<8x128xf32>
    %446 = arith.addf %444, %445 : vector<8x128xf32>
    %c0_130 = arith.constant 0 : index
    %c0_131 = arith.constant 0 : index
    %c0_132 = arith.constant 0 : index
    %447 = vector.load %arg7[%c0_130, %c0_131, %c0_132] : memref<1x8x128xf32, #tpu.memory_space<vmem>>, vector<1x8x128xf32>
    %448 = vector.shape_cast %447 : vector<1x8x128xf32> to vector<8x128xf32>
    %449 = vector.shape_cast %446 : vector<8x128xf32> to vector<1x8x128xf32>
    tpu.vector_store %arg7[%c0_130, %c0_131, %c0_132], %449 {strides = array<i32>} : memref<1x8x128xf32, #tpu.memory_space<vmem>>, vector<1x8x128xf32>,
    return
  }
  func.func @transform_0(%arg0: i32) -> (i32, i32) {
    %c0_i32 = arith.constant 0 : i32
    %c0_i32_0 = arith.constant 0 : i32
    %c0_i32_1 = arith.constant 0 : i32
    return %c0_i32, %c0_i32_0 : i32, i32
  }
  func.func @transform_1(%arg0: i32) -> (i32, i32, i32) {
    %c0_i32 = arith.constant 0 : i32
    %c0_i32_0 = arith.constant 0 : i32
    %c0_i32_1 = arith.constant 0 : i32
    return %arg0, %c0_i32, %c0_i32_0 : i32, i32, i32
  }
  func.func @transform_2(%arg0: i32) -> (i32, i32, i32) {
    %c0_i32 = arith.constant 0 : i32
    %c0_i32_0 = arith.constant 0 : i32
    %c0_i32_1 = arith.constant 0 : i32
    return %arg0, %c0_i32, %c0_i32_0 : i32, i32, i32
  }
  func.func @transform_3(%arg0: i32) -> (i32, i32) {
    %c0_i32 = arith.constant 0 : i32
    %c0_i32_0 = arith.constant 0 : i32
    %c0_i32_1 = arith.constant 0 : i32
    return %c0_i32, %c0_i32_0 : i32, i32
  }
  func.func @transform_4(%arg0: i32) -> (i32, i32) {
    %c0_i32 = arith.constant 0 : i32
    %c0_i32_0 = arith.constant 0 : i32
    %c0_i32_1 = arith.constant 0 : i32
    return %c0_i32, %c0_i32_0 : i32, i32
  }
  func.func @transform_5(%arg0: i32) -> (i32, i32) {
    %c0_i32 = arith.constant 0 : i32
    %c0_i32_0 = arith.constant 0 : i32
    %c0_i32_1 = arith.constant 0 : i32
    return %c0_i32, %c0_i32_0 : i32, i32
  }
  func.func @transform_6(%arg0: i32) -> (i32, i32, i32) {
    %c0_i32 = arith.constant 0 : i32
    %c0_i32_0 = arith.constant 0 : i32
    %c0_i32_1 = arith.constant 0 : i32
    return %arg0, %c0_i32, %c0_i32_0 : i32, i32, i32
  }
}

</mosaic_0001>

<llo_original>
// kernel: tpu_custom_call.1
$region0: #{tpu_custom_call.1}
  #allocation0 [shape = 'u32[]', space=smem, size = 0x4, offset = 0x4, fixed_abs, tag = 'smem constant byte address 0x4 - core index']
  #allocation1 [shape = 'u32[144,128]{1,0:T(1,128)}', space=vmem, size = 0x12000, scoped, tag = 'internal scratch']
  %s0 = inlined_call_operand.hbm [shape: f32[8,8], index: 0, kind: input, shape index: {}]
  %s1 = inlined_call_operand.hbm [shape: f32[2,8,128], index: 1, kind: input, shape index: {}]
  %s2 = inlined_call_operand.hbm [shape: f32[2,16,128], index: 2, kind: input, shape index: {}]
  %s3 = inlined_call_operand.hbm [shape: bf16[128,1280], index: 3, kind: input, shape index: {}]
  %s4 = inlined_call_operand.hbm [shape: bf16[256,128], index: 4, kind: input, shape index: {}]
  %s5 = inlined_call_operand.hbm [shape: f32[16,384], index: 5, kind: input, shape index: {}]
  %s6 = inlined_call_operand.hbm [shape: f32[2,8,128], index: 6, kind: output, shape index: {}]
  %s7 = sld [smem:[#allocation0]]
  $region81: #{tpu_custom_call.1} parent=0
    _
  %s9 = ssub.s32 1, %s7
  %s10 = scalar_select 0, %s9, %s7
  $region1: #{tpu_custom_call.1} parent=0
    #allocation2 [shape = 'u8[4096]{0}', space=vmem, size = 0x1000, scoped, tag = 'input window, operand 0, single buffered']
    #allocation3 [shape = 's32[2]{0}', space=sflag, size = 0x8, scoped, tag = 'scoped memory for tpu_custom_call.1']
    #allocation4 [shape = 's32[2]{0}', space=sflag, size = 0x8, scoped, tag = 'scoped memory for tpu_custom_call.1']
    #allocation5 [shape = 'u8[8192]{0}', space=vmem, size = 0x2000, scoped, tag = 'input window, operand 1']
    #allocation6 [shape = 's32[2]{0}', space=sflag, size = 0x8, scoped, tag = 'scoped memory for tpu_custom_call.1']
    #allocation7 [shape = 'u8[16384]{0}', space=vmem, size = 0x4000, scoped, tag = 'input window, operand 2']
    #allocation8 [shape = 'u8[327680]{0}', space=vmem, size = 0x50000, scoped, tag = 'input window, operand 3, single buffered']
    #allocation9 [shape = 's32[1]{0}', space=sflag, size = 0x4, scoped, tag = 'scoped memory for tpu_custom_call.1']
    #allocation10 [shape = 'u8[65536]{0}', space=vmem, size = 0x10000, scoped, tag = 'input window, operand 4, single buffered']
    #allocation11 [shape = 'u8[24576]{0}', space=vmem, size = 0x6000, scoped, tag = 'input window, operand 5, single buffered']
    #allocation12 [shape = 's32[1]{0}', space=sflag, size = 0x4, scoped, tag = 'scoped memory for tpu_custom_call.1']
    #allocation13 [shape = 'u8[8192]{0}', space=vmem, size = 0x2000, scoped, tag = 'output window, operand 0']
    %11 = vsyncpa [#allocation3], 0
    %12 = vsyncpa [#allocation6], 0
    %s13 = scalar_lea.sflag [#allocation6], 1
    %14 = vsyncpa %s13, 0
    %15 = vsyncpa [#allocation9], 0
    %16 = vsyncpa [#allocation12], 0
    %17 = vsyncpa [#allocation4], 0
    %s18 = scalar_lea.sflag [#allocation4], 1
    %19 = vsyncpa %s18, 0
    loop: start=0, step=1, limit=4
    $region2: #{tpu_custom_call.1} parent=1 // loop_pre_header
      _
    $region3: #{tpu_custom_call.1} parent=1 // loop_header
      %s21 = sphi 0, %s25
      %p22 = scmp.ge.s32.totalorder %s21, 4
      %s29 = sphi 0, %s29
      %s31 = sphi 0, %s29
      %s32 = sphi 0, %s31
      %s46 = sphi 0, %s32
      %s52 = sphi 0, %s54
      %s55 = sphi 0, %s52
      %s56 = sphi 0, %s55
      %s72 = sphi 0, %s56
      %s78 = sphi 0, %s80
      %s81 = sphi 0, %s78
      %s82 = sphi 0, %s81
      %s98 = sphi 0, %s82
      %s102 = sphi 0, %s102
      %s104 = sphi 0, %s102
      %s105 = sphi 0, %s104
      %s119 = sphi 0, %s105
      %s123 = sphi 0, %s123
      %s125 = sphi 0, %s123
      %s126 = sphi 0, %s125
      %s140 = sphi 0, %s126
      %s144 = sphi 0, %s144
      %s146 = sphi 0, %s144
      %s147 = sphi 0, %s146
      %s161 = sphi 0, %s147
      %s167 = sphi 0, %s169
      %s170 = sphi 0, %s167
      %s171 = sphi 0, %s170
      %s187 = sphi 0, %s171
    $region4: #{tpu_custom_call.1} parent=1 // loop_header_branch
      %24 = sbr.rel (%p22) target = $region8
    $region5: #{tpu_custom_call.1} parent=1 // loop_body
      %s26 = ssub.s32 %s21, 1
      %s27 = ssub.s32 %s21, 2
      %s28 = sadd.s32 %s21, 1
      %s30 = sadd.s32 %s29, 1
      %p33 = scmp.eq.s32.totalorder %s21, 1
      %p34 = scmp.ne.s32.totalorder %s29, %s31
      %p35 = scmp.eq.s32.totalorder %s21, 0
      %p36 = por %p34, %p35
      %p37 = scmp.ne.s32.totalorder %s29, %s31
      %p38 = scmp.eq.s32.totalorder %s26, 1
      %p39 = por %p37, %p38
      %p40 = scmp.ne.s32.totalorder %s31, %s32
      %p41 = scmp.eq.s32.totalorder %s26, 0
      %p42 = por %p40, %p41
      %p43 = scmp.ne.s32.totalorder %s31, %s32
      %p44 = scmp.eq.s32.totalorder %s27, 1
      %p45 = por %p43, %p44
      %p47 = scmp.ne.s32.totalorder %s32, %s46
      %p48 = scmp.eq.s32.totalorder %s27, 0
      %p49 = por %p47, %p48
      %s50 = ssub.s32 %s21, %s28
      %p51 = scmp.eq.s32.totalorder %s50, 0
      %s53 = sadd.s32 %s52, 1
      %s54 = scalar_select %p51, %s52, %s53
      %p57 = pneg %p51
      %p58 = scmp.eq.s32.totalorder %s21, 1
      %p59 = por %p57, %p58
      %p60 = scmp.ne.s32.totalorder %s52, %s55
      %p61 = scmp.eq.s32.totalorder %s21, 0
      %p62 = por %p60, %p61
      %p63 = scmp.ne.s32.totalorder %s52, %s55
      %p64 = scmp.eq.s32.totalorder %s26, 1
      %p65 = por %p63, %p64
      %p66 = scmp.ne.s32.totalorder %s55, %s56
      %p67 = scmp.eq.s32.totalorder %s26, 0
      %p68 = por %p66, %p67
      %p69 = scmp.ne.s32.totalorder %s55, %s56
      %p70 = scmp.eq.s32.totalorder %s27, 1
      %p71 = por %p69, %p70
      %p73 = scmp.ne.s32.totalorder %s56, %s72
      %p74 = scmp.eq.s32.totalorder %s27, 0
      %p75 = por %p73, %p74
      %s76 = ssub.s32 %s21, %s28
      %p77 = scmp.eq.s32.totalorder %s76, 0
      %s79 = sadd.s32 %s78, 1
      %s80 = scalar_select %p77, %s78, %s79
      %p83 = pneg %p77
      %p84 = scmp.eq.s32.totalorder %s21, 1
      %p85 = por %p83, %p84
      %p86 = scmp.ne.s32.totalorder %s78, %s81
      %p87 = scmp.eq.s32.totalorder %s21, 0
      %p88 = por %p86, %p87
      %p89 = scmp.ne.s32.totalorder %s78, %s81
      %p90 = scmp.eq.s32.totalorder %s26, 1
      %p91 = por %p89, %p90
      %p92 = scmp.ne.s32.totalorder %s81, %s82
      %p93 = scmp.eq.s32.totalorder %s26, 0
      %p94 = por %p92, %p93
      %p95 = scmp.ne.s32.totalorder %s81, %s82
      %p96 = scmp.eq.s32.totalorder %s27, 1
      %p97 = por %p95, %p96
      %p99 = scmp.ne.s32.totalorder %s82, %s98
      %p100 = scmp.eq.s32.totalorder %s27, 0
      %p101 = por %p99, %p100
      %s103 = sadd.s32 %s102, 1
      %p106 = scmp.eq.s32.totalorder %s21, 1
      %p107 = scmp.ne.s32.totalorder %s102, %s104
      %p108 = scmp.eq.s32.totalorder %s21, 0
      %p109 = por %p107, %p108
      %p110 = scmp.ne.s32.totalorder %s102, %s104
      %p111 = scmp.eq.s32.totalorder %s26, 1
      %p112 = por %p110, %p111
      %p113 = scmp.ne.s32.totalorder %s104, %s105
      %p114 = scmp.eq.s32.totalorder %s26, 0
      %p115 = por %p113, %p114
      %p116 = scmp.ne.s32.totalorder %s104, %s105
      %p117 = scmp.eq.s32.totalorder %s27, 1
      %p118 = por %p116, %p117
      %p120 = scmp.ne.s32.totalorder %s105, %s119
      %p121 = scmp.eq.s32.totalorder %s27, 0
      %p122 = por %p120, %p121
      %s124 = sadd.s32 %s123, 1
      %p127 = scmp.eq.s32.totalorder %s21, 1
      %p128 = scmp.ne.s32.totalorder %s123, %s125
      %p129 = scmp.eq.s32.totalorder %s21, 0
      %p130 = por %p128, %p129
      %p131 = scmp.ne.s32.totalorder %s123, %s125
      %p132 = scmp.eq.s32.totalorder %s26, 1
      %p133 = por %p131, %p132
      %p134 = scmp.ne.s32.totalorder %s125, %s126
      %p135 = scmp.eq.s32.totalorder %s26, 0
      %p136 = por %p134, %p135
      %p137 = scmp.ne.s32.totalorder %s125, %s126
      %p138 = scmp.eq.s32.totalorder %s27, 1
      %p139 = por %p137, %p138
      %p141 = scmp.ne.s32.totalorder %s126, %s140
      %p142 = scmp.eq.s32.totalorder %s27, 0
      %p143 = por %p141, %p142
      %s145 = sadd.s32 %s144, 1
      %p148 = scmp.eq.s32.totalorder %s21, 1
      %p149 = scmp.ne.s32.totalorder %s144, %s146
      %p150 = scmp.eq.s32.totalorder %s21, 0
      %p151 = por %p149, %p150
      %p152 = scmp.ne.s32.totalorder %s144, %s146
      %p153 = scmp.eq.s32.totalorder %s26, 1
      %p154 = por %p152, %p153
      %p155 = scmp.ne.s32.totalorder %s146, %s147
      %p156 = scmp.eq.s32.totalorder %s26, 0
      %p157 = por %p155, %p156
      %p158 = scmp.ne.s32.totalorder %s146, %s147
      %p159 = scmp.eq.s32.totalorder %s27, 1
      %p160 = por %p158, %p159
      %p162 = scmp.ne.s32.totalorder %s147, %s161
      %p163 = scmp.eq.s32.totalorder %s27, 0
      %p164 = por %p162, %p163
      %s165 = ssub.s32 %s21, %s28
      %p166 = scmp.eq.s32.totalorder %s165, 0
      %s168 = sadd.s32 %s167, 1
      %s169 = scalar_select %p166, %s167, %s168
      %p172 = pneg %p166
      %p173 = scmp.eq.s32.totalorder %s21, 1
      %p174 = por %p172, %p173
      %p175 = scmp.ne.s32.totalorder %s167, %s170
      %p176 = scmp.eq.s32.totalorder %s21, 0
      %p177 = por %p175, %p176
      %p178 = scmp.ne.s32.totalorder %s167, %s170
      %p179 = scmp.eq.s32.totalorder %s26, 1
      %p180 = por %p178, %p179
      %p181 = scmp.ne.s32.totalorder %s170, %s171
      %p182 = scmp.eq.s32.totalorder %s26, 0
      %p183 = por %p181, %p182
      %p184 = scmp.ne.s32.totalorder %s170, %s171
      %p185 = scmp.eq.s32.totalorder %s27, 1
      %p186 = por %p184, %p185
      %p188 = scmp.ne.s32.totalorder %s171, %s187
      %p189 = scmp.eq.s32.totalorder %s27, 0
      %p190 = por %p188, %p189
      %p191 = scmp.le.s32.totalorder 1, %s21
      %p192 = scmp.lt.s32.totalorder %s21, 3
      %p193 = pnand %p191, %p192
      %p194 = pneg %p193
      // Predicated region
      $region9: #{tpu_custom_call.1} parent=5 // pred_check
        _
      $region10: #{tpu_custom_call.1} parent=5 // pred_check_branch
        %196 = sbr.rel (%p193) target = $region12
      $region11: #{tpu_custom_call.1} parent=5 // pred_region
        %s197 = ssub.s32 %s21, 1
        // Predicated region
        $region13: #{tpu_custom_call.1} parent=11 // pred_check
          %p198 = pneg %p42
        $region14: #{tpu_custom_call.1} parent=11 // pred_check_branch
          %200 = sbr.rel (%p198) target = $region16
        $region15: #{tpu_custom_call.1} parent=11 // pred_region
          %s202 = ssub.s32 128, 128
          %203 = vsyncadd [#allocation3], %s202
          %s205 = sshll.u32 [#allocation2], 4
          %s206 = int_to_ptr.vmem [resolvable:$true] %s205
          %208 = dma.hbm_to_vmem [thread:$0]  %s0, 128, %s206, [#allocation3]
        $region16: #{tpu_custom_call.1} parent=11 // pred_fallthru
          _
        // Predicated region
        $region17: #{tpu_custom_call.1} parent=11 // pred_check
          %p209 = pneg %p115
        $region18: #{tpu_custom_call.1} parent=11 // pred_check_branch
          %211 = sbr.rel (%p209) target = $region20
        $region19: #{tpu_custom_call.1} parent=11 // pred_region
          %s213 = ssub.s32 10240, 10240
          %214 = vsyncadd [#allocation9], %s213
          %s215 = sshll.u32 [#allocation8], 4
          %s216 = int_to_ptr.vmem [resolvable:$true] %s215
          %221 = dma.hbm_to_vmem [thread:$0]  %s3, 10240, %s216, [#allocation9], 640, 640, 40
        $region20: #{tpu_custom_call.1} parent=11 // pred_fallthru
          _
        // Predicated region
        $region21: #{tpu_custom_call.1} parent=11 // pred_check
          %p222 = pneg %p136
        $region22: #{tpu_custom_call.1} parent=11 // pred_check_branch
          %224 = sbr.rel (%p222) target = $region24
        $region23: #{tpu_custom_call.1} parent=11 // pred_region
          %s226 = ssub.s32 2048, 2048
          %227 = vsyncadd [#allocation9], %s226
          %s228 = sshll.u32 [#allocation10], 4
          %s229 = int_to_ptr.vmem [resolvable:$true] %s228
          %234 = dma.hbm_to_vmem [thread:$0]  %s4, 2048, %s229, [#allocation9], 64, 64, 4
        $region24: #{tpu_custom_call.1} parent=11 // pred_fallthru
          _
        // Predicated region
        $region25: #{tpu_custom_call.1} parent=11 // pred_check
          %p235 = pneg %p157
        $region26: #{tpu_custom_call.1} parent=11 // pred_check_branch
          %237 = sbr.rel (%p235) target = $region28
        $region27: #{tpu_custom_call.1} parent=11 // pred_region
          %s239 = ssub.s32 768, 768
          %240 = vsyncadd [#allocation12], %s239
          %s241 = sshll.u32 [#allocation11], 4
          %s242 = int_to_ptr.vmem [resolvable:$true] %s241
          %247 = dma.hbm_to_vmem [thread:$0]  %s5, 768, %s242, [#allocation12], 384, 384, 24
        $region28: #{tpu_custom_call.1} parent=11 // pred_fallthru
          _
      $region12: #{tpu_custom_call.1} parent=5 // pred_fallthru
        _
      %p248 = scmp.lt.s32.totalorder %s21, 2
      // Predicated region
      $region29: #{tpu_custom_call.1} parent=5 // pred_check
        %p249 = pneg %p248
      $region30: #{tpu_custom_call.1} parent=5 // pred_check_branch
        %251 = sbr.rel (%p249) target = $region32
      $region31: #{tpu_custom_call.1} parent=5 // pred_region
        // Predicated region
        $region33: #{tpu_custom_call.1} parent=31 // pred_check
          %p252 = pneg %p62
        $region34: #{tpu_custom_call.1} parent=31 // pred_check_branch
          %254 = sbr.rel (%p252) target = $region36
        $region35: #{tpu_custom_call.1} parent=31 // pred_region
          %s255 = sand.u32 %s21, 1
          %s256 = scalar_lea.sflag [#allocation6], %s255
          %s257 = sand.u32 %s52, 1
          %s258 = smul.addr %s257, 8
          %s259 = scalar_lea.vmem [#allocation5], %s258
          %s261 = ssub.s32 128, 128
          %262 = vsyncadd %s256, %s261
          %s263 = smul.addr %s21, 128
          %s264 = scalar_lea.hbm %s1, %s263
          %s266 = sshll.u32 %s259, 4
          %s267 = int_to_ptr.vmem [resolvable:$true] %s266
          %269 = dma.hbm_to_vmem [thread:$0]  %s264, 128, %s267, %s256
        $region36: #{tpu_custom_call.1} parent=31 // pred_fallthru
          _
        // Predicated region
        $region37: #{tpu_custom_call.1} parent=31 // pred_check
          %p270 = pneg %p88
        $region38: #{tpu_custom_call.1} parent=31 // pred_check_branch
          %272 = sbr.rel (%p270) target = $region40
        $region39: #{tpu_custom_call.1} parent=31 // pred_region
          %s273 = sand.u32 %s21, 1
          %s274 = scalar_lea.sflag [#allocation6], %s273
          %s275 = sand.u32 %s78, 1
          %s276 = smul.addr %s275, 16
          %s277 = scalar_lea.vmem [#allocation7], %s276
          %s279 = ssub.s32 256, 256
          %280 = vsyncadd %s274, %s279
          %s281 = smul.addr %s21, 2
          %s282 = smul.addr %s281, 128
          %s283 = scalar_lea.hbm %s2, %s282
          %s284 = sshll.u32 %s277, 4
          %s285 = int_to_ptr.vmem [resolvable:$true] %s284
          %290 = dma.hbm_to_vmem [thread:$0]  %s283, 256, %s285, %s274, 128, 128, 8
        $region40: #{tpu_custom_call.1} parent=31 // pred_fallthru
          _
      $region32: #{tpu_custom_call.1} parent=5 // pred_fallthru
        _
      %p291 = scmp.le.s32.totalorder 1, %s21
      %p292 = scmp.lt.s32.totalorder %s21, 3
      %p293 = pnand %p291, %p292
      %p294 = pneg %p293
      // Predicated region
      $region41: #{tpu_custom_call.1} parent=5 // pred_check
        _
      $region42: #{tpu_custom_call.1} parent=5 // pred_check_branch
        %296 = sbr.rel (%p293) target = $region44
      $region43: #{tpu_custom_call.1} parent=5 // pred_region
        %s297 = ssub.s32 %s21, 1
        // Predicated region
        $region45: #{tpu_custom_call.1} parent=43 // pred_check
          %p298 = pneg %p42
        $region46: #{tpu_custom_call.1} parent=43 // pred_check_branch
          %300 = sbr.rel (%p298) target = $region48
        $region47: #{tpu_custom_call.1} parent=43 // pred_region
          %301 = dma.done [#allocation3], 128
        $region48: #{tpu_custom_call.1} parent=43 // pred_fallthru
          _
        %s302 = sand.u32 %s26, 1
        %s303 = scalar_lea.sflag [#allocation6], %s302
        %s304 = sand.u32 %s55, 1
        %s305 = smul.addr %s304, 8
        %s306 = scalar_lea.vmem [#allocation5], %s305
        // Predicated region
        $region49: #{tpu_custom_call.1} parent=43 // pred_check
          %p307 = pneg %p68
        $region50: #{tpu_custom_call.1} parent=43 // pred_check_branch
          %309 = sbr.rel (%p307) target = $region52
        $region51: #{tpu_custom_call.1} parent=43 // pred_region
          %310 = dma.done %s303, 128
        $region52: #{tpu_custom_call.1} parent=43 // pred_fallthru
          _
        %s311 = sand.u32 %s26, 1
        %s312 = scalar_lea.sflag [#allocation6], %s311
        %s313 = sand.u32 %s81, 1
        %s314 = smul.addr %s313, 16
        %s315 = scalar_lea.vmem [#allocation7], %s314
        // Predicated region
        $region53: #{tpu_custom_call.1} parent=43 // pred_check
          %p316 = pneg %p94
        $region54: #{tpu_custom_call.1} parent=43 // pred_check_branch
          %318 = sbr.rel (%p316) target = $region56
        $region55: #{tpu_custom_call.1} parent=43 // pred_region
          %319 = dma.done %s312, 256
        $region56: #{tpu_custom_call.1} parent=43 // pred_fallthru
          _
        // Predicated region
        $region57: #{tpu_custom_call.1} parent=43 // pred_check
          %p320 = pneg %p115
        $region58: #{tpu_custom_call.1} parent=43 // pred_check_branch
          %322 = sbr.rel (%p320) target = $region60
        $region59: #{tpu_custom_call.1} parent=43 // pred_region
          %323 = dma.done [#allocation9], 10240
        $region60: #{tpu_custom_call.1} parent=43 // pred_fallthru
          _
        // Predicated region
        $region61: #{tpu_custom_call.1} parent=43 // pred_check
          %p324 = pneg %p136
        $region62: #{tpu_custom_call.1} parent=43 // pred_check_branch
          %326 = sbr.rel (%p324) target = $region64
        $region63: #{tpu_custom_call.1} parent=43 // pred_region
          %327 = dma.done [#allocation9], 2048
        $region64: #{tpu_custom_call.1} parent=43 // pred_fallthru
          _
        // Predicated region
        $region65: #{tpu_custom_call.1} parent=43 // pred_check
          %p328 = pneg %p157
        $region66: #{tpu_custom_call.1} parent=43 // pred_check_branch
          %330 = sbr.rel (%p328) target = $region68
        $region67: #{tpu_custom_call.1} parent=43 // pred_region
          %331 = dma.done [#allocation12], 768
        $region68: #{tpu_custom_call.1} parent=43 // pred_fallthru
          _
        %p332 = pneg %p42
        %p333 = pneg %p39
        %s334 = sand.u32 %s26, 1
        %s335 = scalar_lea.sflag [#allocation6], %s334
        %s336 = sand.u32 %s55, 1
        %s337 = smul.addr %s336, 8
        %s338 = scalar_lea.vmem [#allocation5], %s337
        %p339 = pneg %p68
        %p340 = pneg %p65
        %s341 = sand.u32 %s26, 1
        %s342 = scalar_lea.sflag [#allocation6], %s341
        %s343 = sand.u32 %s81, 1
        %s344 = smul.addr %s343, 16
        %s345 = scalar_lea.vmem [#allocation7], %s344
        %p346 = pneg %p94
        %p347 = pneg %p91
        %p348 = pneg %p115
        %p349 = pneg %p112
        %p350 = pneg %p136
        %p351 = pneg %p133
        %p352 = pneg %p157
        %p353 = pneg %p154
        %p354 = pneg %p183
        %p355 = pneg %p180
        %s356 = sand.u32 %s170, 1
        %s357 = scalar_lea.sflag [#allocation4], %s356
        %s358 = sand.u32 %s170, 1
        %s359 = smul.addr %s358, 8
        %s360 = scalar_lea.vmem [#allocation13], %s359
        %v362 = vld [vmem:[#allocation2] sm:$0xff]
        %v363 = vld [vmem:[%s315] sm:$0xff]
        %v364 = vld [vmem:[%s315 + $0x8] sm:$0xff]
        %v365 = vld [vmem:[#allocation8 + $0x14] sm:$0xff]
        %v366 = vld [vmem:[#allocation8 + $0x3c] sm:$0xff]
        %v367 = vld [vmem:[#allocation8 + $0x64] sm:$0xff]
        %v368 = vld [vmem:[#allocation8 + $0x8c] sm:$0xff]
        %v369 = vld [vmem:[#allocation8 + $0xb4] sm:$0xff]
        %v370 = vld [vmem:[#allocation8 + $0xdc] sm:$0xff]
        %v371 = vld [vmem:[#allocation8 + $0x104] sm:$0xff]
        %v372 = vld [vmem:[#allocation8 + $0x12c] sm:$0xff]
        %v373 = vld [vmem:[#allocation8 + $0x154] sm:$0xff]
        %v374 = vld [vmem:[#allocation8 + $0x17c] sm:$0xff]
        %v375 = vld [vmem:[#allocation8 + $0x1a4] sm:$0xff]
        %v376 = vld [vmem:[#allocation8 + $0x1cc] sm:$0xff]
        %v377 = vld [vmem:[#allocation8 + $0x1f4] sm:$0xff]
        %v378 = vld [vmem:[#allocation8 + $0x21c] sm:$0xff]
        %v379 = vld [vmem:[#allocation8 + $0x244] sm:$0xff]
        %v380 = vld [vmem:[#allocation8 + $0x26c] sm:$0xff]
        %s381 = scalar_lea.vmem [#allocation11], 5
        %v382 = vld [vmem:[%s381] ss:$8 sm:$0x3]
        %v383 = vpack.c.bf16 %v364, %v363
        %v385 = vlaneseq
        %v386 = vshrl.u32 %v385, 7
        %v387 = vsub.s32 0, %v386
        %v388 = vrot.slane %v382, %v387
        %v389 = vlaneseq
        %v390 = vshrl.u32 %v389, 7
        %v391 = vsub.s32 1, %v390
        %v392 = vrot.slane %v382, %v391
        %v411 = vunpack.c.l.b16 %v365
        %v412 = vunpack.c.h.b16 %v365
        %v413 = vunpack.c.l.b16 %v366
        %v414 = vunpack.c.h.b16 %v366
        %v415 = vunpack.c.l.b16 %v367
        %v416 = vunpack.c.h.b16 %v367
        %v417 = vunpack.c.l.b16 %v368
        %v418 = vunpack.c.h.b16 %v368
        %v419 = vunpack.c.l.b16 %v369
        %v420 = vunpack.c.h.b16 %v369
        %v421 = vunpack.c.l.b16 %v370
        %v422 = vunpack.c.h.b16 %v370
        %v423 = vunpack.c.l.b16 %v371
        %v424 = vunpack.c.h.b16 %v371
        %v425 = vunpack.c.l.b16 %v372
        %v426 = vunpack.c.h.b16 %v372
        %v427 = vunpack.c.l.b16 %v373
        %v428 = vunpack.c.h.b16 %v373
        %v429 = vunpack.c.l.b16 %v374
        %v430 = vunpack.c.h.b16 %v374
        %v431 = vunpack.c.l.b16 %v375
        %v432 = vunpack.c.h.b16 %v375
        %v433 = vunpack.c.l.b16 %v376
        %v434 = vunpack.c.h.b16 %v376
        %v435 = vunpack.c.l.b16 %v377
        %v436 = vunpack.c.h.b16 %v377
        %v437 = vunpack.c.l.b16 %v378
        %v438 = vunpack.c.h.b16 %v378
        %v439 = vunpack.c.l.b16 %v379
        %v440 = vunpack.c.h.b16 %v379
        %v441 = vunpack.c.l.b16 %v380
        %v442 = vunpack.c.h.b16 %v380
        %v443 = vpack.c.b16 %v413, %v411
        %v444 = vpack.c.b16 %v414, %v412
        %v445 = vpack.c.b16 %v417, %v415
        %v446 = vpack.c.b16 %v418, %v416
        %v447 = vpack.c.b16 %v421, %v419
        %v448 = vpack.c.b16 %v422, %v420
        %v449 = vpack.c.b16 %v425, %v423
        %v450 = vpack.c.b16 %v426, %v424
        %v451 = vpack.c.b16 %v429, %v427
        %v452 = vpack.c.b16 %v430, %v428
        %v453 = vpack.c.b16 %v433, %v431
        %v454 = vpack.c.b16 %v434, %v432
        %v455 = vpack.c.b16 %v437, %v435
        %v456 = vpack.c.b16 %v438, %v436
        %v457 = vpack.c.b16 %v441, %v439
        %v458 = vpack.c.b16 %v442, %v440
        %475 = vmatprep.subr.bf16.mxu0 %v444
        %476 = vmatpush1.bf16.msra.mxu0 %v443
        %477 = vmatprep.subr.bf16.mxu0 %v446
        %478 = vmatpush1.bf16.msra.mxu0 %v445
        %479 = vmatprep.subr.bf16.mxu0 %v448
        %480 = vmatpush1.bf16.msra.mxu0 %v447
        %481 = vmatprep.subr.bf16.mxu0 %v450
        %482 = vmatpush1.bf16.msra.mxu0 %v449
        %483 = vmatprep.subr.bf16.mxu0 %v452
        %484 = vmatpush1.bf16.msra.mxu0 %v451
        %485 = vmatprep.subr.bf16.mxu0 %v454
        %486 = vmatpush1.bf16.msra.mxu0 %v453
        %487 = vmatprep.subr.bf16.mxu0 %v456
        %488 = vmatpush1.bf16.msra.mxu0 %v455
        %489 = vmatprep.subr.bf16.mxu0 %v458
        %490 = vmatpush1.bf16.msra.mxu0 %v457
        %491 = vmatprep.subr.bf16.mxu0 0
        %492 = vmatpush1.bf16.msra.mxu0 0
        %493 = vmatprep.subr.bf16.mxu0 0
        %494 = vmatpush1.bf16.msra.mxu0 0
        %495 = vmatprep.subr.bf16.mxu0 0
        %496 = vmatpush1.bf16.msra.mxu0 0
        %497 = vmatprep.subr.bf16.mxu0 0
        %498 = vmatpush1.bf16.msra.mxu0 0
        %499 = vmatprep.subr.bf16.mxu0 0
        %500 = vmatpush1.bf16.msra.mxu0 0
        %501 = vmatprep.subr.bf16.mxu0 0
        %502 = vmatpush1.bf16.msra.mxu0 0
        %503 = vmatprep.subr.bf16.mxu0 0
        %504 = vmatpush1.bf16.msra.mxu0 0
        %505 = vmatprep.subr.bf16.mxu0 0
        %506 = vmatpush1.bf16.msra.mxu0 0
        %507 = vmatprep.mubr.bf16.mxu0 0
        %508 = vmatmul.mubr.bf16.gmra.mrb[0].mxu0 %v383
        %v509 = vpop.f32.mrb[0].mxu0
        %v510 = vadd.f32 %v388, %v509
        %v511 = vpop.f32.mrb[0].mxu0
        %v512 = vadd.f32 %v392, %v511
        %v513 = vpop.f32.mrb[0].mxu0
        %v514 = vadd.f32 %v388, %v513
        %v515 = vpop.f32.mrb[0].mxu0
        %v516 = vadd.f32 %v392, %v515
        %517 = vdwg.mxu0
        %v518 = vpack.c.bf16 %v514, %v510
        %520 = vrot.lane.b32.xlu0 %v518, 96
        %v521 = vpop.permute.xlu0 %520
        %522 = vrot.lane.b32.xlu0 %v518, 64
        %v523 = vpop.permute.xlu0 %522
        %524 = vrot.lane.b32.xlu0 %v518, 32
        %v525 = vpop.permute.xlu0 %524
        %v526 = vpack.c.bf16 %v516, %v512
        %528 = vrot.lane.b32.xlu0 %v526, 96
        %v529 = vpop.permute.xlu0 %528
        %531 = vrot.lane.b32.xlu0 %v526, 64
        %v532 = vpop.permute.xlu0 %531
        %534 = vrot.lane.b32.xlu0 %v526, 32
        %v535 = vpop.permute.xlu0 %534
        %v537 = vld [vmem:[%s306] sm:$0xff]
        %v538 = vld [vmem:[#allocation8] sm:$0xff]
        %v539 = vld [vmem:[#allocation8 + $0x8] sm:$0xf]
        %v540 = vld [vmem:[#allocation8 + $0x28] sm:$0xff]
        %v541 = vld [vmem:[#allocation8 + $0x30] sm:$0xf]
        %v542 = vld [vmem:[#allocation8 + $0x50] sm:$0xff]
        %v543 = vld [vmem:[#allocation8 + $0x58] sm:$0xf]
        %v544 = vld [vmem:[#allocation8 + $0x78] sm:$0xff]
        %v545 = vld [vmem:[#allocation8 + $0x80] sm:$0xf]
        %v546 = vld [vmem:[#allocation8 + $0xa0] sm:$0xff]
        %v547 = vld [vmem:[#allocation8 + $0xa8] sm:$0xf]
        %v548 = vld [vmem:[#allocation8 + $0xc8] sm:$0xff]
        %v549 = vld [vmem:[#allocation8 + $0xd0] sm:$0xf]
        %v550 = vld [vmem:[#allocation8 + $0xf0] sm:$0xff]
        %v551 = vld [vmem:[#allocation8 + $0xf8] sm:$0xf]
        %v552 = vld [vmem:[#allocation8 + $0x118] sm:$0xff]
        %v553 = vld [vmem:[#allocation8 + $0x120] sm:$0xf]
        %v554 = vld [vmem:[#allocation8 + $0x140] sm:$0xff]
        %v555 = vld [vmem:[#allocation8 + $0x148] sm:$0xf]
        %v556 = vld [vmem:[#allocation8 + $0x168] sm:$0xff]
        %v557 = vld [vmem:[#allocation8 + $0x170] sm:$0xf]
        %v558 = vld [vmem:[#allocation8 + $0x190] sm:$0xff]
        %v559 = vld [vmem:[#allocation8 + $0x198] sm:$0xf]
        %v560 = vld [vmem:[#allocation8 + $0x1b8] sm:$0xff]
        %v561 = vld [vmem:[#allocation8 + $0x1c0] sm:$0xf]
        %v562 = vld [vmem:[#allocation8 + $0x1e0] sm:$0xff]
        %v563 = vld [vmem:[#allocation8 + $0x1e8] sm:$0xf]
        %v564 = vld [vmem:[#allocation8 + $0x208] sm:$0xff]
        %v565 = vld [vmem:[#allocation8 + $0x210] sm:$0xf]
        %v566 = vld [vmem:[#allocation8 + $0x230] sm:$0xff]
        %v567 = vld [vmem:[#allocation8 + $0x238] sm:$0xf]
        %v568 = vld [vmem:[#allocation8 + $0x258] sm:$0xff]
        %v569 = vld [vmem:[#allocation8 + $0x260] sm:$0xf]
        %v570 = vld [vmem:[#allocation11] ss:$8 sm:$0x7]
        %v571 = vpack.c.bf16 %v537, %v537
        %v573 = vlaneseq
        %v574 = vshrl.u32 %v573, 7
        %v575 = vsub.s32 0, %v574
        %v576 = vrot.slane %v570, %v575
        %v577 = vlaneseq
        %v578 = vshrl.u32 %v577, 7
        %v579 = vsub.s32 1, %v578
        %v580 = vrot.slane %v570, %v579
        %v581 = vlaneseq
        %v582 = vshrl.u32 %v581, 7
        %v583 = vsub.s32 2, %v582
        %v584 = vrot.slane %v570, %v583
        %v620 = vunpack.c.l.b16 %v538
        %v621 = vunpack.c.h.b16 %v538
        %v622 = vunpack.c.l.b16 %v539
        %v623 = vunpack.c.l.b16 %v540
        %v624 = vunpack.c.h.b16 %v540
        %v625 = vunpack.c.l.b16 %v541
        %v626 = vunpack.c.l.b16 %v542
        %v627 = vunpack.c.h.b16 %v542
        %v628 = vunpack.c.l.b16 %v543
        %v629 = vunpack.c.l.b16 %v544
        %v630 = vunpack.c.h.b16 %v544
        %v631 = vunpack.c.l.b16 %v545
        %v632 = vunpack.c.l.b16 %v546
        %v633 = vunpack.c.h.b16 %v546
        %v634 = vunpack.c.l.b16 %v547
        %v635 = vunpack.c.l.b16 %v548
        %v636 = vunpack.c.h.b16 %v548
        %v637 = vunpack.c.l.b16 %v549
        %v638 = vunpack.c.l.b16 %v550
        %v639 = vunpack.c.h.b16 %v550
        %v640 = vunpack.c.l.b16 %v551
        %v641 = vunpack.c.l.b16 %v552
        %v642 = vunpack.c.h.b16 %v552
        %v643 = vunpack.c.l.b16 %v553
        %v644 = vunpack.c.l.b16 %v554
        %v645 = vunpack.c.h.b16 %v554
        %v646 = vunpack.c.l.b16 %v555
        %v647 = vunpack.c.l.b16 %v556
        %v648 = vunpack.c.h.b16 %v556
        %v649 = vunpack.c.l.b16 %v557
        %v650 = vunpack.c.l.b16 %v558
        %v651 = vunpack.c.h.b16 %v558
        %v652 = vunpack.c.l.b16 %v559
        %v653 = vunpack.c.l.b16 %v560
        %v654 = vunpack.c.h.b16 %v560
        %v655 = vunpack.c.l.b16 %v561
        %v656 = vunpack.c.l.b16 %v562
        %v657 = vunpack.c.h.b16 %v562
        %v658 = vunpack.c.l.b16 %v563
        %v659 = vunpack.c.l.b16 %v564
        %v660 = vunpack.c.h.b16 %v564
        %v661 = vunpack.c.l.b16 %v565
        %v662 = vunpack.c.l.b16 %v566
        %v663 = vunpack.c.h.b16 %v566
        %v664 = vunpack.c.l.b16 %v567
        %v665 = vunpack.c.l.b16 %v568
        %v666 = vunpack.c.h.b16 %v568
        %v667 = vunpack.c.l.b16 %v569
        %v668 = vpack.c.b16 %v623, %v620
        %v669 = vpack.c.b16 %v624, %v621
        %v670 = vpack.c.b16 %v625, %v622
        %v671 = vpack.c.b16 %v629, %v626
        %v672 = vpack.c.b16 %v630, %v627
        %v673 = vpack.c.b16 %v631, %v628
        %v674 = vpack.c.b16 %v635, %v632
        %v675 = vpack.c.b16 %v636, %v633
        %v676 = vpack.c.b16 %v637, %v634
        %v677 = vpack.c.b16 %v641, %v638
        %v678 = vpack.c.b16 %v642, %v639
        %v679 = vpack.c.b16 %v643, %v640
        %v680 = vpack.c.b16 %v647, %v644
        %v681 = vpack.c.b16 %v648, %v645
        %v682 = vpack.c.b16 %v649, %v646
        %v683 = vpack.c.b16 %v653, %v650
        %v684 = vpack.c.b16 %v654, %v651
        %v685 = vpack.c.b16 %v655, %v652
        %v686 = vpack.c.b16 %v659, %v656
        %v687 = vpack.c.b16 %v660, %v657
        %v688 = vpack.c.b16 %v661, %v658
        %v689 = vpack.c.b16 %v665, %v662
        %v690 = vpack.c.b16 %v666, %v663
        %v691 = vpack.c.b16 %v667, %v664
        %716 = vmatprep.subr.bf16.mxu0 %v669
        %717 = vmatpush1.bf16.msra.mxu0 %v668
        %718 = vmatprep.subr.bf16.mxu0 %v672
        %719 = vmatpush1.bf16.msra.mxu0 %v671
        %720 = vmatprep.subr.bf16.mxu0 %v675
        %721 = vmatpush1.bf16.msra.mxu0 %v674
        %722 = vmatprep.subr.bf16.mxu0 %v678
        %723 = vmatpush1.bf16.msra.mxu0 %v677
        %724 = vmatprep.subr.bf16.mxu0 %v681
        %725 = vmatpush1.bf16.msra.mxu0 %v680
        %726 = vmatprep.subr.bf16.mxu0 %v684
        %727 = vmatpush1.bf16.msra.mxu0 %v683
        %728 = vmatprep.subr.bf16.mxu0 %v687
        %729 = vmatpush1.bf16.msra.mxu0 %v686
        %730 = vmatprep.subr.bf16.mxu0 %v690
        %731 = vmatpush1.bf16.msra.mxu0 %v689
        %732 = vmatprep.subr.bf16.mxu0 0
        %733 = vmatpush1.bf16.msra.mxu0 0
        %734 = vmatprep.subr.bf16.mxu0 0
        %735 = vmatpush1.bf16.msra.mxu0 0
        %736 = vmatprep.subr.bf16.mxu0 0
        %737 = vmatpush1.bf16.msra.mxu0 0
        %738 = vmatprep.subr.bf16.mxu0 0
        %739 = vmatpush1.bf16.msra.mxu0 0
        %740 = vmatprep.subr.bf16.mxu0 0
        %741 = vmatpush1.bf16.msra.mxu0 0
        %742 = vmatprep.subr.bf16.mxu0 0
        %743 = vmatpush1.bf16.msra.mxu0 0
        %744 = vmatprep.subr.bf16.mxu0 0
        %745 = vmatpush1.bf16.msra.mxu0 0
        %746 = vmatprep.subr.bf16.mxu0 0
        %747 = vmatpush1.bf16.msra.mxu0 0
        %748 = vmatprep.mubr.bf16.mxu0 0
        %749 = vmatmul.mubr.bf16.gmra.mrb[0].mxu0 %v571
        %v750 = vpop.f32.mrb[0].mxu0
        %v751 = vadd.f32 %v576, %v750
        %v752 = vpop.f32.mrb[0].mxu0
        %v753 = vadd.f32 %v580, %v752
        %v754 = vpop.f32.mrb[0].mxu0
        %v755 = vpop.f32.mrb[0].mxu0
        %756 = vdwg.mxu0
        %757 = vmatprep.subr.bf16.mxu0 0
        %758 = vmatpush1.bf16.msra.mxu0 %v670
        %759 = vmatprep.subr.bf16.mxu0 0
        %760 = vmatpush1.bf16.msra.mxu0 %v673
        %761 = vmatprep.subr.bf16.mxu0 0
        %762 = vmatpush1.bf16.msra.mxu0 %v676
        %763 = vmatprep.subr.bf16.mxu0 0
        %764 = vmatpush1.bf16.msra.mxu0 %v679
        %765 = vmatprep.subr.bf16.mxu0 0
        %766 = vmatpush1.bf16.msra.mxu0 %v682
        %767 = vmatprep.subr.bf16.mxu0 0
        %768 = vmatpush1.bf16.msra.mxu0 %v685
        %769 = vmatprep.subr.bf16.mxu0 0
        %770 = vmatpush1.bf16.msra.mxu0 %v688
        %771 = vmatprep.subr.bf16.mxu0 0
        %772 = vmatpush1.bf16.msra.mxu0 %v691
        %773 = vmatprep.subr.bf16.mxu0 0
        %774 = vmatpush1.bf16.msra.mxu0 0
        %775 = vmatprep.subr.bf16.mxu0 0
        %776 = vmatpush1.bf16.msra.mxu0 0
        %777 = vmatprep.subr.bf16.mxu0 0
        %778 = vmatpush1.bf16.msra.mxu0 0
        %779 = vmatprep.subr.bf16.mxu0 0
        %780 = vmatpush1.bf16.msra.mxu0 0
        %781 = vmatprep.subr.bf16.mxu0 0
        %782 = vmatpush1.bf16.msra.mxu0 0
        %783 = vmatprep.subr.bf16.mxu0 0
        %784 = vmatpush1.bf16.msra.mxu0 0
        %785 = vmatprep.subr.bf16.mxu0 0
        %786 = vmatpush1.bf16.msra.mxu0 0
        %787 = vmatprep.subr.bf16.mxu0 0
        %788 = vmatpush1.bf16.msra.mxu0 0
        %789 = vmatprep.mubr.bf16.mxu0 0
        %790 = vmatmul.mubr.bf16.gmra.mrb[0].mxu0 %v571
        %v791 = vpop.f32.mrb[0].mxu0
        %v792 = vadd.f32 %v584, %v791
        %v793 = vpop.f32.mrb[0].mxu0
        %v794 = vpop.f32.mrb[0].mxu0
        %v795 = vpop.f32.mrb[0].mxu0
        %796 = vdwg.mxu0
        %v797 = vpack.c.bf16 %v753, %v753
        %799 = vrot.lane.b32.xlu0 %v797, 96
        %v800 = vpop.permute.xlu0 %799
        %801 = vrot.lane.b32.xlu0 %v797, 64
        %v802 = vpop.permute.xlu0 %801
        %803 = vrot.lane.b32.xlu0 %v797, 32
        %v804 = vpop.permute.xlu0 %803
        %v805 = vpack.c.bf16 %v792, %v792
        %807 = vrot.lane.b32.xlu0 %v805, 96
        %v808 = vpop.permute.xlu0 %807
        %809 = vrot.lane.b32.xlu0 %v805, 64
        %v810 = vpop.permute.xlu0 %809
        %811 = vrot.lane.b32.xlu0 %v805, 32
        %v812 = vpop.permute.xlu0 %811
        %v813 = vmul.f32 %v751, 0.17677669
        %v814 = vpack.c.bf16 %v813, %v813
        %816 = vrot.lane.b32.xlu0 %v814, 96
        %v817 = vpop.permute.xlu0 %816
        %818 = vrot.lane.b32.xlu0 %v814, 64
        %v819 = vpop.permute.xlu0 %818
        %820 = vrot.lane.b32.xlu0 %v814, 32
        %v821 = vpop.permute.xlu0 %820
        %vm822 = vcmask 261120
        %v824 = vsel %vm822, %v814, 0
        %v827 = vsel %vm822, %v797, 0
        %829 = vmatprep.subr.bf16.mxu0 0
        %830 = vmatpush1.bf16.xpose.msra.mxu0 %v827
        %831 = vmatprep.subr.bf16.mxu0 0
        %832 = vmatpush1.bf16.xpose.msra.mxu0 0
        %833 = vmatprep.subr.bf16.mxu0 0
        %834 = vmatpush1.bf16.xpose.msra.mxu0 0
        %835 = vmatprep.subr.bf16.mxu0 0
        %836 = vmatpush1.bf16.xpose.msra.mxu0 0
        %837 = vmatprep.subr.bf16.mxu0 0
        %838 = vmatpush1.bf16.xpose.msra.mxu0 0
        %839 = vmatprep.subr.bf16.mxu0 0
        %840 = vmatpush1.bf16.xpose.msra.mxu0 0
        %841 = vmatprep.subr.bf16.mxu0 0
        %842 = vmatpush1.bf16.xpose.msra.mxu0 0
        %843 = vmatprep.subr.bf16.mxu0 0
        %844 = vmatpush1.bf16.xpose.msra.mxu0 0
        %845 = vmatprep.subr.bf16.mxu0 0
        %846 = vmatpush1.bf16.xpose.msra.mxu0 0
        %847 = vmatprep.subr.bf16.mxu0 0
        %848 = vmatpush1.bf16.xpose.msra.mxu0 0
        %849 = vmatprep.subr.bf16.mxu0 0
        %850 = vmatpush1.bf16.xpose.msra.mxu0 0
        %851 = vmatprep.subr.bf16.mxu0 0
        %852 = vmatpush1.bf16.xpose.msra.mxu0 0
        %853 = vmatprep.subr.bf16.mxu0 0
        %854 = vmatpush1.bf16.xpose.msra.mxu0 0
        %855 = vmatprep.subr.bf16.mxu0 0
        %856 = vmatpush1.bf16.xpose.msra.mxu0 0
        %857 = vmatprep.subr.bf16.mxu0 0
        %858 = vmatpush1.bf16.xpose.msra.mxu0 0
        %859 = vmatprep.subr.bf16.mxu0 0
        %860 = vmatpush1.bf16.xpose.msra.mxu0 0
        %861 = vmatprep.mubr.bf16.mxu0 0
        %862 = vmatmul.mubr.bf16.gmra.mrb[0].mxu0 %v824
        %v863 = vpop.f32.mrb[0].mxu0
        %v864 = vadd.f32 %v362, %v863
        %v865 = vpop.f32.mrb[0].mxu0
        %v866 = vpop.f32.mrb[0].mxu0
        %v867 = vpop.f32.mrb[0].mxu0
        %868 = vdwg.mxu0
        %v870 = vsel %vm822, %v817, 0
        %v873 = vsel %vm822, %v800, 0
        %875 = vmatprep.subr.bf16.mxu0 0
        %876 = vmatpush1.bf16.xpose.msra.mxu0 %v873
        %877 = vmatprep.subr.bf16.mxu0 0
        %878 = vmatpush1.bf16.xpose.msra.mxu0 0
        %879 = vmatprep.subr.bf16.mxu0 0
        %880 = vmatpush1.bf16.xpose.msra.mxu0 0
        %881 = vmatprep.subr.bf16.mxu0 0
        %882 = vmatpush1.bf16.xpose.msra.mxu0 0
        %883 = vmatprep.subr.bf16.mxu0 0
        %884 = vmatpush1.bf16.xpose.msra.mxu0 0
        %885 = vmatprep.subr.bf16.mxu0 0
        %886 = vmatpush1.bf16.xpose.msra.mxu0 0
        %887 = vmatprep.subr.bf16.mxu0 0
        %888 = vmatpush1.bf16.xpose.msra.mxu0 0
        %889 = vmatprep.subr.bf16.mxu0 0
        %890 = vmatpush1.bf16.xpose.msra.mxu0 0
        %891 = vmatprep.subr.bf16.mxu0 0
        %892 = vmatpush1.bf16.xpose.msra.mxu0 0
        %893 = vmatprep.subr.bf16.mxu0 0
        %894 = vmatpush1.bf16.xpose.msra.mxu0 0
        %895 = vmatprep.subr.bf16.mxu0 0
        %896 = vmatpush1.bf16.xpose.msra.mxu0 0
        %897 = vmatprep.subr.bf16.mxu0 0
        %898 = vmatpush1.bf16.xpose.msra.mxu0 0
        %899 = vmatprep.subr.bf16.mxu0 0
        %900 = vmatpush1.bf16.xpose.msra.mxu0 0
        %901 = vmatprep.subr.bf16.mxu0 0
        %902 = vmatpush1.bf16.xpose.msra.mxu0 0
        %903 = vmatprep.subr.bf16.mxu0 0
        %904 = vmatpush1.bf16.xpose.msra.mxu0 0
        %905 = vmatprep.subr.bf16.mxu0 0
        %906 = vmatpush1.bf16.xpose.msra.mxu0 0
        %907 = vmatprep.mubr.bf16.mxu0 0
        %908 = vmatmul.mubr.bf16.gmra.mrb[0].mxu0 %v870
        %v909 = vpop.f32.mrb[0].mxu0
        %v910 = vadd.f32 %v362, %v909
        %v911 = vpop.f32.mrb[0].mxu0
        %v912 = vpop.f32.mrb[0].mxu0
        %v913 = vpop.f32.mrb[0].mxu0
        %914 = vdwg.mxu0
        %v916 = vsel %vm822, %v819, 0
        %v919 = vsel %vm822, %v802, 0
        %921 = vmatprep.subr.bf16.mxu0 0
        %922 = vmatpush1.bf16.xpose.msra.mxu0 %v919
        %923 = vmatprep.subr.bf16.mxu0 0
        %924 = vmatpush1.bf16.xpose.msra.mxu0 0
        %925 = vmatprep.subr.bf16.mxu0 0
        %926 = vmatpush1.bf16.xpose.msra.mxu0 0
        %927 = vmatprep.subr.bf16.mxu0 0
        %928 = vmatpush1.bf16.xpose.msra.mxu0 0
        %929 = vmatprep.subr.bf16.mxu0 0
        %930 = vmatpush1.bf16.xpose.msra.mxu0 0
        %931 = vmatprep.subr.bf16.mxu0 0
        %932 = vmatpush1.bf16.xpose.msra.mxu0 0
        %933 = vmatprep.subr.bf16.mxu0 0
        %934 = vmatpush1.bf16.xpose.msra.mxu0 0
        %935 = vmatprep.subr.bf16.mxu0 0
        %936 = vmatpush1.bf16.xpose.msra.mxu0 0
        %937 = vmatprep.subr.bf16.mxu0 0
        %938 = vmatpush1.bf16.xpose.msra.mxu0 0
        %939 = vmatprep.subr.bf16.mxu0 0
        %940 = vmatpush1.bf16.xpose.msra.mxu0 0
        %941 = vmatprep.subr.bf16.mxu0 0
        %942 = vmatpush1.bf16.xpose.msra.mxu0 0
        %943 = vmatprep.subr.bf16.mxu0 0
        %944 = vmatpush1.bf16.xpose.msra.mxu0 0
        %945 = vmatprep.subr.bf16.mxu0 0
        %946 = vmatpush1.bf16.xpose.msra.mxu0 0
        %947 = vmatprep.subr.bf16.mxu0 0
        %948 = vmatpush1.bf16.xpose.msra.mxu0 0
        %949 = vmatprep.subr.bf16.mxu0 0
        %950 = vmatpush1.bf16.xpose.msra.mxu0 0
        %951 = vmatprep.subr.bf16.mxu0 0
        %952 = vmatpush1.bf16.xpose.msra.mxu0 0
        %953 = vmatprep.mubr.bf16.mxu0 0
        %954 = vmatmul.mubr.bf16.gmra.mrb[0].mxu0 %v916
        %v955 = vpop.f32.mrb[0].mxu0
        %v956 = vadd.f32 %v362, %v955
        %v957 = vpop.f32.mrb[0].mxu0
        %v958 = vpop.f32.mrb[0].mxu0
        %v959 = vpop.f32.mrb[0].mxu0
        %960 = vdwg.mxu0
        %v962 = vsel %vm822, %v821, 0
        %v965 = vsel %vm822, %v804, 0
        %967 = vmatprep.subr.bf16.mxu0 0
        %968 = vmatpush1.bf16.xpose.msra.mxu0 %v965
        %969 = vmatprep.subr.bf16.mxu0 0
        %970 = vmatpush1.bf16.xpose.msra.mxu0 0
        %971 = vmatprep.subr.bf16.mxu0 0
        %972 = vmatpush1.bf16.xpose.msra.mxu0 0
        %973 = vmatprep.subr.bf16.mxu0 0
        %974 = vmatpush1.bf16.xpose.msra.mxu0 0
        %975 = vmatprep.subr.bf16.mxu0 0
        %976 = vmatpush1.bf16.xpose.msra.mxu0 0
        %977 = vmatprep.subr.bf16.mxu0 0
        %978 = vmatpush1.bf16.xpose.msra.mxu0 0
        %979 = vmatprep.subr.bf16.mxu0 0
        %980 = vmatpush1.bf16.xpose.msra.mxu0 0
        %981 = vmatprep.subr.bf16.mxu0 0
        %982 = vmatpush1.bf16.xpose.msra.mxu0 0
        %983 = vmatprep.subr.bf16.mxu0 0
        %984 = vmatpush1.bf16.xpose.msra.mxu0 0
        %985 = vmatprep.subr.bf16.mxu0 0
        %986 = vmatpush1.bf16.xpose.msra.mxu0 0
        %987 = vmatprep.subr.bf16.mxu0 0
        %988 = vmatpush1.bf16.xpose.msra.mxu0 0
        %989 = vmatprep.subr.bf16.mxu0 0
        %990 = vmatpush1.bf16.xpose.msra.mxu0 0
        %991 = vmatprep.subr.bf16.mxu0 0
        %992 = vmatpush1.bf16.xpose.msra.mxu0 0
        %993 = vmatprep.subr.bf16.mxu0 0
        %994 = vmatpush1.bf16.xpose.msra.mxu0 0
        %995 = vmatprep.subr.bf16.mxu0 0
        %996 = vmatpush1.bf16.xpose.msra.mxu0 0
        %997 = vmatprep.subr.bf16.mxu0 0
        %998 = vmatpush1.bf16.xpose.msra.mxu0 0
        %999 = vmatprep.mubr.bf16.mxu0 0
        %1000 = vmatmul.mubr.bf16.gmra.mrb[0].mxu0 %v962
        %v1001 = vpop.f32.mrb[0].mxu0
        %v1002 = vadd.f32 %v362, %v1001
        %v1003 = vpop.f32.mrb[0].mxu0
        %v1004 = vpop.f32.mrb[0].mxu0
        %v1005 = vpop.f32.mrb[0].mxu0
        %1006 = vdwg.mxu0
        %vm1007 = vcmask 64512
        %v1008 = vsel %vm1007, %v864, -inf
        %1009 = vmax.xlane.f32.xlu0 %v1008
        %v1010 = vpop.xlane.xlu0 %1009
        %v1011 = vsel %vm1007, %v910, -inf
        %1012 = vmax.xlane.f32.xlu0 %v1011
        %v1013 = vpop.xlane.xlu0 %1012
        %v1014 = vsel %vm1007, %v956, -inf
        %1015 = vmax.xlane.f32.xlu0 %v1014
        %v1016 = vpop.xlane.xlu0 %1015
        %v1017 = vsel %vm1007, %v1002, -inf
        %1018 = vmax.xlane.f32.xlu0 %v1017
        %v1019 = vpop.xlane.xlu0 %1018
        %v1020 = vsub.f32 %v864, %v1010
        %v1021 = vsub.f32 %v910, %v1013
        %v1022 = vsub.f32 %v956, %v1016
        %v1023 = vsub.f32 %v1002, %v1019
        %v1024 = vmul.f32 %v1020, 1.442695
        %v1025 = vpow.pop %v1024
        %v1026 = vmul.f32 %v1021, 1.442695
        %v1027 = vpow.pop %v1026
        %v1028 = vmul.f32 %v1022, 1.442695
        %v1029 = vpow.pop %v1028
        %v1030 = vmul.f32 %v1023, 1.442695
        %v1031 = vpow.pop %v1030
        %v1032 = vsel %vm1007, %v1025, 0.0
        %1033 = vadd.xlane.f32.xlu0 %v1032
        %v1034 = vpop.xlane.xlu0 %1033
        %v1035 = vsel %vm1007, %v1027, 0.0
        %1036 = vadd.xlane.f32.xlu0 %v1035
        %v1037 = vpop.xlane.xlu0 %1036
        %v1038 = vsel %vm1007, %v1029, 0.0
        %1039 = vadd.xlane.f32.xlu0 %v1038
        %v1040 = vpop.xlane.xlu0 %1039
        %v1041 = vsel %vm1007, %v1031, 0.0
        %1042 = vadd.xlane.f32.xlu0 %v1041
        %v1043 = vpop.xlane.xlu0 %1042
        %v1044 = vrcp.pop %v1034
        %v1045 = vrcp.pop %v1037
        %v1046 = vrcp.pop %v1040
        %v1047 = vrcp.pop %v1043
        %v1048 = vmul.f32 %v1025, %v1044
        %v1049 = vmul.f32 %v1027, %v1045
        %v1050 = vmul.f32 %v1029, %v1046
        %v1051 = vmul.f32 %v1031, %v1047
        %v1052 = vpack.c.bf16 %v1048, %v1048
        %v1053 = vpack.c.bf16 %v1049, %v1049
        %v1054 = vpack.c.bf16 %v1050, %v1050
        %v1055 = vpack.c.bf16 %v1051, %v1051
        %v1057 = vsel %vm1007, %v1052, 0
        %vm1059 = vcmask 1043456
        %v1061 = vsel %vm1059, %v805, 0
        %1063 = vmatprep.subr.bf16.mxu0 0
        %1064 = vmatpush1.bf16.msra.mxu0 %v1061
        %1065 = vmatprep.subr.bf16.mxu0 0
        %1066 = vmatpush1.bf16.msra.mxu0 0
        %1067 = vmatprep.subr.bf16.mxu0 0
        %1068 = vmatpush1.bf16.msra.mxu0 0
        %1069 = vmatprep.subr.bf16.mxu0 0
        %1070 = vmatpush1.bf16.msra.mxu0 0
        %1071 = vmatprep.subr.bf16.mxu0 0
        %1072 = vmatpush1.bf16.msra.mxu0 0
        %1073 = vmatprep.subr.bf16.mxu0 0
        %1074 = vmatpush1.bf16.msra.mxu0 0
        %1075 = vmatprep.subr.bf16.mxu0 0
        %1076 = vmatpush1.bf16.msra.mxu0 0
        %1077 = vmatprep.subr.bf16.mxu0 0
        %1078 = vmatpush1.bf16.msra.mxu0 0
        %1079 = vmatprep.subr.bf16.mxu0 0
        %1080 = vmatpush1.bf16.msra.mxu0 0
        %1081 = vmatprep.subr.bf16.mxu0 0
        %1082 = vmatpush1.bf16.msra.mxu0 0
        %1083 = vmatprep.subr.bf16.mxu0 0
        %1084 = vmatpush1.bf16.msra.mxu0 0
        %1085 = vmatprep.subr.bf16.mxu0 0
        %1086 = vmatpush1.bf16.msra.mxu0 0
        %1087 = vmatprep.subr.bf16.mxu0 0
        %1088 = vmatpush1.bf16.msra.mxu0 0
        %1089 = vmatprep.subr.bf16.mxu0 0
        %1090 = vmatpush1.bf16.msra.mxu0 0
        %1091 = vmatprep.subr.bf16.mxu0 0
        %1092 = vmatpush1.bf16.msra.mxu0 0
        %1093 = vmatprep.subr.bf16.mxu0 0
        %1094 = vmatpush1.bf16.msra.mxu0 0
        %1095 = vmatprep.mubr.bf16.mxu0 0
        %1096 = vmatmul.mubr.bf16.gmra.mrb[0].mxu0 %v1057
        %v1097 = vpop.f32.mrb[0].mxu0
        %v1098 = vadd.f32 0.0, %v1097
        %v1099 = vpop.f32.mrb[0].mxu0
        %v1100 = vpop.f32.mrb[0].mxu0
        %v1101 = vpop.f32.mrb[0].mxu0
        %1102 = vdwg.mxu0
        %v1104 = vsel %vm1007, %v1053, 0
        %v1107 = vsel %vm1059, %v808, 0
        %1109 = vmatprep.subr.bf16.mxu0 0
        %1110 = vmatpush1.bf16.msra.mxu0 %v1107
        %1111 = vmatprep.subr.bf16.mxu0 0
        %1112 = vmatpush1.bf16.msra.mxu0 0
        %1113 = vmatprep.subr.bf16.mxu0 0
        %1114 = vmatpush1.bf16.msra.mxu0 0
        %1115 = vmatprep.subr.bf16.mxu0 0
        %1116 = vmatpush1.bf16.msra.mxu0 0
        %1117 = vmatprep.subr.bf16.mxu0 0
        %1118 = vmatpush1.bf16.msra.mxu0 0
        %1119 = vmatprep.subr.bf16.mxu0 0
        %1120 = vmatpush1.bf16.msra.mxu0 0
        %1121 = vmatprep.subr.bf16.mxu0 0
        %1122 = vmatpush1.bf16.msra.mxu0 0
        %1123 = vmatprep.subr.bf16.mxu0 0
        %1124 = vmatpush1.bf16.msra.mxu0 0
        %1125 = vmatprep.subr.bf16.mxu0 0
        %1126 = vmatpush1.bf16.msra.mxu0 0
        %1127 = vmatprep.subr.bf16.mxu0 0
        %1128 = vmatpush1.bf16.msra.mxu0 0
        %1129 = vmatprep.subr.bf16.mxu0 0
        %1130 = vmatpush1.bf16.msra.mxu0 0
        %1131 = vmatprep.subr.bf16.mxu0 0
        %1132 = vmatpush1.bf16.msra.mxu0 0
        %1133 = vmatprep.subr.bf16.mxu0 0
        %1134 = vmatpush1.bf16.msra.mxu0 0
        %1135 = vmatprep.subr.bf16.mxu0 0
        %1136 = vmatpush1.bf16.msra.mxu0 0
        %1137 = vmatprep.subr.bf16.mxu0 0
        %1138 = vmatpush1.bf16.msra.mxu0 0
        %1139 = vmatprep.subr.bf16.mxu0 0
        %1140 = vmatpush1.bf16.msra.mxu0 0
        %1141 = vmatprep.mubr.bf16.mxu0 0
        %1142 = vmatmul.mubr.bf16.gmra.mrb[0].mxu0 %v1104
        %v1143 = vpop.f32.mrb[0].mxu0
        %v1144 = vadd.f32 0.0, %v1143
        %v1145 = vpop.f32.mrb[0].mxu0
        %v1146 = vpop.f32.mrb[0].mxu0
        %v1147 = vpop.f32.mrb[0].mxu0
        %1148 = vdwg.mxu0
        %v1150 = vsel %vm1007, %v1054, 0
        %v1153 = vsel %vm1059, %v810, 0
        %1155 = vmatprep.subr.bf16.mxu0 0
        %1156 = vmatpush1.bf16.msra.mxu0 %v1153
        %1157 = vmatprep.subr.bf16.mxu0 0
        %1158 = vmatpush1.bf16.msra.mxu0 0
        %1159 = vmatprep.subr.bf16.mxu0 0
        %1160 = vmatpush1.bf16.msra.mxu0 0
        %1161 = vmatprep.subr.bf16.mxu0 0
        %1162 = vmatpush1.bf16.msra.mxu0 0
        %1163 = vmatprep.subr.bf16.mxu0 0
        %1164 = vmatpush1.bf16.msra.mxu0 0
        %1165 = vmatprep.subr.bf16.mxu0 0
        %1166 = vmatpush1.bf16.msra.mxu0 0
        %1167 = vmatprep.subr.bf16.mxu0 0
        %1168 = vmatpush1.bf16.msra.mxu0 0
        %1169 = vmatprep.subr.bf16.mxu0 0
        %1170 = vmatpush1.bf16.msra.mxu0 0
        %1171 = vmatprep.subr.bf16.mxu0 0
        %1172 = vmatpush1.bf16.msra.mxu0 0
        %1173 = vmatprep.subr.bf16.mxu0 0
        %1174 = vmatpush1.bf16.msra.mxu0 0
        %1175 = vmatprep.subr.bf16.mxu0 0
        %1176 = vmatpush1.bf16.msra.mxu0 0
        %1177 = vmatprep.subr.bf16.mxu0 0
        %1178 = vmatpush1.bf16.msra.mxu0 0
        %1179 = vmatprep.subr.bf16.mxu0 0
        %1180 = vmatpush1.bf16.msra.mxu0 0
        %1181 = vmatprep.subr.bf16.mxu0 0
        %1182 = vmatpush1.bf16.msra.mxu0 0
        %1183 = vmatprep.subr.bf16.mxu0 0
        %1184 = vmatpush1.bf16.msra.mxu0 0
        %1185 = vmatprep.subr.bf16.mxu0 0
        %1186 = vmatpush1.bf16.msra.mxu0 0
        %1187 = vmatprep.mubr.bf16.mxu0 0
        %1188 = vmatmul.mubr.bf16.gmra.mrb[0].mxu0 %v1150
        %v1189 = vpop.f32.mrb[0].mxu0
        %v1190 = vadd.f32 0.0, %v1189
        %v1191 = vpop.f32.mrb[0].mxu0
        %v1192 = vpop.f32.mrb[0].mxu0
        %v1193 = vpop.f32.mrb[0].mxu0
        %1194 = vdwg.mxu0
        %v1196 = vsel %vm1007, %v1055, 0
        %v1199 = vsel %vm1059, %v812, 0
        %1201 = vmatprep.subr.bf16.mxu0 0
        %1202 = vmatpush1.bf16.msra.mxu0 %v1199
        %1203 = vmatprep.subr.bf16.mxu0 0
        %1204 = vmatpush1.bf16.msra.mxu0 0
        %1205 = vmatprep.subr.bf16.mxu0 0
        %1206 = vmatpush1.bf16.msra.mxu0 0
        %1207 = vmatprep.subr.bf16.mxu0 0
        %1208 = vmatpush1.bf16.msra.mxu0 0
        %1209 = vmatprep.subr.bf16.mxu0 0
        %1210 = vmatpush1.bf16.msra.mxu0 0
        %1211 = vmatprep.subr.bf16.mxu0 0
        %1212 = vmatpush1.bf16.msra.mxu0 0
        %1213 = vmatprep.subr.bf16.mxu0 0
        %1214 = vmatpush1.bf16.msra.mxu0 0
        %1215 = vmatprep.subr.bf16.mxu0 0
        %1216 = vmatpush1.bf16.msra.mxu0 0
        %1217 = vmatprep.subr.bf16.mxu0 0
        %1218 = vmatpush1.bf16.msra.mxu0 0
        %1219 = vmatprep.subr.bf16.mxu0 0
        %1220 = vmatpush1.bf16.msra.mxu0 0
        %1221 = vmatprep.subr.bf16.mxu0 0
        %1222 = vmatpush1.bf16.msra.mxu0 0
        %1223 = vmatprep.subr.bf16.mxu0 0
        %1224 = vmatpush1.bf16.msra.mxu0 0
        %1225 = vmatprep.subr.bf16.mxu0 0
        %1226 = vmatpush1.bf16.msra.mxu0 0
        %1227 = vmatprep.subr.bf16.mxu0 0
        %1228 = vmatpush1.bf16.msra.mxu0 0
        %1229 = vmatprep.subr.bf16.mxu0 0
        %1230 = vmatpush1.bf16.msra.mxu0 0
        %1231 = vmatprep.subr.bf16.mxu0 0
        %1232 = vmatpush1.bf16.msra.mxu0 0
        %1233 = vmatprep.mubr.bf16.mxu0 0
        %1234 = vmatmul.mubr.bf16.gmra.mrb[0].mxu0 %v1196
        %v1235 = vpop.f32.mrb[0].mxu0
        %v1236 = vadd.f32 0.0, %v1235
        %v1237 = vpop.f32.mrb[0].mxu0
        %v1238 = vpop.f32.mrb[0].mxu0
        %v1239 = vpop.f32.mrb[0].mxu0
        %1240 = vdwg.mxu0
        %1242 = vrot.lane.b32.xlu0 %v1144, 32
        %v1243 = vpop.permute.xlu0 %1242
        %1246 = vrot.lane.b32.xlu0 %v1190, 64
        %v1247 = vpop.permute.xlu0 %1246
        %1250 = vrot.lane.b32.xlu0 %v1236, 96
        %v1251 = vpop.permute.xlu0 %1250
        %v1253 = vsel %vm822, %v1098, %v1243
        %vm1254 = vcmask 523264
        %v1255 = vsel %vm1254, %v1253, %v1247
        %vm1256 = vcmask 785408
        %v1257 = vsel %vm1256, %v1255, %v1251
        %v1258 = vld [vmem:[#allocation8 + $0xc] sm:$0xf]
        %v1259 = vld [vmem:[#allocation8 + $0x34] sm:$0xf]
        %v1260 = vld [vmem:[#allocation8 + $0x5c] sm:$0xf]
        %v1261 = vld [vmem:[#allocation8 + $0x84] sm:$0xf]
        %v1262 = vld [vmem:[#allocation8 + $0xac] sm:$0xf]
        %v1263 = vld [vmem:[#allocation8 + $0xd4] sm:$0xf]
        %v1264 = vld [vmem:[#allocation8 + $0xfc] sm:$0xf]
        %v1265 = vld [vmem:[#allocation8 + $0x124] sm:$0xf]
        %v1266 = vld [vmem:[#allocation8 + $0x14c] sm:$0xf]
        %v1267 = vld [vmem:[#allocation8 + $0x174] sm:$0xf]
        %v1268 = vld [vmem:[#allocation8 + $0x19c] sm:$0xf]
        %v1269 = vld [vmem:[#allocation8 + $0x1c4] sm:$0xf]
        %v1270 = vld [vmem:[#allocation8 + $0x1ec] sm:$0xf]
        %v1271 = vld [vmem:[#allocation8 + $0x214] sm:$0xf]
        %v1272 = vld [vmem:[#allocation8 + $0x23c] sm:$0xf]
        %v1273 = vld [vmem:[#allocation8 + $0x264] sm:$0xf]
        %v1274 = vld [vmem:[#allocation11 + $0x1] ss:$0 sm:$0xff]
        %v1275 = vpack.c.bf16 %v1257, %v1257
        %v1292 = vunpack.c.l.b16 %v1258
        %v1293 = vunpack.c.l.b16 %v1259
        %v1294 = vunpack.c.l.b16 %v1260
        %v1295 = vunpack.c.l.b16 %v1261
        %v1296 = vunpack.c.l.b16 %v1262
        %v1297 = vunpack.c.l.b16 %v1263
        %v1298 = vunpack.c.l.b16 %v1264
        %v1299 = vunpack.c.l.b16 %v1265
        %v1300 = vunpack.c.l.b16 %v1266
        %v1301 = vunpack.c.l.b16 %v1267
        %v1302 = vunpack.c.l.b16 %v1268
        %v1303 = vunpack.c.l.b16 %v1269
        %v1304 = vunpack.c.l.b16 %v1270
        %v1305 = vunpack.c.l.b16 %v1271
        %v1306 = vunpack.c.l.b16 %v1272
        %v1307 = vunpack.c.l.b16 %v1273
        %v1308 = vpack.c.b16 %v1293, %v1292
        %v1309 = vpack.c.b16 %v1295, %v1294
        %v1310 = vpack.c.b16 %v1297, %v1296
        %v1311 = vpack.c.b16 %v1299, %v1298
        %v1312 = vpack.c.b16 %v1301, %v1300
        %v1313 = vpack.c.b16 %v1303, %v1302
        %v1314 = vpack.c.b16 %v1305, %v1304
        %v1315 = vpack.c.b16 %v1307, %v1306
        %1324 = vmatprep.subr.bf16.mxu0 0
        %1325 = vmatpush1.bf16.msra.mxu0 %v1308
        %1326 = vmatprep.subr.bf16.mxu0 0
        %1327 = vmatpush1.bf16.msra.mxu0 %v1309
        %1328 = vmatprep.subr.bf16.mxu0 0
        %1329 = vmatpush1.bf16.msra.mxu0 %v1310
        %1330 = vmatprep.subr.bf16.mxu0 0
        %1331 = vmatpush1.bf16.msra.mxu0 %v1311
        %1332 = vmatprep.subr.bf16.mxu0 0
        %1333 = vmatpush1.bf16.msra.mxu0 %v1312
        %1334 = vmatprep.subr.bf16.mxu0 0
        %1335 = vmatpush1.bf16.msra.mxu0 %v1313
        %1336 = vmatprep.subr.bf16.mxu0 0
        %1337 = vmatpush1.bf16.msra.mxu0 %v1314
        %1338 = vmatprep.subr.bf16.mxu0 0
        %1339 = vmatpush1.bf16.msra.mxu0 %v1315
        %1340 = vmatprep.subr.bf16.mxu0 0
        %1341 = vmatpush1.bf16.msra.mxu0 0
        %1342 = vmatprep.subr.bf16.mxu0 0
        %1343 = vmatpush1.bf16.msra.mxu0 0
        %1344 = vmatprep.subr.bf16.mxu0 0
        %1345 = vmatpush1.bf16.msra.mxu0 0
        %1346 = vmatprep.subr.bf16.mxu0 0
        %1347 = vmatpush1.bf16.msra.mxu0 0
        %1348 = vmatprep.subr.bf16.mxu0 0
        %1349 = vmatpush1.bf16.msra.mxu0 0
        %1350 = vmatprep.subr.bf16.mxu0 0
        %1351 = vmatpush1.bf16.msra.mxu0 0
        %1352 = vmatprep.subr.bf16.mxu0 0
        %1353 = vmatpush1.bf16.msra.mxu0 0
        %1354 = vmatprep.subr.bf16.mxu0 0
        %1355 = vmatpush1.bf16.msra.mxu0 0
        %1356 = vmatprep.mubr.bf16.mxu0 0
        %1357 = vmatmul.mubr.bf16.gmra.mrb[0].mxu0 %v1275
        %v1358 = vpop.f32.mrb[0].mxu0
        %v1359 = vadd.f32 %v1274, %v1358
        %v1360 = vpop.f32.mrb[0].mxu0
        %v1361 = vpop.f32.mrb[0].mxu0
        %v1362 = vpop.f32.mrb[0].mxu0
        %1363 = vdwg.mxu0
        %v1364 = vadd.f32 %v537, %v1359
        %v1365 = vld [vmem:[#allocation11 + $0x2] ss:$0 sm:$0xff]
        %v1366 = vld [vmem:[#allocation11 + $0x3] ss:$0 sm:$0xff]
        %1367 = vadd.xlane.f32.xlu0 %v1364
        %v1368 = vpop.xlane.xlu0 %1367
        %v1369 = vrcp.pop 128.0
        %v1370 = vmul.f32 %v1368, %v1369
        %v1371 = vsub.f32 %v1364, %v1370
        %v1372 = vmul.f32 %v1371, %v1371
        %1373 = vadd.xlane.f32.xlu0 %v1372
        %v1374 = vpop.xlane.xlu0 %1373
        %v1375 = vmul.f32 %v1374, %v1369
        %v1376 = vadd.f32 %v1375, 1e-05
        %v1377 = vrsqrt.pop %v1376
        %v1378 = vmul.f32 %v1371, %v1377
        %v1379 = vmul.f32 %v1378, %v1365
        %v1380 = vadd.f32 %v1379, %v1366
        %v1381 = vld [vmem:[#allocation8 + $0x10] sm:$0xf]
        %v1382 = vld [vmem:[#allocation8 + $0x38] sm:$0xf]
        %v1383 = vld [vmem:[#allocation8 + $0x60] sm:$0xf]
        %v1384 = vld [vmem:[#allocation8 + $0x88] sm:$0xf]
        %v1385 = vld [vmem:[#allocation8 + $0xb0] sm:$0xf]
        %v1386 = vld [vmem:[#allocation8 + $0xd8] sm:$0xf]
        %v1387 = vld [vmem:[#allocation8 + $0x100] sm:$0xf]
        %v1388 = vld [vmem:[#allocation8 + $0x128] sm:$0xf]
        %v1389 = vld [vmem:[#allocation8 + $0x150] sm:$0xf]
        %v1390 = vld [vmem:[#allocation8 + $0x178] sm:$0xf]
        %v1391 = vld [vmem:[#allocation8 + $0x1a0] sm:$0xf]
        %v1392 = vld [vmem:[#allocation8 + $0x1c8] sm:$0xf]
        %v1393 = vld [vmem:[#allocation8 + $0x1f0] sm:$0xf]
        %v1394 = vld [vmem:[#allocation8 + $0x218] sm:$0xf]
        %v1395 = vld [vmem:[#allocation8 + $0x240] sm:$0xf]
        %v1396 = vld [vmem:[#allocation8 + $0x268] sm:$0xf]
        %v1397 = vld [vmem:[#allocation11 + $0x4] ss:$0 sm:$0xff]
        %v1398 = vpack.c.bf16 %v1380, %v1380
        %v1415 = vunpack.c.l.b16 %v1381
        %v1416 = vunpack.c.l.b16 %v1382
        %v1417 = vunpack.c.l.b16 %v1383
        %v1418 = vunpack.c.l.b16 %v1384
        %v1419 = vunpack.c.l.b16 %v1385
        %v1420 = vunpack.c.l.b16 %v1386
        %v1421 = vunpack.c.l.b16 %v1387
        %v1422 = vunpack.c.l.b16 %v1388
        %v1423 = vunpack.c.l.b16 %v1389
        %v1424 = vunpack.c.l.b16 %v1390
        %v1425 = vunpack.c.l.b16 %v1391
        %v1426 = vunpack.c.l.b16 %v1392
        %v1427 = vunpack.c.l.b16 %v1393
        %v1428 = vunpack.c.l.b16 %v1394
        %v1429 = vunpack.c.l.b16 %v1395
        %v1430 = vunpack.c.l.b16 %v1396
        %v1431 = vpack.c.b16 %v1416, %v1415
        %v1432 = vpack.c.b16 %v1418, %v1417
        %v1433 = vpack.c.b16 %v1420, %v1419
        %v1434 = vpack.c.b16 %v1422, %v1421
        %v1435 = vpack.c.b16 %v1424, %v1423
        %v1436 = vpack.c.b16 %v1426, %v1425
        %v1437 = vpack.c.b16 %v1428, %v1427
        %v1438 = vpack.c.b16 %v1430, %v1429
        %1447 = vmatprep.subr.bf16.mxu0 0
        %1448 = vmatpush1.bf16.msra.mxu0 %v1431
        %1449 = vmatprep.subr.bf16.mxu0 0
        %1450 = vmatpush1.bf16.msra.mxu0 %v1432
        %1451 = vmatprep.subr.bf16.mxu0 0
        %1452 = vmatpush1.bf16.msra.mxu0 %v1433
        %1453 = vmatprep.subr.bf16.mxu0 0
        %1454 = vmatpush1.bf16.msra.mxu0 %v1434
        %1455 = vmatprep.subr.bf16.mxu0 0
        %1456 = vmatpush1.bf16.msra.mxu0 %v1435
        %1457 = vmatprep.subr.bf16.mxu0 0
        %1458 = vmatpush1.bf16.msra.mxu0 %v1436
        %1459 = vmatprep.subr.bf16.mxu0 0
        %1460 = vmatpush1.bf16.msra.mxu0 %v1437
        %1461 = vmatprep.subr.bf16.mxu0 0
        %1462 = vmatpush1.bf16.msra.mxu0 %v1438
        %1463 = vmatprep.subr.bf16.mxu0 0
        %1464 = vmatpush1.bf16.msra.mxu0 0
        %1465 = vmatprep.subr.bf16.mxu0 0
        %1466 = vmatpush1.bf16.msra.mxu0 0
        %1467 = vmatprep.subr.bf16.mxu0 0
        %1468 = vmatpush1.bf16.msra.mxu0 0
        %1469 = vmatprep.subr.bf16.mxu0 0
        %1470 = vmatpush1.bf16.msra.mxu0 0
        %1471 = vmatprep.subr.bf16.mxu0 0
        %1472 = vmatpush1.bf16.msra.mxu0 0
        %1473 = vmatprep.subr.bf16.mxu0 0
        %1474 = vmatpush1.bf16.msra.mxu0 0
        %1475 = vmatprep.subr.bf16.mxu0 0
        %1476 = vmatpush1.bf16.msra.mxu0 0
        %1477 = vmatprep.subr.bf16.mxu0 0
        %1478 = vmatpush1.bf16.msra.mxu0 0
        %1479 = vmatprep.mubr.bf16.mxu0 0
        %1480 = vmatmul.mubr.bf16.gmra.mrb[0].mxu0 %v1398
        %v1481 = vpop.f32.mrb[0].mxu0
        %v1482 = vadd.f32 %v1397, %v1481
        %v1483 = vpop.f32.mrb[0].mxu0
        %v1484 = vpop.f32.mrb[0].mxu0
        %v1485 = vpop.f32.mrb[0].mxu0
        %1486 = vdwg.mxu0
        %v1487 = vmul.f32 %v1482, 0.17677669
        %v1488 = vpack.c.bf16 %v1487, %v1487
        %1490 = vrot.lane.b32.xlu0 %v1488, 96
        %v1491 = vpop.permute.xlu0 %1490
        %1492 = vrot.lane.b32.xlu0 %v1488, 64
        %v1493 = vpop.permute.xlu0 %1492
        %1494 = vrot.lane.b32.xlu0 %v1488, 32
        %v1495 = vpop.permute.xlu0 %1494
        %v1497 = vsel %vm822, %v1488, 0
        %v1500 = vsel %vm822, %v518, 0
        %1502 = vmatprep.subr.bf16.mxu0 0
        %1503 = vmatpush1.bf16.xpose.msra.mxu0 %v1500
        %1504 = vmatprep.subr.bf16.mxu0 0
        %1505 = vmatpush1.bf16.xpose.msra.mxu0 0
        %1506 = vmatprep.subr.bf16.mxu0 0
        %1507 = vmatpush1.bf16.xpose.msra.mxu0 0
        %1508 = vmatprep.subr.bf16.mxu0 0
        %1509 = vmatpush1.bf16.xpose.msra.mxu0 0
        %1510 = vmatprep.subr.bf16.mxu0 0
        %1511 = vmatpush1.bf16.xpose.msra.mxu0 0
        %1512 = vmatprep.subr.bf16.mxu0 0
        %1513 = vmatpush1.bf16.xpose.msra.mxu0 0
        %1514 = vmatprep.subr.bf16.mxu0 0
        %1515 = vmatpush1.bf16.xpose.msra.mxu0 0
        %1516 = vmatprep.subr.bf16.mxu0 0
        %1517 = vmatpush1.bf16.xpose.msra.mxu0 0
        %1518 = vmatprep.subr.bf16.mxu0 0
        %1519 = vmatpush1.bf16.xpose.msra.mxu0 0
        %1520 = vmatprep.subr.bf16.mxu0 0
        %1521 = vmatpush1.bf16.xpose.msra.mxu0 0
        %1522 = vmatprep.subr.bf16.mxu0 0
        %1523 = vmatpush1.bf16.xpose.msra.mxu0 0
        %1524 = vmatprep.subr.bf16.mxu0 0
        %1525 = vmatpush1.bf16.xpose.msra.mxu0 0
        %1526 = vmatprep.subr.bf16.mxu0 0
        %1527 = vmatpush1.bf16.xpose.msra.mxu0 0
        %1528 = vmatprep.subr.bf16.mxu0 0
        %1529 = vmatpush1.bf16.xpose.msra.mxu0 0
        %1530 = vmatprep.subr.bf16.mxu0 0
        %1531 = vmatpush1.bf16.xpose.msra.mxu0 0
        %1532 = vmatprep.subr.bf16.mxu0 0
        %1533 = vmatpush1.bf16.xpose.msra.mxu0 0
        %1534 = vmatprep.mubr.bf16.mxu0 0
        %1535 = vmatmul.mubr.bf16.gmra.mrb[0].mxu0 %v1497
        %v1536 = vpop.f32.mrb[0].mxu0
        %v1537 = vadd.f32 0.0, %v1536
        %v1538 = vpop.f32.mrb[0].mxu0
        %v1539 = vpop.f32.mrb[0].mxu0
        %v1540 = vpop.f32.mrb[0].mxu0
        %1541 = vdwg.mxu0
        %v1543 = vsel %vm822, %v1491, 0
        %v1546 = vsel %vm822, %v521, 0
        %1548 = vmatprep.subr.bf16.mxu0 0
        %1549 = vmatpush1.bf16.xpose.msra.mxu0 %v1546
        %1550 = vmatprep.subr.bf16.mxu0 0
        %1551 = vmatpush1.bf16.xpose.msra.mxu0 0
        %1552 = vmatprep.subr.bf16.mxu0 0
        %1553 = vmatpush1.bf16.xpose.msra.mxu0 0
        %1554 = vmatprep.subr.bf16.mxu0 0
        %1555 = vmatpush1.bf16.xpose.msra.mxu0 0
        %1556 = vmatprep.subr.bf16.mxu0 0
        %1557 = vmatpush1.bf16.xpose.msra.mxu0 0
        %1558 = vmatprep.subr.bf16.mxu0 0
        %1559 = vmatpush1.bf16.xpose.msra.mxu0 0
        %1560 = vmatprep.subr.bf16.mxu0 0
        %1561 = vmatpush1.bf16.xpose.msra.mxu0 0
        %1562 = vmatprep.subr.bf16.mxu0 0
        %1563 = vmatpush1.bf16.xpose.msra.mxu0 0
        %1564 = vmatprep.subr.bf16.mxu0 0
        %1565 = vmatpush1.bf16.xpose.msra.mxu0 0
        %1566 = vmatprep.subr.bf16.mxu0 0
        %1567 = vmatpush1.bf16.xpose.msra.mxu0 0
        %1568 = vmatprep.subr.bf16.mxu0 0
        %1569 = vmatpush1.bf16.xpose.msra.mxu0 0
        %1570 = vmatprep.subr.bf16.mxu0 0
        %1571 = vmatpush1.bf16.xpose.msra.mxu0 0
        %1572 = vmatprep.subr.bf16.mxu0 0
        %1573 = vmatpush1.bf16.xpose.msra.mxu0 0
        %1574 = vmatprep.subr.bf16.mxu0 0
        %1575 = vmatpush1.bf16.xpose.msra.mxu0 0
        %1576 = vmatprep.subr.bf16.mxu0 0
        %1577 = vmatpush1.bf16.xpose.msra.mxu0 0
        %1578 = vmatprep.subr.bf16.mxu0 0
        %1579 = vmatpush1.bf16.xpose.msra.mxu0 0
        %1580 = vmatprep.mubr.bf16.mxu0 0
        %1581 = vmatmul.mubr.bf16.gmra.mrb[0].mxu0 %v1543
        %v1582 = vpop.f32.mrb[0].mxu0
        %v1583 = vadd.f32 0.0, %v1582
        %v1584 = vpop.f32.mrb[0].mxu0
        %v1585 = vpop.f32.mrb[0].mxu0
        %v1586 = vpop.f32.mrb[0].mxu0
        %1587 = vdwg.mxu0
        %v1589 = vsel %vm822, %v1493, 0
        %v1592 = vsel %vm822, %v523, 0
        %1594 = vmatprep.subr.bf16.mxu0 0
        %1595 = vmatpush1.bf16.xpose.msra.mxu0 %v1592
        %1596 = vmatprep.subr.bf16.mxu0 0
        %1597 = vmatpush1.bf16.xpose.msra.mxu0 0
        %1598 = vmatprep.subr.bf16.mxu0 0
        %1599 = vmatpush1.bf16.xpose.msra.mxu0 0
        %1600 = vmatprep.subr.bf16.mxu0 0
        %1601 = vmatpush1.bf16.xpose.msra.mxu0 0
        %1602 = vmatprep.subr.bf16.mxu0 0
        %1603 = vmatpush1.bf16.xpose.msra.mxu0 0
        %1604 = vmatprep.subr.bf16.mxu0 0
        %1605 = vmatpush1.bf16.xpose.msra.mxu0 0
        %1606 = vmatprep.subr.bf16.mxu0 0
        %1607 = vmatpush1.bf16.xpose.msra.mxu0 0
        %1608 = vmatprep.subr.bf16.mxu0 0
        %1609 = vmatpush1.bf16.xpose.msra.mxu0 0
        %1610 = vmatprep.subr.bf16.mxu0 0
        %1611 = vmatpush1.bf16.xpose.msra.mxu0 0
        %1612 = vmatprep.subr.bf16.mxu0 0
        %1613 = vmatpush1.bf16.xpose.msra.mxu0 0
        %1614 = vmatprep.subr.bf16.mxu0 0
        %1615 = vmatpush1.bf16.xpose.msra.mxu0 0
        %1616 = vmatprep.subr.bf16.mxu0 0
        %1617 = vmatpush1.bf16.xpose.msra.mxu0 0
        %1618 = vmatprep.subr.bf16.mxu0 0
        %1619 = vmatpush1.bf16.xpose.msra.mxu0 0
        %1620 = vmatprep.subr.bf16.mxu0 0
        %1621 = vmatpush1.bf16.xpose.msra.mxu0 0
        %1622 = vmatprep.subr.bf16.mxu0 0
        %1623 = vmatpush1.bf16.xpose.msra.mxu0 0
        %1624 = vmatprep.subr.bf16.mxu0 0
        %1625 = vmatpush1.bf16.xpose.msra.mxu0 0
        %1626 = vmatprep.mubr.bf16.mxu0 0
        %1627 = vmatmul.mubr.bf16.gmra.mrb[0].mxu0 %v1589
        %v1628 = vpop.f32.mrb[0].mxu0
        %v1629 = vadd.f32 0.0, %v1628
        %v1630 = vpop.f32.mrb[0].mxu0
        %v1631 = vpop.f32.mrb[0].mxu0
        %v1632 = vpop.f32.mrb[0].mxu0
        %1633 = vdwg.mxu0
        %v1635 = vsel %vm822, %v1495, 0
        %v1638 = vsel %vm822, %v525, 0
        %1640 = vmatprep.subr.bf16.mxu0 0
        %1641 = vmatpush1.bf16.xpose.msra.mxu0 %v1638
        %1642 = vmatprep.subr.bf16.mxu0 0
        %1643 = vmatpush1.bf16.xpose.msra.mxu0 0
        %1644 = vmatprep.subr.bf16.mxu0 0
        %1645 = vmatpush1.bf16.xpose.msra.mxu0 0
        %1646 = vmatprep.subr.bf16.mxu0 0
        %1647 = vmatpush1.bf16.xpose.msra.mxu0 0
        %1648 = vmatprep.subr.bf16.mxu0 0
        %1649 = vmatpush1.bf16.xpose.msra.mxu0 0
        %1650 = vmatprep.subr.bf16.mxu0 0
        %1651 = vmatpush1.bf16.xpose.msra.mxu0 0
        %1652 = vmatprep.subr.bf16.mxu0 0
        %1653 = vmatpush1.bf16.xpose.msra.mxu0 0
        %1654 = vmatprep.subr.bf16.mxu0 0
        %1655 = vmatpush1.bf16.xpose.msra.mxu0 0
        %1656 = vmatprep.subr.bf16.mxu0 0
        %1657 = vmatpush1.bf16.xpose.msra.mxu0 0
        %1658 = vmatprep.subr.bf16.mxu0 0
        %1659 = vmatpush1.bf16.xpose.msra.mxu0 0
        %1660 = vmatprep.subr.bf16.mxu0 0
        %1661 = vmatpush1.bf16.xpose.msra.mxu0 0
        %1662 = vmatprep.subr.bf16.mxu0 0
        %1663 = vmatpush1.bf16.xpose.msra.mxu0 0
        %1664 = vmatprep.subr.bf16.mxu0 0
        %1665 = vmatpush1.bf16.xpose.msra.mxu0 0
        %1666 = vmatprep.subr.bf16.mxu0 0
        %1667 = vmatpush1.bf16.xpose.msra.mxu0 0
        %1668 = vmatprep.subr.bf16.mxu0 0
        %1669 = vmatpush1.bf16.xpose.msra.mxu0 0
        %1670 = vmatprep.subr.bf16.mxu0 0
        %1671 = vmatpush1.bf16.xpose.msra.mxu0 0
        %1672 = vmatprep.mubr.bf16.mxu0 0
        %1673 = vmatmul.mubr.bf16.gmra.mrb[0].mxu0 %v1635
        %v1674 = vpop.f32.mrb[0].mxu0
        %v1675 = vadd.f32 0.0, %v1674
        %v1676 = vpop.f32.mrb[0].mxu0
        %v1677 = vpop.f32.mrb[0].mxu0
        %v1678 = vpop.f32.mrb[0].mxu0
        %1679 = vdwg.mxu0
        %vm1680 = vcmask 130048
        %v1681 = vsel %vm1680, %v1537, -inf
        %1682 = vmax.xlane.f32.xlu0 %v1681
        %v1683 = vpop.xlane.xlu0 %1682
        %v1684 = vsel %vm1680, %v1583, -inf
        %1685 = vmax.xlane.f32.xlu0 %v1684
        %v1686 = vpop.xlane.xlu0 %1685
        %v1687 = vsel %vm1680, %v1629, -inf
        %1688 = vmax.xlane.f32.xlu0 %v1687
        %v1689 = vpop.xlane.xlu0 %1688
        %v1690 = vsel %vm1680, %v1675, -inf
        %1691 = vmax.xlane.f32.xlu0 %v1690
        %v1692 = vpop.xlane.xlu0 %1691
        %v1693 = vsub.f32 %v1537, %v1683
        %v1694 = vsub.f32 %v1583, %v1686
        %v1695 = vsub.f32 %v1629, %v1689
        %v1696 = vsub.f32 %v1675, %v1692
        %v1697 = vmul.f32 %v1693, 1.442695
        %v1698 = vpow.pop %v1697
        %v1699 = vmul.f32 %v1694, 1.442695
        %v1700 = vpow.pop %v1699
        %v1701 = vmul.f32 %v1695, 1.442695
        %v1702 = vpow.pop %v1701
        %v1703 = vmul.f32 %v1696, 1.442695
        %v1704 = vpow.pop %v1703
        %v1705 = vsel %vm1680, %v1698, 0.0
        %1706 = vadd.xlane.f32.xlu0 %v1705
        %v1707 = vpop.xlane.xlu0 %1706
        %v1708 = vsel %vm1680, %v1700, 0.0
        %1709 = vadd.xlane.f32.xlu0 %v1708
        %v1710 = vpop.xlane.xlu0 %1709
        %v1711 = vsel %vm1680, %v1702, 0.0
        %1712 = vadd.xlane.f32.xlu0 %v1711
        %v1713 = vpop.xlane.xlu0 %1712
        %v1714 = vsel %vm1680, %v1704, 0.0
        %1715 = vadd.xlane.f32.xlu0 %v1714
        %v1716 = vpop.xlane.xlu0 %1715
        %v1717 = vrcp.pop %v1707
        %v1718 = vrcp.pop %v1710
        %v1719 = vrcp.pop %v1713
        %v1720 = vrcp.pop %v1716
        %v1721 = vmul.f32 %v1698, %v1717
        %v1722 = vmul.f32 %v1700, %v1718
        %v1723 = vmul.f32 %v1702, %v1719
        %v1724 = vmul.f32 %v1704, %v1720
        %v1725 = vpack.c.bf16 %v1721, %v1721
        %v1726 = vpack.c.bf16 %v1722, %v1722
        %v1727 = vpack.c.bf16 %v1723, %v1723
        %v1728 = vpack.c.bf16 %v1724, %v1724
        %v1730 = vsel %vm1680, %v1725, 0
        %1732 = vmatprep.subr.bf16.mxu0 0
        %1733 = vmatpush1.bf16.msra.mxu0 %v526
        %1734 = vmatprep.subr.bf16.mxu0 0
        %1735 = vmatpush1.bf16.msra.mxu0 0
        %1736 = vmatprep.subr.bf16.mxu0 0
        %1737 = vmatpush1.bf16.msra.mxu0 0
        %1738 = vmatprep.subr.bf16.mxu0 0
        %1739 = vmatpush1.bf16.msra.mxu0 0
        %1740 = vmatprep.subr.bf16.mxu0 0
        %1741 = vmatpush1.bf16.msra.mxu0 0
        %1742 = vmatprep.subr.bf16.mxu0 0
        %1743 = vmatpush1.bf16.msra.mxu0 0
        %1744 = vmatprep.subr.bf16.mxu0 0
        %1745 = vmatpush1.bf16.msra.mxu0 0
        %1746 = vmatprep.subr.bf16.mxu0 0
        %1747 = vmatpush1.bf16.msra.mxu0 0
        %1748 = vmatprep.subr.bf16.mxu0 0
        %1749 = vmatpush1.bf16.msra.mxu0 0
        %1750 = vmatprep.subr.bf16.mxu0 0
        %1751 = vmatpush1.bf16.msra.mxu0 0
        %1752 = vmatprep.subr.bf16.mxu0 0
        %1753 = vmatpush1.bf16.msra.mxu0 0
        %1754 = vmatprep.subr.bf16.mxu0 0
        %1755 = vmatpush1.bf16.msra.mxu0 0
        %1756 = vmatprep.subr.bf16.mxu0 0
        %1757 = vmatpush1.bf16.msra.mxu0 0
        %1758 = vmatprep.subr.bf16.mxu0 0
        %1759 = vmatpush1.bf16.msra.mxu0 0
        %1760 = vmatprep.subr.bf16.mxu0 0
        %1761 = vmatpush1.bf16.msra.mxu0 0
        %1762 = vmatprep.subr.bf16.mxu0 0
        %1763 = vmatpush1.bf16.msra.mxu0 0
        %1764 = vmatprep.mubr.bf16.mxu0 0
        %1765 = vmatmul.mubr.bf16.gmra.mrb[0].mxu0 %v1730
        %v1766 = vpop.f32.mrb[0].mxu0
        %v1767 = vadd.f32 0.0, %v1766
        %v1768 = vpop.f32.mrb[0].mxu0
        %v1769 = vpop.f32.mrb[0].mxu0
        %v1770 = vpop.f32.mrb[0].mxu0
        %1771 = vdwg.mxu0
        %v1773 = vsel %vm1680, %v1726, 0
        %1775 = vmatprep.subr.bf16.mxu0 0
        %1776 = vmatpush1.bf16.msra.mxu0 %v529
        %1777 = vmatprep.subr.bf16.mxu0 0
        %1778 = vmatpush1.bf16.msra.mxu0 0
        %1779 = vmatprep.subr.bf16.mxu0 0
        %1780 = vmatpush1.bf16.msra.mxu0 0
        %1781 = vmatprep.subr.bf16.mxu0 0
        %1782 = vmatpush1.bf16.msra.mxu0 0
        %1783 = vmatprep.subr.bf16.mxu0 0
        %1784 = vmatpush1.bf16.msra.mxu0 0
        %1785 = vmatprep.subr.bf16.mxu0 0
        %1786 = vmatpush1.bf16.msra.mxu0 0
        %1787 = vmatprep.subr.bf16.mxu0 0
        %1788 = vmatpush1.bf16.msra.mxu0 0
        %1789 = vmatprep.subr.bf16.mxu0 0
        %1790 = vmatpush1.bf16.msra.mxu0 0
        %1791 = vmatprep.subr.bf16.mxu0 0
        %1792 = vmatpush1.bf16.msra.mxu0 0
        %1793 = vmatprep.subr.bf16.mxu0 0
        %1794 = vmatpush1.bf16.msra.mxu0 0
        %1795 = vmatprep.subr.bf16.mxu0 0
        %1796 = vmatpush1.bf16.msra.mxu0 0
        %1797 = vmatprep.subr.bf16.mxu0 0
        %1798 = vmatpush1.bf16.msra.mxu0 0
        %1799 = vmatprep.subr.bf16.mxu0 0
        %1800 = vmatpush1.bf16.msra.mxu0 0
        %1801 = vmatprep.subr.bf16.mxu0 0
        %1802 = vmatpush1.bf16.msra.mxu0 0
        %1803 = vmatprep.subr.bf16.mxu0 0
        %1804 = vmatpush1.bf16.msra.mxu0 0
        %1805 = vmatprep.subr.bf16.mxu0 0
        %1806 = vmatpush1.bf16.msra.mxu0 0
        %1807 = vmatprep.mubr.bf16.mxu0 0
        %1808 = vmatmul.mubr.bf16.gmra.mrb[0].mxu0 %v1773
        %v1809 = vpop.f32.mrb[0].mxu0
        %v1810 = vadd.f32 0.0, %v1809
        %v1811 = vpop.f32.mrb[0].mxu0
        %v1812 = vpop.f32.mrb[0].mxu0
        %v1813 = vpop.f32.mrb[0].mxu0
        %1814 = vdwg.mxu0
        %v1816 = vsel %vm1680, %v1727, 0
        %1818 = vmatprep.subr.bf16.mxu0 0
        %1819 = vmatpush1.bf16.msra.mxu0 %v532
        %1820 = vmatprep.subr.bf16.mxu0 0
        %1821 = vmatpush1.bf16.msra.mxu0 0
        %1822 = vmatprep.subr.bf16.mxu0 0
        %1823 = vmatpush1.bf16.msra.mxu0 0
        %1824 = vmatprep.subr.bf16.mxu0 0
        %1825 = vmatpush1.bf16.msra.mxu0 0
        %1826 = vmatprep.subr.bf16.mxu0 0
        %1827 = vmatpush1.bf16.msra.mxu0 0
        %1828 = vmatprep.subr.bf16.mxu0 0
        %1829 = vmatpush1.bf16.msra.mxu0 0
        %1830 = vmatprep.subr.bf16.mxu0 0
        %1831 = vmatpush1.bf16.msra.mxu0 0
        %1832 = vmatprep.subr.bf16.mxu0 0
        %1833 = vmatpush1.bf16.msra.mxu0 0
        %1834 = vmatprep.subr.bf16.mxu0 0
        %1835 = vmatpush1.bf16.msra.mxu0 0
        %1836 = vmatprep.subr.bf16.mxu0 0
        %1837 = vmatpush1.bf16.msra.mxu0 0
        %1838 = vmatprep.subr.bf16.mxu0 0
        %1839 = vmatpush1.bf16.msra.mxu0 0
        %1840 = vmatprep.subr.bf16.mxu0 0
        %1841 = vmatpush1.bf16.msra.mxu0 0
        %1842 = vmatprep.subr.bf16.mxu0 0
        %1843 = vmatpush1.bf16.msra.mxu0 0
        %1844 = vmatprep.subr.bf16.mxu0 0
        %1845 = vmatpush1.bf16.msra.mxu0 0
        %1846 = vmatprep.subr.bf16.mxu0 0
        %1847 = vmatpush1.bf16.msra.mxu0 0
        %1848 = vmatprep.subr.bf16.mxu0 0
        %1849 = vmatpush1.bf16.msra.mxu0 0
        %1850 = vmatprep.mubr.bf16.mxu0 0
        %1851 = vmatmul.mubr.bf16.gmra.mrb[0].mxu0 %v1816
        %v1852 = vpop.f32.mrb[0].mxu0
        %v1853 = vadd.f32 0.0, %v1852
        %v1854 = vpop.f32.mrb[0].mxu0
        %v1855 = vpop.f32.mrb[0].mxu0
        %v1856 = vpop.f32.mrb[0].mxu0
        %1857 = vdwg.mxu0
        %v1859 = vsel %vm1680, %v1728, 0
        %1861 = vmatprep.subr.bf16.mxu0 0
        %1862 = vmatpush1.bf16.msra.mxu0 %v535
        %1863 = vmatprep.subr.bf16.mxu0 0
        %1864 = vmatpush1.bf16.msra.mxu0 0
        %1865 = vmatprep.subr.bf16.mxu0 0
        %1866 = vmatpush1.bf16.msra.mxu0 0
        %1867 = vmatprep.subr.bf16.mxu0 0
        %1868 = vmatpush1.bf16.msra.mxu0 0
        %1869 = vmatprep.subr.bf16.mxu0 0
        %1870 = vmatpush1.bf16.msra.mxu0 0
        %1871 = vmatprep.subr.bf16.mxu0 0
        %1872 = vmatpush1.bf16.msra.mxu0 0
        %1873 = vmatprep.subr.bf16.mxu0 0
        %1874 = vmatpush1.bf16.msra.mxu0 0
        %1875 = vmatprep.subr.bf16.mxu0 0
        %1876 = vmatpush1.bf16.msra.mxu0 0
        %1877 = vmatprep.subr.bf16.mxu0 0
        %1878 = vmatpush1.bf16.msra.mxu0 0
        %1879 = vmatprep.subr.bf16.mxu0 0
        %1880 = vmatpush1.bf16.msra.mxu0 0
        %1881 = vmatprep.subr.bf16.mxu0 0
        %1882 = vmatpush1.bf16.msra.mxu0 0
        %1883 = vmatprep.subr.bf16.mxu0 0
        %1884 = vmatpush1.bf16.msra.mxu0 0
        %1885 = vmatprep.subr.bf16.mxu0 0
        %1886 = vmatpush1.bf16.msra.mxu0 0
        %1887 = vmatprep.subr.bf16.mxu0 0
        %1888 = vmatpush1.bf16.msra.mxu0 0
        %1889 = vmatprep.subr.bf16.mxu0 0
        %1890 = vmatpush1.bf16.msra.mxu0 0
        %1891 = vmatprep.subr.bf16.mxu0 0
        %1892 = vmatpush1.bf16.msra.mxu0 0
        %1893 = vmatprep.mubr.bf16.mxu0 0
        %1894 = vmatmul.mubr.bf16.gmra.mrb[0].mxu0 %v1859
        %v1895 = vpop.f32.mrb[0].mxu0
        %v1896 = vadd.f32 0.0, %v1895
        %v1897 = vpop.f32.mrb[0].mxu0
        %v1898 = vpop.f32.mrb[0].mxu0
        %v1899 = vpop.f32.mrb[0].mxu0
        %1900 = vdwg.mxu0
        %1902 = vrot.lane.b32.xlu0 %v1810, 32
        %v1903 = vpop.permute.xlu0 %1902
        %1906 = vrot.lane.b32.xlu0 %v1853, 64
        %v1907 = vpop.permute.xlu0 %1906
        %1910 = vrot.lane.b32.xlu0 %v1896, 96
        %v1911 = vpop.permute.xlu0 %1910
        %v1913 = vsel %vm822, %v1767, %v1903
        %v1914 = vsel %vm1254, %v1913, %v1907
        %v1915 = vsel %vm1256, %v1914, %v1911
        %v1916 = vld [vmem:[#allocation8 + $0x1c] sm:$0xf]
        %v1917 = vld [vmem:[#allocation8 + $0x44] sm:$0xf]
        %v1918 = vld [vmem:[#allocation8 + $0x6c] sm:$0xf]
        %v1919 = vld [vmem:[#allocation8 + $0x94] sm:$0xf]
        %v1920 = vld [vmem:[#allocation8 + $0xbc] sm:$0xf]
        %v1921 = vld [vmem:[#allocation8 + $0xe4] sm:$0xf]
        %v1922 = vld [vmem:[#allocation8 + $0x10c] sm:$0xf]
        %v1923 = vld [vmem:[#allocation8 + $0x134] sm:$0xf]
        %v1924 = vld [vmem:[#allocation8 + $0x15c] sm:$0xf]
        %v1925 = vld [vmem:[#allocation8 + $0x184] sm:$0xf]
        %v1926 = vld [vmem:[#allocation8 + $0x1ac] sm:$0xf]
        %v1927 = vld [vmem:[#allocation8 + $0x1d4] sm:$0xf]
        %v1928 = vld [vmem:[#allocation8 + $0x1fc] sm:$0xf]
        %v1929 = vld [vmem:[#allocation8 + $0x224] sm:$0xf]
        %v1930 = vld [vmem:[#allocation8 + $0x24c] sm:$0xf]
        %v1931 = vld [vmem:[#allocation8 + $0x274] sm:$0xf]
        %v1932 = vld [vmem:[#allocation11 + $0x6] ss:$0 sm:$0xff]
        %v1933 = vpack.c.bf16 %v1915, %v1915
        %v1950 = vunpack.c.l.b16 %v1916
        %v1951 = vunpack.c.l.b16 %v1917
        %v1952 = vunpack.c.l.b16 %v1918
        %v1953 = vunpack.c.l.b16 %v1919
        %v1954 = vunpack.c.l.b16 %v1920
        %v1955 = vunpack.c.l.b16 %v1921
        %v1956 = vunpack.c.l.b16 %v1922
        %v1957 = vunpack.c.l.b16 %v1923
        %v1958 = vunpack.c.l.b16 %v1924
        %v1959 = vunpack.c.l.b16 %v1925
        %v1960 = vunpack.c.l.b16 %v1926
        %v1961 = vunpack.c.l.b16 %v1927
        %v1962 = vunpack.c.l.b16 %v1928
        %v1963 = vunpack.c.l.b16 %v1929
        %v1964 = vunpack.c.l.b16 %v1930
        %v1965 = vunpack.c.l.b16 %v1931
        %v1966 = vpack.c.b16 %v1951, %v1950
        %v1967 = vpack.c.b16 %v1953, %v1952
        %v1968 = vpack.c.b16 %v1955, %v1954
        %v1969 = vpack.c.b16 %v1957, %v1956
        %v1970 = vpack.c.b16 %v1959, %v1958
        %v1971 = vpack.c.b16 %v1961, %v1960
        %v1972 = vpack.c.b16 %v1963, %v1962
        %v1973 = vpack.c.b16 %v1965, %v1964
        %1982 = vmatprep.subr.bf16.mxu0 0
        %1983 = vmatpush1.bf16.msra.mxu0 %v1966
        %1984 = vmatprep.subr.bf16.mxu0 0
        %1985 = vmatpush1.bf16.msra.mxu0 %v1967
        %1986 = vmatprep.subr.bf16.mxu0 0
        %1987 = vmatpush1.bf16.msra.mxu0 %v1968
        %1988 = vmatprep.subr.bf16.mxu0 0
        %1989 = vmatpush1.bf16.msra.mxu0 %v1969
        %1990 = vmatprep.subr.bf16.mxu0 0
        %1991 = vmatpush1.bf16.msra.mxu0 %v1970
        %1992 = vmatprep.subr.bf16.mxu0 0
        %1993 = vmatpush1.bf16.msra.mxu0 %v1971
        %1994 = vmatprep.subr.bf16.mxu0 0
        %1995 = vmatpush1.bf16.msra.mxu0 %v1972
        %1996 = vmatprep.subr.bf16.mxu0 0
        %1997 = vmatpush1.bf16.msra.mxu0 %v1973
        %1998 = vmatprep.subr.bf16.mxu0 0
        %1999 = vmatpush1.bf16.msra.mxu0 0
        %2000 = vmatprep.subr.bf16.mxu0 0
        %2001 = vmatpush1.bf16.msra.mxu0 0
        %2002 = vmatprep.subr.bf16.mxu0 0
        %2003 = vmatpush1.bf16.msra.mxu0 0
        %2004 = vmatprep.subr.bf16.mxu0 0
        %2005 = vmatpush1.bf16.msra.mxu0 0
        %2006 = vmatprep.subr.bf16.mxu0 0
        %2007 = vmatpush1.bf16.msra.mxu0 0
        %2008 = vmatprep.subr.bf16.mxu0 0
        %2009 = vmatpush1.bf16.msra.mxu0 0
        %2010 = vmatprep.subr.bf16.mxu0 0
        %2011 = vmatpush1.bf16.msra.mxu0 0
        %2012 = vmatprep.subr.bf16.mxu0 0
        %2013 = vmatpush1.bf16.msra.mxu0 0
        %2014 = vmatprep.mubr.bf16.mxu0 0
        %2015 = vmatmul.mubr.bf16.gmra.mrb[0].mxu0 %v1933
        %v2016 = vpop.f32.mrb[0].mxu0
        %v2017 = vadd.f32 %v1932, %v2016
        %v2018 = vpop.f32.mrb[0].mxu0
        %v2019 = vpop.f32.mrb[0].mxu0
        %v2020 = vpop.f32.mrb[0].mxu0
        %2021 = vdwg.mxu0
        %v2022 = vadd.f32 %v1380, %v2017
        %v2023 = vld [vmem:[#allocation11 + $0x7] ss:$0 sm:$0xff]
        %v2024 = vld [vmem:[#allocation11 + $0x18] ss:$0 sm:$0xff]
        %2025 = vadd.xlane.f32.xlu0 %v2022
        %v2026 = vpop.xlane.xlu0 %2025
        %v2027 = vmul.f32 %v2026, %v1369
        %v2028 = vsub.f32 %v2022, %v2027
        %v2029 = vmul.f32 %v2028, %v2028
        %2030 = vadd.xlane.f32.xlu0 %v2029
        %v2031 = vpop.xlane.xlu0 %2030
        %v2032 = vmul.f32 %v2031, %v1369
        %v2033 = vadd.f32 %v2032, 1e-05
        %v2034 = vrsqrt.pop %v2033
        %v2035 = vmul.f32 %v2028, %v2034
        %v2036 = vmul.f32 %v2035, %v2023
        %v2037 = vadd.f32 %v2036, %v2024
        %v2038 = vld [vmem:[#allocation8 + $0x20] sm:$0xff]
        %v2039 = vld [vmem:[#allocation8 + $0x48] sm:$0xff]
        %v2040 = vld [vmem:[#allocation8 + $0x70] sm:$0xff]
        %v2041 = vld [vmem:[#allocation8 + $0x98] sm:$0xff]
        %v2042 = vld [vmem:[#allocation8 + $0xc0] sm:$0xff]
        %v2043 = vld [vmem:[#allocation8 + $0xe8] sm:$0xff]
        %v2044 = vld [vmem:[#allocation8 + $0x110] sm:$0xff]
        %v2045 = vld [vmem:[#allocation8 + $0x138] sm:$0xff]
        %v2046 = vld [vmem:[#allocation8 + $0x160] sm:$0xff]
        %v2047 = vld [vmem:[#allocation8 + $0x188] sm:$0xff]
        %v2048 = vld [vmem:[#allocation8 + $0x1b0] sm:$0xff]
        %v2049 = vld [vmem:[#allocation8 + $0x1d8] sm:$0xff]
        %v2050 = vld [vmem:[#allocation8 + $0x200] sm:$0xff]
        %v2051 = vld [vmem:[#allocation8 + $0x228] sm:$0xff]
        %v2052 = vld [vmem:[#allocation8 + $0x250] sm:$0xff]
        %v2053 = vld [vmem:[#allocation8 + $0x278] sm:$0xff]
        %s2054 = scalar_lea.vmem [#allocation11], 25
        %v2055 = vld [vmem:[%s2054] ss:$8 sm:$0x3]
        %v2056 = vpack.c.bf16 %v2037, %v2037
        %v2058 = vlaneseq
        %v2059 = vshrl.u32 %v2058, 7
        %v2060 = vsub.s32 0, %v2059
        %v2061 = vrot.slane %v2055, %v2060
        %v2062 = vlaneseq
        %v2063 = vshrl.u32 %v2062, 7
        %v2064 = vsub.s32 1, %v2063
        %v2065 = vrot.slane %v2055, %v2064
        %v2084 = vunpack.c.l.b16 %v2038
        %v2085 = vunpack.c.h.b16 %v2038
        %v2086 = vunpack.c.l.b16 %v2039
        %v2087 = vunpack.c.h.b16 %v2039
        %v2088 = vunpack.c.l.b16 %v2040
        %v2089 = vunpack.c.h.b16 %v2040
        %v2090 = vunpack.c.l.b16 %v2041
        %v2091 = vunpack.c.h.b16 %v2041
        %v2092 = vunpack.c.l.b16 %v2042
        %v2093 = vunpack.c.h.b16 %v2042
        %v2094 = vunpack.c.l.b16 %v2043
        %v2095 = vunpack.c.h.b16 %v2043
        %v2096 = vunpack.c.l.b16 %v2044
        %v2097 = vunpack.c.h.b16 %v2044
        %v2098 = vunpack.c.l.b16 %v2045
        %v2099 = vunpack.c.h.b16 %v2045
        %v2100 = vunpack.c.l.b16 %v2046
        %v2101 = vunpack.c.h.b16 %v2046
        %v2102 = vunpack.c.l.b16 %v2047
        %v2103 = vunpack.c.h.b16 %v2047
        %v2104 = vunpack.c.l.b16 %v2048
        %v2105 = vunpack.c.h.b16 %v2048
        %v2106 = vunpack.c.l.b16 %v2049
        %v2107 = vunpack.c.h.b16 %v2049
        %v2108 = vunpack.c.l.b16 %v2050
        %v2109 = vunpack.c.h.b16 %v2050
        %v2110 = vunpack.c.l.b16 %v2051
        %v2111 = vunpack.c.h.b16 %v2051
        %v2112 = vunpack.c.l.b16 %v2052
        %v2113 = vunpack.c.h.b16 %v2052
        %v2114 = vunpack.c.l.b16 %v2053
        %v2115 = vunpack.c.h.b16 %v2053
        %v2116 = vpack.c.b16 %v2086, %v2084
        %v2117 = vpack.c.b16 %v2087, %v2085
        %v2118 = vpack.c.b16 %v2090, %v2088
        %v2119 = vpack.c.b16 %v2091, %v2089
        %v2120 = vpack.c.b16 %v2094, %v2092
        %v2121 = vpack.c.b16 %v2095, %v2093
        %v2122 = vpack.c.b16 %v2098, %v2096
        %v2123 = vpack.c.b16 %v2099, %v2097
        %v2124 = vpack.c.b16 %v2102, %v2100
        %v2125 = vpack.c.b16 %v2103, %v2101
        %v2126 = vpack.c.b16 %v2106, %v2104
        %v2127 = vpack.c.b16 %v2107, %v2105
        %v2128 = vpack.c.b16 %v2110, %v2108
        %v2129 = vpack.c.b16 %v2111, %v2109
        %v2130 = vpack.c.b16 %v2114, %v2112
        %v2131 = vpack.c.b16 %v2115, %v2113
        %2148 = vmatprep.subr.bf16.mxu0 %v2117
        %2149 = vmatpush1.bf16.msra.mxu0 %v2116
        %2150 = vmatprep.subr.bf16.mxu0 %v2119
        %2151 = vmatpush1.bf16.msra.mxu0 %v2118
        %2152 = vmatprep.subr.bf16.mxu0 %v2121
        %2153 = vmatpush1.bf16.msra.mxu0 %v2120
        %2154 = vmatprep.subr.bf16.mxu0 %v2123
        %2155 = vmatpush1.bf16.msra.mxu0 %v2122
        %2156 = vmatprep.subr.bf16.mxu0 %v2125
        %2157 = vmatpush1.bf16.msra.mxu0 %v2124
        %2158 = vmatprep.subr.bf16.mxu0 %v2127
        %2159 = vmatpush1.bf16.msra.mxu0 %v2126
        %2160 = vmatprep.subr.bf16.mxu0 %v2129
        %2161 = vmatpush1.bf16.msra.mxu0 %v2128
        %2162 = vmatprep.subr.bf16.mxu0 %v2131
        %2163 = vmatpush1.bf16.msra.mxu0 %v2130
        %2164 = vmatprep.subr.bf16.mxu0 0
        %2165 = vmatpush1.bf16.msra.mxu0 0
        %2166 = vmatprep.subr.bf16.mxu0 0
        %2167 = vmatpush1.bf16.msra.mxu0 0
        %2168 = vmatprep.subr.bf16.mxu0 0
        %2169 = vmatpush1.bf16.msra.mxu0 0
        %2170 = vmatprep.subr.bf16.mxu0 0
        %2171 = vmatpush1.bf16.msra.mxu0 0
        %2172 = vmatprep.subr.bf16.mxu0 0
        %2173 = vmatpush1.bf16.msra.mxu0 0
        %2174 = vmatprep.subr.bf16.mxu0 0
        %2175 = vmatpush1.bf16.msra.mxu0 0
        %2176 = vmatprep.subr.bf16.mxu0 0
        %2177 = vmatpush1.bf16.msra.mxu0 0
        %2178 = vmatprep.subr.bf16.mxu0 0
        %2179 = vmatpush1.bf16.msra.mxu0 0
        %2180 = vmatprep.mubr.bf16.mxu0 0
        %2181 = vmatmul.mubr.bf16.gmra.mrb[0].mxu0 %v2056
        %v2182 = vpop.f32.mrb[0].mxu0
        %v2183 = vadd.f32 %v2061, %v2182
        %v2184 = vpop.f32.mrb[0].mxu0
        %v2185 = vadd.f32 %v2065, %v2184
        %v2186 = vpop.f32.mrb[0].mxu0
        %v2187 = vpop.f32.mrb[0].mxu0
        %2188 = vdwg.mxu0
        %v2189 = vmax.f32 %v2183, 0.0
        %v2190 = vmax.f32 %v2185, 0.0
        %v2191 = vld [vmem:[#allocation10] sm:$0xf]
        %v2192 = vld [vmem:[#allocation10 + $0x4] sm:$0xf]
        %v2193 = vld [vmem:[#allocation10 + $0x8] sm:$0xf]
        %v2194 = vld [vmem:[#allocation10 + $0xc] sm:$0xf]
        %v2195 = vld [vmem:[#allocation10 + $0x10] sm:$0xf]
        %v2196 = vld [vmem:[#allocation10 + $0x14] sm:$0xf]
        %v2197 = vld [vmem:[#allocation10 + $0x18] sm:$0xf]
        %v2198 = vld [vmem:[#allocation10 + $0x1c] sm:$0xf]
        %v2199 = vld [vmem:[#allocation10 + $0x20] sm:$0xf]
        %v2200 = vld [vmem:[#allocation10 + $0x24] sm:$0xf]
        %v2201 = vld [vmem:[#allocation10 + $0x28] sm:$0xf]
        %v2202 = vld [vmem:[#allocation10 + $0x2c] sm:$0xf]
        %v2203 = vld [vmem:[#allocation10 + $0x30] sm:$0xf]
        %v2204 = vld [vmem:[#allocation10 + $0x34] sm:$0xf]
        %v2205 = vld [vmem:[#allocation10 + $0x38] sm:$0xf]
        %v2206 = vld [vmem:[#allocation10 + $0x3c] sm:$0xf]
        %v2207 = vld [vmem:[#allocation10 + $0x40] sm:$0xf]
        %v2208 = vld [vmem:[#allocation10 + $0x44] sm:$0xf]
        %v2209 = vld [vmem:[#allocation10 + $0x48] sm:$0xf]
        %v2210 = vld [vmem:[#allocation10 + $0x4c] sm:$0xf]
        %v2211 = vld [vmem:[#allocation10 + $0x50] sm:$0xf]
        %v2212 = vld [vmem:[#allocation10 + $0x54] sm:$0xf]
        %v2213 = vld [vmem:[#allocation10 + $0x58] sm:$0xf]
        %v2214 = vld [vmem:[#allocation10 + $0x5c] sm:$0xf]
        %v2215 = vld [vmem:[#allocation10 + $0x60] sm:$0xf]
        %v2216 = vld [vmem:[#allocation10 + $0x64] sm:$0xf]
        %v2217 = vld [vmem:[#allocation10 + $0x68] sm:$0xf]
        %v2218 = vld [vmem:[#allocation10 + $0x6c] sm:$0xf]
        %v2219 = vld [vmem:[#allocation10 + $0x70] sm:$0xf]
        %v2220 = vld [vmem:[#allocation10 + $0x74] sm:$0xf]
        %v2221 = vld [vmem:[#allocation10 + $0x78] sm:$0xf]
        %v2222 = vld [vmem:[#allocation10 + $0x7c] sm:$0xf]
        %v2223 = vld [vmem:[#allocation11 + $0x1a] ss:$0 sm:$0xff]
        %v2224 = vpack.c.bf16 %v2189, %v2189
        %v2225 = vpack.c.bf16 %v2190, %v2190
        %v2258 = vunpack.c.l.b16 %v2191
        %v2259 = vunpack.c.l.b16 %v2192
        %v2260 = vunpack.c.l.b16 %v2193
        %v2261 = vunpack.c.l.b16 %v2194
        %v2262 = vunpack.c.l.b16 %v2195
        %v2263 = vunpack.c.l.b16 %v2196
        %v2264 = vunpack.c.l.b16 %v2197
        %v2265 = vunpack.c.l.b16 %v2198
        %v2266 = vunpack.c.l.b16 %v2199
        %v2267 = vunpack.c.l.b16 %v2200
        %v2268 = vunpack.c.l.b16 %v2201
        %v2269 = vunpack.c.l.b16 %v2202
        %v2270 = vunpack.c.l.b16 %v2203
        %v2271 = vunpack.c.l.b16 %v2204
        %v2272 = vunpack.c.l.b16 %v2205
        %v2273 = vunpack.c.l.b16 %v2206
        %v2274 = vunpack.c.l.b16 %v2207
        %v2275 = vunpack.c.l.b16 %v2208
        %v2276 = vunpack.c.l.b16 %v2209
        %v2277 = vunpack.c.l.b16 %v2210
        %v2278 = vunpack.c.l.b16 %v2211
        %v2279 = vunpack.c.l.b16 %v2212
        %v2280 = vunpack.c.l.b16 %v2213
        %v2281 = vunpack.c.l.b16 %v2214
        %v2282 = vunpack.c.l.b16 %v2215
        %v2283 = vunpack.c.l.b16 %v2216
        %v2284 = vunpack.c.l.b16 %v2217
        %v2285 = vunpack.c.l.b16 %v2218
        %v2286 = vunpack.c.l.b16 %v2219
        %v2287 = vunpack.c.l.b16 %v2220
        %v2288 = vunpack.c.l.b16 %v2221
        %v2289 = vunpack.c.l.b16 %v2222
        %v2290 = vpack.c.b16 %v2259, %v2258
        %v2291 = vpack.c.b16 %v2261, %v2260
        %v2292 = vpack.c.b16 %v2263, %v2262
        %v2293 = vpack.c.b16 %v2265, %v2264
        %v2294 = vpack.c.b16 %v2267, %v2266
        %v2295 = vpack.c.b16 %v2269, %v2268
        %v2296 = vpack.c.b16 %v2271, %v2270
        %v2297 = vpack.c.b16 %v2273, %v2272
        %v2298 = vpack.c.b16 %v2275, %v2274
        %v2299 = vpack.c.b16 %v2277, %v2276
        %v2300 = vpack.c.b16 %v2279, %v2278
        %v2301 = vpack.c.b16 %v2281, %v2280
        %v2302 = vpack.c.b16 %v2283, %v2282
        %v2303 = vpack.c.b16 %v2285, %v2284
        %v2304 = vpack.c.b16 %v2287, %v2286
        %v2305 = vpack.c.b16 %v2289, %v2288
        %2322 = vmatprep.subr.bf16.mxu0 0
        %2323 = vmatpush1.bf16.msra.mxu0 %v2290
        %2324 = vmatprep.subr.bf16.mxu0 0
        %2325 = vmatpush1.bf16.msra.mxu0 %v2291
        %2326 = vmatprep.subr.bf16.mxu0 0
        %2327 = vmatpush1.bf16.msra.mxu0 %v2292
        %2328 = vmatprep.subr.bf16.mxu0 0
        %2329 = vmatpush1.bf16.msra.mxu0 %v2293
        %2330 = vmatprep.subr.bf16.mxu0 0
        %2331 = vmatpush1.bf16.msra.mxu0 %v2294
        %2332 = vmatprep.subr.bf16.mxu0 0
        %2333 = vmatpush1.bf16.msra.mxu0 %v2295
        %2334 = vmatprep.subr.bf16.mxu0 0
        %2335 = vmatpush1.bf16.msra.mxu0 %v2296
        %2336 = vmatprep.subr.bf16.mxu0 0
        %2337 = vmatpush1.bf16.msra.mxu0 %v2297
        %2338 = vmatprep.subr.bf16.mxu0 0
        %2339 = vmatpush1.bf16.msra.mxu0 %v2298
        %2340 = vmatprep.subr.bf16.mxu0 0
        %2341 = vmatpush1.bf16.msra.mxu0 %v2299
        %2342 = vmatprep.subr.bf16.mxu0 0
        %2343 = vmatpush1.bf16.msra.mxu0 %v2300
        %2344 = vmatprep.subr.bf16.mxu0 0
        %2345 = vmatpush1.bf16.msra.mxu0 %v2301
        %2346 = vmatprep.subr.bf16.mxu0 0
        %2347 = vmatpush1.bf16.msra.mxu0 %v2302
        %2348 = vmatprep.subr.bf16.mxu0 0
        %2349 = vmatpush1.bf16.msra.mxu0 %v2303
        %2350 = vmatprep.subr.bf16.mxu0 0
        %2351 = vmatpush1.bf16.msra.mxu0 %v2304
        %2352 = vmatprep.subr.bf16.mxu0 0
        %2353 = vmatpush1.bf16.msra.mxu0 %v2305
        %2354 = vmatprep.mubr.bf16.mxu0 %v2225
        %2355 = vmatmul.mubr.bf16.gmra.mrb[0].mxu0 %v2224
        %v2356 = vpop.f32.mrb[0].mxu0
        %v2357 = vadd.f32 %v2223, %v2356
        %v2358 = vpop.f32.mrb[0].mxu0
        %v2359 = vpop.f32.mrb[0].mxu0
        %v2360 = vpop.f32.mrb[0].mxu0
        %2361 = vdwg.mxu0
        %v2362 = vadd.f32 %v2037, %v2357
        %v2363 = vld [vmem:[#allocation11 + $0x1b] ss:$0 sm:$0xff]
        %v2364 = vld [vmem:[#allocation11 + $0x1c] ss:$0 sm:$0xff]
        %2365 = vadd.xlane.f32.xlu0 %v2362
        %v2366 = vpop.xlane.xlu0 %2365
        %v2367 = vmul.f32 %v2366, %v1369
        %v2368 = vsub.f32 %v2362, %v2367
        %v2369 = vmul.f32 %v2368, %v2368
        %2370 = vadd.xlane.f32.xlu0 %v2369
        %v2371 = vpop.xlane.xlu0 %2370
        %v2372 = vmul.f32 %v2371, %v1369
        %v2373 = vadd.f32 %v2372, 1e-05
        %v2374 = vrsqrt.pop %v2373
        %v2375 = vmul.f32 %v2368, %v2374
        %v2376 = vmul.f32 %v2375, %v2363
        %v2377 = vadd.f32 %v2376, %v2364
        %v2378 = vld [vmem:[#allocation8] sm:$0xff]
        %v2379 = vld [vmem:[#allocation8 + $0x8] sm:$0xf]
        %v2380 = vld [vmem:[#allocation8 + $0x28] sm:$0xff]
        %v2381 = vld [vmem:[#allocation8 + $0x30] sm:$0xf]
        %v2382 = vld [vmem:[#allocation8 + $0x50] sm:$0xff]
        %v2383 = vld [vmem:[#allocation8 + $0x58] sm:$0xf]
        %v2384 = vld [vmem:[#allocation8 + $0x78] sm:$0xff]
        %v2385 = vld [vmem:[#allocation8 + $0x80] sm:$0xf]
        %v2386 = vld [vmem:[#allocation8 + $0xa0] sm:$0xff]
        %v2387 = vld [vmem:[#allocation8 + $0xa8] sm:$0xf]
        %v2388 = vld [vmem:[#allocation8 + $0xc8] sm:$0xff]
        %v2389 = vld [vmem:[#allocation8 + $0xd0] sm:$0xf]
        %v2390 = vld [vmem:[#allocation8 + $0xf0] sm:$0xff]
        %v2391 = vld [vmem:[#allocation8 + $0xf8] sm:$0xf]
        %v2392 = vld [vmem:[#allocation8 + $0x118] sm:$0xff]
        %v2393 = vld [vmem:[#allocation8 + $0x120] sm:$0xf]
        %v2394 = vld [vmem:[#allocation8 + $0x140] sm:$0xff]
        %v2395 = vld [vmem:[#allocation8 + $0x148] sm:$0xf]
        %v2396 = vld [vmem:[#allocation8 + $0x168] sm:$0xff]
        %v2397 = vld [vmem:[#allocation8 + $0x170] sm:$0xf]
        %v2398 = vld [vmem:[#allocation8 + $0x190] sm:$0xff]
        %v2399 = vld [vmem:[#allocation8 + $0x198] sm:$0xf]
        %v2400 = vld [vmem:[#allocation8 + $0x1b8] sm:$0xff]
        %v2401 = vld [vmem:[#allocation8 + $0x1c0] sm:$0xf]
        %v2402 = vld [vmem:[#allocation8 + $0x1e0] sm:$0xff]
        %v2403 = vld [vmem:[#allocation8 + $0x1e8] sm:$0xf]
        %v2404 = vld [vmem:[#allocation8 + $0x208] sm:$0xff]
        %v2405 = vld [vmem:[#allocation8 + $0x210] sm:$0xf]
        %v2406 = vld [vmem:[#allocation8 + $0x230] sm:$0xff]
        %v2407 = vld [vmem:[#allocation8 + $0x238] sm:$0xf]
        %v2408 = vld [vmem:[#allocation8 + $0x258] sm:$0xff]
        %v2409 = vld [vmem:[#allocation8 + $0x260] sm:$0xf]
        %v2410 = vld [vmem:[#allocation11] ss:$8 sm:$0x7]
        %v2411 = vpack.c.bf16 %v2377, %v2377
        %v2413 = vlaneseq
        %v2414 = vshrl.u32 %v2413, 7
        %v2415 = vsub.s32 0, %v2414
        %v2416 = vrot.slane %v2410, %v2415
        %v2417 = vlaneseq
        %v2418 = vshrl.u32 %v2417, 7
        %v2419 = vsub.s32 1, %v2418
        %v2420 = vrot.slane %v2410, %v2419
        %v2421 = vlaneseq
        %v2422 = vshrl.u32 %v2421, 7
        %v2423 = vsub.s32 2, %v2422
        %v2424 = vrot.slane %v2410, %v2423
        %v2460 = vunpack.c.l.b16 %v2378
        %v2461 = vunpack.c.h.b16 %v2378
        %v2462 = vunpack.c.l.b16 %v2379
        %v2463 = vunpack.c.l.b16 %v2380
        %v2464 = vunpack.c.h.b16 %v2380
        %v2465 = vunpack.c.l.b16 %v2381
        %v2466 = vunpack.c.l.b16 %v2382
        %v2467 = vunpack.c.h.b16 %v2382
        %v2468 = vunpack.c.l.b16 %v2383
        %v2469 = vunpack.c.l.b16 %v2384
        %v2470 = vunpack.c.h.b16 %v2384
        %v2471 = vunpack.c.l.b16 %v2385
        %v2472 = vunpack.c.l.b16 %v2386
        %v2473 = vunpack.c.h.b16 %v2386
        %v2474 = vunpack.c.l.b16 %v2387
        %v2475 = vunpack.c.l.b16 %v2388
        %v2476 = vunpack.c.h.b16 %v2388
        %v2477 = vunpack.c.l.b16 %v2389
        %v2478 = vunpack.c.l.b16 %v2390
        %v2479 = vunpack.c.h.b16 %v2390
        %v2480 = vunpack.c.l.b16 %v2391
        %v2481 = vunpack.c.l.b16 %v2392
        %v2482 = vunpack.c.h.b16 %v2392
        %v2483 = vunpack.c.l.b16 %v2393
        %v2484 = vunpack.c.l.b16 %v2394
        %v2485 = vunpack.c.h.b16 %v2394
        %v2486 = vunpack.c.l.b16 %v2395
        %v2487 = vunpack.c.l.b16 %v2396
        %v2488 = vunpack.c.h.b16 %v2396
        %v2489 = vunpack.c.l.b16 %v2397
        %v2490 = vunpack.c.l.b16 %v2398
        %v2491 = vunpack.c.h.b16 %v2398
        %v2492 = vunpack.c.l.b16 %v2399
        %v2493 = vunpack.c.l.b16 %v2400
        %v2494 = vunpack.c.h.b16 %v2400
        %v2495 = vunpack.c.l.b16 %v2401
        %v2496 = vunpack.c.l.b16 %v2402
        %v2497 = vunpack.c.h.b16 %v2402
        %v2498 = vunpack.c.l.b16 %v2403
        %v2499 = vunpack.c.l.b16 %v2404
        %v2500 = vunpack.c.h.b16 %v2404
        %v2501 = vunpack.c.l.b16 %v2405
        %v2502 = vunpack.c.l.b16 %v2406
        %v2503 = vunpack.c.h.b16 %v2406
        %v2504 = vunpack.c.l.b16 %v2407
        %v2505 = vunpack.c.l.b16 %v2408
        %v2506 = vunpack.c.h.b16 %v2408
        %v2507 = vunpack.c.l.b16 %v2409
        %v2508 = vpack.c.b16 %v2463, %v2460
        %v2509 = vpack.c.b16 %v2464, %v2461
        %v2510 = vpack.c.b16 %v2465, %v2462
        %v2511 = vpack.c.b16 %v2469, %v2466
        %v2512 = vpack.c.b16 %v2470, %v2467
        %v2513 = vpack.c.b16 %v2471, %v2468
        %v2514 = vpack.c.b16 %v2475, %v2472
        %v2515 = vpack.c.b16 %v2476, %v2473
        %v2516 = vpack.c.b16 %v2477, %v2474
        %v2517 = vpack.c.b16 %v2481, %v2478
        %v2518 = vpack.c.b16 %v2482, %v2479
        %v2519 = vpack.c.b16 %v2483, %v2480
        %v2520 = vpack.c.b16 %v2487, %v2484
        %v2521 = vpack.c.b16 %v2488, %v2485
        %v2522 = vpack.c.b16 %v2489, %v2486
        %v2523 = vpack.c.b16 %v2493, %v2490
        %v2524 = vpack.c.b16 %v2494, %v2491
        %v2525 = vpack.c.b16 %v2495, %v2492
        %v2526 = vpack.c.b16 %v2499, %v2496
        %v2527 = vpack.c.b16 %v2500, %v2497
        %v2528 = vpack.c.b16 %v2501, %v2498
        %v2529 = vpack.c.b16 %v2505, %v2502
        %v2530 = vpack.c.b16 %v2506, %v2503
        %v2531 = vpack.c.b16 %v2507, %v2504
        %2556 = vmatprep.subr.bf16.mxu0 %v2509
        %2557 = vmatpush1.bf16.msra.mxu0 %v2508
        %2558 = vmatprep.subr.bf16.mxu0 %v2512
        %2559 = vmatpush1.bf16.msra.mxu0 %v2511
        %2560 = vmatprep.subr.bf16.mxu0 %v2515
        %2561 = vmatpush1.bf16.msra.mxu0 %v2514
        %2562 = vmatprep.subr.bf16.mxu0 %v2518
        %2563 = vmatpush1.bf16.msra.mxu0 %v2517
        %2564 = vmatprep.subr.bf16.mxu0 %v2521
        %2565 = vmatpush1.bf16.msra.mxu0 %v2520
        %2566 = vmatprep.subr.bf16.mxu0 %v2524
        %2567 = vmatpush1.bf16.msra.mxu0 %v2523
        %2568 = vmatprep.subr.bf16.mxu0 %v2527
        %2569 = vmatpush1.bf16.msra.mxu0 %v2526
        %2570 = vmatprep.subr.bf16.mxu0 %v2530
        %2571 = vmatpush1.bf16.msra.mxu0 %v2529
        %2572 = vmatprep.subr.bf16.mxu0 0
        %2573 = vmatpush1.bf16.msra.mxu0 0
        %2574 = vmatprep.subr.bf16.mxu0 0
        %2575 = vmatpush1.bf16.msra.mxu0 0
        %2576 = vmatprep.subr.bf16.mxu0 0
        %2577 = vmatpush1.bf16.msra.mxu0 0
        %2578 = vmatprep.subr.bf16.mxu0 0
        %2579 = vmatpush1.bf16.msra.mxu0 0
        %2580 = vmatprep.subr.bf16.mxu0 0
        %2581 = vmatpush1.bf16.msra.mxu0 0
        %2582 = vmatprep.subr.bf16.mxu0 0
        %2583 = vmatpush1.bf16.msra.mxu0 0
        %2584 = vmatprep.subr.bf16.mxu0 0
        %2585 = vmatpush1.bf16.msra.mxu0 0
        %2586 = vmatprep.subr.bf16.mxu0 0
        %2587 = vmatpush1.bf16.msra.mxu0 0
        %2588 = vmatprep.mubr.bf16.mxu0 0
        %2589 = vmatmul.mubr.bf16.gmra.mrb[0].mxu0 %v2411
        %v2590 = vpop.f32.mrb[0].mxu0
        %v2591 = vadd.f32 %v2416, %v2590
        %v2592 = vpop.f32.mrb[0].mxu0
        %v2593 = vadd.f32 %v2420, %v2592
        %v2594 = vpop.f32.mrb[0].mxu0
        %v2595 = vpop.f32.mrb[0].mxu0
        %2596 = vdwg.mxu0
        %2597 = vmatprep.subr.bf16.mxu0 0
        %2598 = vmatpush1.bf16.msra.mxu0 %v2510
        %2599 = vmatprep.subr.bf16.mxu0 0
        %2600 = vmatpush1.bf16.msra.mxu0 %v2513
        %2601 = vmatprep.subr.bf16.mxu0 0
        %2602 = vmatpush1.bf16.msra.mxu0 %v2516
        %2603 = vmatprep.subr.bf16.mxu0 0
        %2604 = vmatpush1.bf16.msra.mxu0 %v2519
        %2605 = vmatprep.subr.bf16.mxu0 0
        %2606 = vmatpush1.bf16.msra.mxu0 %v2522
        %2607 = vmatprep.subr.bf16.mxu0 0
        %2608 = vmatpush1.bf16.msra.mxu0 %v2525
        %2609 = vmatprep.subr.bf16.mxu0 0
        %2610 = vmatpush1.bf16.msra.mxu0 %v2528
        %2611 = vmatprep.subr.bf16.mxu0 0
        %2612 = vmatpush1.bf16.msra.mxu0 %v2531
        %2613 = vmatprep.subr.bf16.mxu0 0
        %2614 = vmatpush1.bf16.msra.mxu0 0
        %2615 = vmatprep.subr.bf16.mxu0 0
        %2616 = vmatpush1.bf16.msra.mxu0 0
        %2617 = vmatprep.subr.bf16.mxu0 0
        %2618 = vmatpush1.bf16.msra.mxu0 0
        %2619 = vmatprep.subr.bf16.mxu0 0
        %2620 = vmatpush1.bf16.msra.mxu0 0
        %2621 = vmatprep.subr.bf16.mxu0 0
        %2622 = vmatpush1.bf16.msra.mxu0 0
        %2623 = vmatprep.subr.bf16.mxu0 0
        %2624 = vmatpush1.bf16.msra.mxu0 0
        %2625 = vmatprep.subr.bf16.mxu0 0
        %2626 = vmatpush1.bf16.msra.mxu0 0
        %2627 = vmatprep.subr.bf16.mxu0 0
        %2628 = vmatpush1.bf16.msra.mxu0 0
        %2629 = vmatprep.mubr.bf16.mxu0 0
        %2630 = vmatmul.mubr.bf16.gmra.mrb[0].mxu0 %v2411
        %v2631 = vpop.f32.mrb[0].mxu0
        %v2632 = vadd.f32 %v2424, %v2631
        %v2633 = vpop.f32.mrb[0].mxu0
        %v2634 = vpop.f32.mrb[0].mxu0
        %v2635 = vpop.f32.mrb[0].mxu0
        %2636 = vdwg.mxu0
        %v2637 = vpack.c.bf16 %v2593, %v2593
        %2639 = vrot.lane.b32.xlu0 %v2637, 96
        %v2640 = vpop.permute.xlu0 %2639
        %2641 = vrot.lane.b32.xlu0 %v2637, 64
        %v2642 = vpop.permute.xlu0 %2641
        %2643 = vrot.lane.b32.xlu0 %v2637, 32
        %v2644 = vpop.permute.xlu0 %2643
        %v2645 = vpack.c.bf16 %v2632, %v2632
        %2647 = vrot.lane.b32.xlu0 %v2645, 96
        %v2648 = vpop.permute.xlu0 %2647
        %2649 = vrot.lane.b32.xlu0 %v2645, 64
        %v2650 = vpop.permute.xlu0 %2649
        %2651 = vrot.lane.b32.xlu0 %v2645, 32
        %v2652 = vpop.permute.xlu0 %2651
        %v2653 = vmul.f32 %v2591, 0.17677669
        %v2654 = vpack.c.bf16 %v2653, %v2653
        %2656 = vrot.lane.b32.xlu0 %v2654, 96
        %v2657 = vpop.permute.xlu0 %2656
        %2658 = vrot.lane.b32.xlu0 %v2654, 64
        %v2659 = vpop.permute.xlu0 %2658
        %2660 = vrot.lane.b32.xlu0 %v2654, 32
        %v2661 = vpop.permute.xlu0 %2660
        %v2663 = vsel %vm822, %v2654, 0
        %v2666 = vsel %vm822, %v2637, 0
        %2668 = vmatprep.subr.bf16.mxu0 0
        %2669 = vmatpush1.bf16.xpose.msra.mxu0 %v2666
        %2670 = vmatprep.subr.bf16.mxu0 0
        %2671 = vmatpush1.bf16.xpose.msra.mxu0 0
        %2672 = vmatprep.subr.bf16.mxu0 0
        %2673 = vmatpush1.bf16.xpose.msra.mxu0 0
        %2674 = vmatprep.subr.bf16.mxu0 0
        %2675 = vmatpush1.bf16.xpose.msra.mxu0 0
        %2676 = vmatprep.subr.bf16.mxu0 0
        %2677 = vmatpush1.bf16.xpose.msra.mxu0 0
        %2678 = vmatprep.subr.bf16.mxu0 0
        %2679 = vmatpush1.bf16.xpose.msra.mxu0 0
        %2680 = vmatprep.subr.bf16.mxu0 0
        %2681 = vmatpush1.bf16.xpose.msra.mxu0 0
        %2682 = vmatprep.subr.bf16.mxu0 0
        %2683 = vmatpush1.bf16.xpose.msra.mxu0 0
        %2684 = vmatprep.subr.bf16.mxu0 0
        %2685 = vmatpush1.bf16.xpose.msra.mxu0 0
        %2686 = vmatprep.subr.bf16.mxu0 0
        %2687 = vmatpush1.bf16.xpose.msra.mxu0 0
        %2688 = vmatprep.subr.bf16.mxu0 0
        %2689 = vmatpush1.bf16.xpose.msra.mxu0 0
        %2690 = vmatprep.subr.bf16.mxu0 0
        %2691 = vmatpush1.bf16.xpose.msra.mxu0 0
        %2692 = vmatprep.subr.bf16.mxu0 0
        %2693 = vmatpush1.bf16.xpose.msra.mxu0 0
        %2694 = vmatprep.subr.bf16.mxu0 0
        %2695 = vmatpush1.bf16.xpose.msra.mxu0 0
        %2696 = vmatprep.subr.bf16.mxu0 0
        %2697 = vmatpush1.bf16.xpose.msra.mxu0 0
        %2698 = vmatprep.subr.bf16.mxu0 0
        %2699 = vmatpush1.bf16.xpose.msra.mxu0 0
        %2700 = vmatprep.mubr.bf16.mxu0 0
        %2701 = vmatmul.mubr.bf16.gmra.mrb[0].mxu0 %v2663
        %v2702 = vpop.f32.mrb[0].mxu0
        %v2703 = vadd.f32 %v362, %v2702
        %v2704 = vpop.f32.mrb[0].mxu0
        %v2705 = vpop.f32.mrb[0].mxu0
        %v2706 = vpop.f32.mrb[0].mxu0
        %2707 = vdwg.mxu0
        %v2709 = vsel %vm822, %v2657, 0
        %v2712 = vsel %vm822, %v2640, 0
        %2714 = vmatprep.subr.bf16.mxu0 0
        %2715 = vmatpush1.bf16.xpose.msra.mxu0 %v2712
        %2716 = vmatprep.subr.bf16.mxu0 0
        %2717 = vmatpush1.bf16.xpose.msra.mxu0 0
        %2718 = vmatprep.subr.bf16.mxu0 0
        %2719 = vmatpush1.bf16.xpose.msra.mxu0 0
        %2720 = vmatprep.subr.bf16.mxu0 0
        %2721 = vmatpush1.bf16.xpose.msra.mxu0 0
        %2722 = vmatprep.subr.bf16.mxu0 0
        %2723 = vmatpush1.bf16.xpose.msra.mxu0 0
        %2724 = vmatprep.subr.bf16.mxu0 0
        %2725 = vmatpush1.bf16.xpose.msra.mxu0 0
        %2726 = vmatprep.subr.bf16.mxu0 0
        %2727 = vmatpush1.bf16.xpose.msra.mxu0 0
        %2728 = vmatprep.subr.bf16.mxu0 0
        %2729 = vmatpush1.bf16.xpose.msra.mxu0 0
        %2730 = vmatprep.subr.bf16.mxu0 0
        %2731 = vmatpush1.bf16.xpose.msra.mxu0 0
        %2732 = vmatprep.subr.bf16.mxu0 0
        %2733 = vmatpush1.bf16.xpose.msra.mxu0 0
        %2734 = vmatprep.subr.bf16.mxu0 0
        %2735 = vmatpush1.bf16.xpose.msra.mxu0 0
        %2736 = vmatprep.subr.bf16.mxu0 0
        %2737 = vmatpush1.bf16.xpose.msra.mxu0 0
        %2738 = vmatprep.subr.bf16.mxu0 0
        %2739 = vmatpush1.bf16.xpose.msra.mxu0 0
        %2740 = vmatprep.subr.bf16.mxu0 0
        %2741 = vmatpush1.bf16.xpose.msra.mxu0 0
        %2742 = vmatprep.subr.bf16.mxu0 0
        %2743 = vmatpush1.bf16.xpose.msra.mxu0 0
        %2744 = vmatprep.subr.bf16.mxu0 0
        %2745 = vmatpush1.bf16.xpose.msra.mxu0 0
        %2746 = vmatprep.mubr.bf16.mxu0 0
        %2747 = vmatmul.mubr.bf16.gmra.mrb[0].mxu0 %v2709
        %v2748 = vpop.f32.mrb[0].mxu0
        %v2749 = vadd.f32 %v362, %v2748
        %v2750 = vpop.f32.mrb[0].mxu0
        %v2751 = vpop.f32.mrb[0].mxu0
        %v2752 = vpop.f32.mrb[0].mxu0
        %2753 = vdwg.mxu0
        %v2755 = vsel %vm822, %v2659, 0
        %v2758 = vsel %vm822, %v2642, 0
        %2760 = vmatprep.subr.bf16.mxu0 0
        %2761 = vmatpush1.bf16.xpose.msra.mxu0 %v2758
        %2762 = vmatprep.subr.bf16.mxu0 0
        %2763 = vmatpush1.bf16.xpose.msra.mxu0 0
        %2764 = vmatprep.subr.bf16.mxu0 0
        %2765 = vmatpush1.bf16.xpose.msra.mxu0 0
        %2766 = vmatprep.subr.bf16.mxu0 0
        %2767 = vmatpush1.bf16.xpose.msra.mxu0 0
        %2768 = vmatprep.subr.bf16.mxu0 0
        %2769 = vmatpush1.bf16.xpose.msra.mxu0 0
        %2770 = vmatprep.subr.bf16.mxu0 0
        %2771 = vmatpush1.bf16.xpose.msra.mxu0 0
        %2772 = vmatprep.subr.bf16.mxu0 0
        %2773 = vmatpush1.bf16.xpose.msra.mxu0 0
        %2774 = vmatprep.subr.bf16.mxu0 0
        %2775 = vmatpush1.bf16.xpose.msra.mxu0 0
        %2776 = vmatprep.subr.bf16.mxu0 0
        %2777 = vmatpush1.bf16.xpose.msra.mxu0 0
        %2778 = vmatprep.subr.bf16.mxu0 0
        %2779 = vmatpush1.bf16.xpose.msra.mxu0 0
        %2780 = vmatprep.subr.bf16.mxu0 0
        %2781 = vmatpush1.bf16.xpose.msra.mxu0 0
        %2782 = vmatprep.subr.bf16.mxu0 0
        %2783 = vmatpush1.bf16.xpose.msra.mxu0 0
        %2784 = vmatprep.subr.bf16.mxu0 0
        %2785 = vmatpush1.bf16.xpose.msra.mxu0 0
        %2786 = vmatprep.subr.bf16.mxu0 0
        %2787 = vmatpush1.bf16.xpose.msra.mxu0 0
        %2788 = vmatprep.subr.bf16.mxu0 0
        %2789 = vmatpush1.bf16.xpose.msra.mxu0 0
        %2790 = vmatprep.subr.bf16.mxu0 0
        %2791 = vmatpush1.bf16.xpose.msra.mxu0 0
        %2792 = vmatprep.mubr.bf16.mxu0 0
        %2793 = vmatmul.mubr.bf16.gmra.mrb[0].mxu0 %v2755
        %v2794 = vpop.f32.mrb[0].mxu0
        %v2795 = vadd.f32 %v362, %v2794
        %v2796 = vpop.f32.mrb[0].mxu0
        %v2797 = vpop.f32.mrb[0].mxu0
        %v2798 = vpop.f32.mrb[0].mxu0
        %2799 = vdwg.mxu0
        %v2801 = vsel %vm822, %v2661, 0
        %v2804 = vsel %vm822, %v2644, 0
        %2806 = vmatprep.subr.bf16.mxu0 0
        %2807 = vmatpush1.bf16.xpose.msra.mxu0 %v2804
        %2808 = vmatprep.subr.bf16.mxu0 0
        %2809 = vmatpush1.bf16.xpose.msra.mxu0 0
        %2810 = vmatprep.subr.bf16.mxu0 0
        %2811 = vmatpush1.bf16.xpose.msra.mxu0 0
        %2812 = vmatprep.subr.bf16.mxu0 0
        %2813 = vmatpush1.bf16.xpose.msra.mxu0 0
        %2814 = vmatprep.subr.bf16.mxu0 0
        %2815 = vmatpush1.bf16.xpose.msra.mxu0 0
        %2816 = vmatprep.subr.bf16.mxu0 0
        %2817 = vmatpush1.bf16.xpose.msra.mxu0 0
        %2818 = vmatprep.subr.bf16.mxu0 0
        %2819 = vmatpush1.bf16.xpose.msra.mxu0 0
        %2820 = vmatprep.subr.bf16.mxu0 0
        %2821 = vmatpush1.bf16.xpose.msra.mxu0 0
        %2822 = vmatprep.subr.bf16.mxu0 0
        %2823 = vmatpush1.bf16.xpose.msra.mxu0 0
        %2824 = vmatprep.subr.bf16.mxu0 0
        %2825 = vmatpush1.bf16.xpose.msra.mxu0 0
        %2826 = vmatprep.subr.bf16.mxu0 0
        %2827 = vmatpush1.bf16.xpose.msra.mxu0 0
        %2828 = vmatprep.subr.bf16.mxu0 0
        %2829 = vmatpush1.bf16.xpose.msra.mxu0 0
        %2830 = vmatprep.subr.bf16.mxu0 0
        %2831 = vmatpush1.bf16.xpose.msra.mxu0 0
        %2832 = vmatprep.subr.bf16.mxu0 0
        %2833 = vmatpush1.bf16.xpose.msra.mxu0 0
        %2834 = vmatprep.subr.bf16.mxu0 0
        %2835 = vmatpush1.bf16.xpose.msra.mxu0 0
        %2836 = vmatprep.subr.bf16.mxu0 0
        %2837 = vmatpush1.bf16.xpose.msra.mxu0 0
        %2838 = vmatprep.mubr.bf16.mxu0 0
        %2839 = vmatmul.mubr.bf16.gmra.mrb[0].mxu0 %v2801
        %v2840 = vpop.f32.mrb[0].mxu0
        %v2841 = vadd.f32 %v362, %v2840
        %v2842 = vpop.f32.mrb[0].mxu0
        %v2843 = vpop.f32.mrb[0].mxu0
        %v2844 = vpop.f32.mrb[0].mxu0
        %2845 = vdwg.mxu0
        %v2846 = vsel %vm1007, %v2703, -inf
        %2847 = vmax.xlane.f32.xlu0 %v2846
        %v2848 = vpop.xlane.xlu0 %2847
        %v2849 = vsel %vm1007, %v2749, -inf
        %2850 = vmax.xlane.f32.xlu0 %v2849
        %v2851 = vpop.xlane.xlu0 %2850
        %v2852 = vsel %vm1007, %v2795, -inf
        %2853 = vmax.xlane.f32.xlu0 %v2852
        %v2854 = vpop.xlane.xlu0 %2853
        %v2855 = vsel %vm1007, %v2841, -inf
        %2856 = vmax.xlane.f32.xlu0 %v2855
        %v2857 = vpop.xlane.xlu0 %2856
        %v2858 = vsub.f32 %v2703, %v2848
        %v2859 = vsub.f32 %v2749, %v2851
        %v2860 = vsub.f32 %v2795, %v2854
        %v2861 = vsub.f32 %v2841, %v2857
        %v2862 = vmul.f32 %v2858, 1.442695
        %v2863 = vpow.pop %v2862
        %v2864 = vmul.f32 %v2859, 1.442695
        %v2865 = vpow.pop %v2864
        %v2866 = vmul.f32 %v2860, 1.442695
        %v2867 = vpow.pop %v2866
        %v2868 = vmul.f32 %v2861, 1.442695
        %v2869 = vpow.pop %v2868
        %v2870 = vsel %vm1007, %v2863, 0.0
        %2871 = vadd.xlane.f32.xlu0 %v2870
        %v2872 = vpop.xlane.xlu0 %2871
        %v2873 = vsel %vm1007, %v2865, 0.0
        %2874 = vadd.xlane.f32.xlu0 %v2873
        %v2875 = vpop.xlane.xlu0 %2874
        %v2876 = vsel %vm1007, %v2867, 0.0
        %2877 = vadd.xlane.f32.xlu0 %v2876
        %v2878 = vpop.xlane.xlu0 %2877
        %v2879 = vsel %vm1007, %v2869, 0.0
        %2880 = vadd.xlane.f32.xlu0 %v2879
        %v2881 = vpop.xlane.xlu0 %2880
        %v2882 = vrcp.pop %v2872
        %v2883 = vrcp.pop %v2875
        %v2884 = vrcp.pop %v2878
        %v2885 = vrcp.pop %v2881
        %v2886 = vmul.f32 %v2863, %v2882
        %v2887 = vmul.f32 %v2865, %v2883
        %v2888 = vmul.f32 %v2867, %v2884
        %v2889 = vmul.f32 %v2869, %v2885
        %v2890 = vpack.c.bf16 %v2886, %v2886
        %v2891 = vpack.c.bf16 %v2887, %v2887
        %v2892 = vpack.c.bf16 %v2888, %v2888
        %v2893 = vpack.c.bf16 %v2889, %v2889
        %v2895 = vsel %vm1007, %v2890, 0
        %v2898 = vsel %vm1059, %v2645, 0
        %2900 = vmatprep.subr.bf16.mxu0 0
        %2901 = vmatpush1.bf16.msra.mxu0 %v2898
        %2902 = vmatprep.subr.bf16.mxu0 0
        %2903 = vmatpush1.bf16.msra.mxu0 0
        %2904 = vmatprep.subr.bf16.mxu0 0
        %2905 = vmatpush1.bf16.msra.mxu0 0
        %2906 = vmatprep.subr.bf16.mxu0 0
        %2907 = vmatpush1.bf16.msra.mxu0 0
        %2908 = vmatprep.subr.bf16.mxu0 0
        %2909 = vmatpush1.bf16.msra.mxu0 0
        %2910 = vmatprep.subr.bf16.mxu0 0
        %2911 = vmatpush1.bf16.msra.mxu0 0
        %2912 = vmatprep.subr.bf16.mxu0 0
        %2913 = vmatpush1.bf16.msra.mxu0 0
        %2914 = vmatprep.subr.bf16.mxu0 0
        %2915 = vmatpush1.bf16.msra.mxu0 0
        %2916 = vmatprep.subr.bf16.mxu0 0
        %2917 = vmatpush1.bf16.msra.mxu0 0
        %2918 = vmatprep.subr.bf16.mxu0 0
        %2919 = vmatpush1.bf16.msra.mxu0 0
        %2920 = vmatprep.subr.bf16.mxu0 0
        %2921 = vmatpush1.bf16.msra.mxu0 0
        %2922 = vmatprep.subr.bf16.mxu0 0
        %2923 = vmatpush1.bf16.msra.mxu0 0
        %2924 = vmatprep.subr.bf16.mxu0 0
        %2925 = vmatpush1.bf16.msra.mxu0 0
        %2926 = vmatprep.subr.bf16.mxu0 0
        %2927 = vmatpush1.bf16.msra.mxu0 0
        %2928 = vmatprep.subr.bf16.mxu0 0
        %2929 = vmatpush1.bf16.msra.mxu0 0
        %2930 = vmatprep.subr.bf16.mxu0 0
        %2931 = vmatpush1.bf16.msra.mxu0 0
        %2932 = vmatprep.mubr.bf16.mxu0 0
        %2933 = vmatmul.mubr.bf16.gmra.mrb[0].mxu0 %v2895
        %v2934 = vpop.f32.mrb[0].mxu0
        %v2935 = vadd.f32 0.0, %v2934
        %v2936 = vpop.f32.mrb[0].mxu0
        %v2937 = vpop.f32.mrb[0].mxu0
        %v2938 = vpop.f32.mrb[0].mxu0
        %2939 = vdwg.mxu0
        %v2941 = vsel %vm1007, %v2891, 0
        %v2944 = vsel %vm1059, %v2648, 0
        %2946 = vmatprep.subr.bf16.mxu0 0
        %2947 = vmatpush1.bf16.msra.mxu0 %v2944
        %2948 = vmatprep.subr.bf16.mxu0 0
        %2949 = vmatpush1.bf16.msra.mxu0 0
        %2950 = vmatprep.subr.bf16.mxu0 0
        %2951 = vmatpush1.bf16.msra.mxu0 0
        %2952 = vmatprep.subr.bf16.mxu0 0
        %2953 = vmatpush1.bf16.msra.mxu0 0
        %2954 = vmatprep.subr.bf16.mxu0 0
        %2955 = vmatpush1.bf16.msra.mxu0 0
        %2956 = vmatprep.subr.bf16.mxu0 0
        %2957 = vmatpush1.bf16.msra.mxu0 0
        %2958 = vmatprep.subr.bf16.mxu0 0
        %2959 = vmatpush1.bf16.msra.mxu0 0
        %2960 = vmatprep.subr.bf16.mxu0 0
        %2961 = vmatpush1.bf16.msra.mxu0 0
        %2962 = vmatprep.subr.bf16.mxu0 0
        %2963 = vmatpush1.bf16.msra.mxu0 0
        %2964 = vmatprep.subr.bf16.mxu0 0
        %2965 = vmatpush1.bf16.msra.mxu0 0
        %2966 = vmatprep.subr.bf16.mxu0 0
        %2967 = vmatpush1.bf16.msra.mxu0 0
        %2968 = vmatprep.subr.bf16.mxu0 0
        %2969 = vmatpush1.bf16.msra.mxu0 0
        %2970 = vmatprep.subr.bf16.mxu0 0
        %2971 = vmatpush1.bf16.msra.mxu0 0
        %2972 = vmatprep.subr.bf16.mxu0 0
        %2973 = vmatpush1.bf16.msra.mxu0 0
        %2974 = vmatprep.subr.bf16.mxu0 0
        %2975 = vmatpush1.bf16.msra.mxu0 0
        %2976 = vmatprep.subr.bf16.mxu0 0
        %2977 = vmatpush1.bf16.msra.mxu0 0
        %2978 = vmatprep.mubr.bf16.mxu0 0
        %2979 = vmatmul.mubr.bf16.gmra.mrb[0].mxu0 %v2941
        %v2980 = vpop.f32.mrb[0].mxu0
        %v2981 = vadd.f32 0.0, %v2980
        %v2982 = vpop.f32.mrb[0].mxu0
        %v2983 = vpop.f32.mrb[0].mxu0
        %v2984 = vpop.f32.mrb[0].mxu0
        %2985 = vdwg.mxu0
        %v2987 = vsel %vm1007, %v2892, 0
        %v2990 = vsel %vm1059, %v2650, 0
        %2992 = vmatprep.subr.bf16.mxu0 0
        %2993 = vmatpush1.bf16.msra.mxu0 %v2990
        %2994 = vmatprep.subr.bf16.mxu0 0
        %2995 = vmatpush1.bf16.msra.mxu0 0
        %2996 = vmatprep.subr.bf16.mxu0 0
        %2997 = vmatpush1.bf16.msra.mxu0 0
        %2998 = vmatprep.subr.bf16.mxu0 0
        %2999 = vmatpush1.bf16.msra.mxu0 0
        %3000 = vmatprep.subr.bf16.mxu0 0
        %3001 = vmatpush1.bf16.msra.mxu0 0
        %3002 = vmatprep.subr.bf16.mxu0 0
        %3003 = vmatpush1.bf16.msra.mxu0 0
        %3004 = vmatprep.subr.bf16.mxu0 0
        %3005 = vmatpush1.bf16.msra.mxu0 0
        %3006 = vmatprep.subr.bf16.mxu0 0
        %3007 = vmatpush1.bf16.msra.mxu0 0
        %3008 = vmatprep.subr.bf16.mxu0 0
        %3009 = vmatpush1.bf16.msra.mxu0 0
        %3010 = vmatprep.subr.bf16.mxu0 0
        %3011 = vmatpush1.bf16.msra.mxu0 0
        %3012 = vmatprep.subr.bf16.mxu0 0
        %3013 = vmatpush1.bf16.msra.mxu0 0
        %3014 = vmatprep.subr.bf16.mxu0 0
        %3015 = vmatpush1.bf16.msra.mxu0 0
        %3016 = vmatprep.subr.bf16.mxu0 0
        %3017 = vmatpush1.bf16.msra.mxu0 0
        %3018 = vmatprep.subr.bf16.mxu0 0
        %3019 = vmatpush1.bf16.msra.mxu0 0
        %3020 = vmatprep.subr.bf16.mxu0 0
        %3021 = vmatpush1.bf16.msra.mxu0 0
        %3022 = vmatprep.subr.bf16.mxu0 0
        %3023 = vmatpush1.bf16.msra.mxu0 0
        %3024 = vmatprep.mubr.bf16.mxu0 0
        %3025 = vmatmul.mubr.bf16.gmra.mrb[0].mxu0 %v2987
        %v3026 = vpop.f32.mrb[0].mxu0
        %v3027 = vadd.f32 0.0, %v3026
        %v3028 = vpop.f32.mrb[0].mxu0
        %v3029 = vpop.f32.mrb[0].mxu0
        %v3030 = vpop.f32.mrb[0].mxu0
        %3031 = vdwg.mxu0
        %v3033 = vsel %vm1007, %v2893, 0
        %v3036 = vsel %vm1059, %v2652, 0
        %3038 = vmatprep.subr.bf16.mxu0 0
        %3039 = vmatpush1.bf16.msra.mxu0 %v3036
        %3040 = vmatprep.subr.bf16.mxu0 0
        %3041 = vmatpush1.bf16.msra.mxu0 0
        %3042 = vmatprep.subr.bf16.mxu0 0
        %3043 = vmatpush1.bf16.msra.mxu0 0
        %3044 = vmatprep.subr.bf16.mxu0 0
        %3045 = vmatpush1.bf16.msra.mxu0 0
        %3046 = vmatprep.subr.bf16.mxu0 0
        %3047 = vmatpush1.bf16.msra.mxu0 0
        %3048 = vmatprep.subr.bf16.mxu0 0
        %3049 = vmatpush1.bf16.msra.mxu0 0
        %3050 = vmatprep.subr.bf16.mxu0 0
        %3051 = vmatpush1.bf16.msra.mxu0 0
        %3052 = vmatprep.subr.bf16.mxu0 0
        %3053 = vmatpush1.bf16.msra.mxu0 0
        %3054 = vmatprep.subr.bf16.mxu0 0
        %3055 = vmatpush1.bf16.msra.mxu0 0
        %3056 = vmatprep.subr.bf16.mxu0 0
        %3057 = vmatpush1.bf16.msra.mxu0 0
        %3058 = vmatprep.subr.bf16.mxu0 0
        %3059 = vmatpush1.bf16.msra.mxu0 0
        %3060 = vmatprep.subr.bf16.mxu0 0
        %3061 = vmatpush1.bf16.msra.mxu0 0
        %3062 = vmatprep.subr.bf16.mxu0 0
        %3063 = vmatpush1.bf16.msra.mxu0 0
        %3064 = vmatprep.subr.bf16.mxu0 0
        %3065 = vmatpush1.bf16.msra.mxu0 0
        %3066 = vmatprep.subr.bf16.mxu0 0
        %3067 = vmatpush1.bf16.msra.mxu0 0
        %3068 = vmatprep.subr.bf16.mxu0 0
        %3069 = vmatpush1.bf16.msra.mxu0 0
        %3070 = vmatprep.mubr.bf16.mxu0 0
        %3071 = vmatmul.mubr.bf16.gmra.mrb[0].mxu0 %v3033
        %v3072 = vpop.f32.mrb[0].mxu0
        %v3073 = vadd.f32 0.0, %v3072
        %v3074 = vpop.f32.mrb[0].mxu0
        %v3075 = vpop.f32.mrb[0].mxu0
        %v3076 = vpop.f32.mrb[0].mxu0
        %3077 = vdwg.mxu0
        %3079 = vrot.lane.b32.xlu0 %v2981, 32
        %v3080 = vpop.permute.xlu0 %3079
        %3083 = vrot.lane.b32.xlu0 %v3027, 64
        %v3084 = vpop.permute.xlu0 %3083
        %3087 = vrot.lane.b32.xlu0 %v3073, 96
        %v3088 = vpop.permute.xlu0 %3087
        %v3090 = vsel %vm822, %v2935, %v3080
        %v3091 = vsel %vm1254, %v3090, %v3084
        %v3092 = vsel %vm1256, %v3091, %v3088
        %v3093 = vld [vmem:[#allocation8 + $0xc] sm:$0xf]
        %v3094 = vld [vmem:[#allocation8 + $0x34] sm:$0xf]
        %v3095 = vld [vmem:[#allocation8 + $0x5c] sm:$0xf]
        %v3096 = vld [vmem:[#allocation8 + $0x84] sm:$0xf]
        %v3097 = vld [vmem:[#allocation8 + $0xac] sm:$0xf]
        %v3098 = vld [vmem:[#allocation8 + $0xd4] sm:$0xf]
        %v3099 = vld [vmem:[#allocation8 + $0xfc] sm:$0xf]
        %v3100 = vld [vmem:[#allocation8 + $0x124] sm:$0xf]
        %v3101 = vld [vmem:[#allocation8 + $0x14c] sm:$0xf]
        %v3102 = vld [vmem:[#allocation8 + $0x174] sm:$0xf]
        %v3103 = vld [vmem:[#allocation8 + $0x19c] sm:$0xf]
        %v3104 = vld [vmem:[#allocation8 + $0x1c4] sm:$0xf]
        %v3105 = vld [vmem:[#allocation8 + $0x1ec] sm:$0xf]
        %v3106 = vld [vmem:[#allocation8 + $0x214] sm:$0xf]
        %v3107 = vld [vmem:[#allocation8 + $0x23c] sm:$0xf]
        %v3108 = vld [vmem:[#allocation8 + $0x264] sm:$0xf]
        %v3109 = vld [vmem:[#allocation11 + $0x1] ss:$0 sm:$0xff]
        %v3110 = vpack.c.bf16 %v3092, %v3092
        %v3127 = vunpack.c.l.b16 %v3093
        %v3128 = vunpack.c.l.b16 %v3094
        %v3129 = vunpack.c.l.b16 %v3095
        %v3130 = vunpack.c.l.b16 %v3096
        %v3131 = vunpack.c.l.b16 %v3097
        %v3132 = vunpack.c.l.b16 %v3098
        %v3133 = vunpack.c.l.b16 %v3099
        %v3134 = vunpack.c.l.b16 %v3100
        %v3135 = vunpack.c.l.b16 %v3101
        %v3136 = vunpack.c.l.b16 %v3102
        %v3137 = vunpack.c.l.b16 %v3103
        %v3138 = vunpack.c.l.b16 %v3104
        %v3139 = vunpack.c.l.b16 %v3105
        %v3140 = vunpack.c.l.b16 %v3106
        %v3141 = vunpack.c.l.b16 %v3107
        %v3142 = vunpack.c.l.b16 %v3108
        %v3143 = vpack.c.b16 %v3128, %v3127
        %v3144 = vpack.c.b16 %v3130, %v3129
        %v3145 = vpack.c.b16 %v3132, %v3131
        %v3146 = vpack.c.b16 %v3134, %v3133
        %v3147 = vpack.c.b16 %v3136, %v3135
        %v3148 = vpack.c.b16 %v3138, %v3137
        %v3149 = vpack.c.b16 %v3140, %v3139
        %v3150 = vpack.c.b16 %v3142, %v3141
        %3159 = vmatprep.subr.bf16.mxu0 0
        %3160 = vmatpush1.bf16.msra.mxu0 %v3143
        %3161 = vmatprep.subr.bf16.mxu0 0
        %3162 = vmatpush1.bf16.msra.mxu0 %v3144
        %3163 = vmatprep.subr.bf16.mxu0 0
        %3164 = vmatpush1.bf16.msra.mxu0 %v3145
        %3165 = vmatprep.subr.bf16.mxu0 0
        %3166 = vmatpush1.bf16.msra.mxu0 %v3146
        %3167 = vmatprep.subr.bf16.mxu0 0
        %3168 = vmatpush1.bf16.msra.mxu0 %v3147
        %3169 = vmatprep.subr.bf16.mxu0 0
        %3170 = vmatpush1.bf16.msra.mxu0 %v3148
        %3171 = vmatprep.subr.bf16.mxu0 0
        %3172 = vmatpush1.bf16.msra.mxu0 %v3149
        %3173 = vmatprep.subr.bf16.mxu0 0
        %3174 = vmatpush1.bf16.msra.mxu0 %v3150
        %3175 = vmatprep.subr.bf16.mxu0 0
        %3176 = vmatpush1.bf16.msra.mxu0 0
        %3177 = vmatprep.subr.bf16.mxu0 0
        %3178 = vmatpush1.bf16.msra.mxu0 0
        %3179 = vmatprep.subr.bf16.mxu0 0
        %3180 = vmatpush1.bf16.msra.mxu0 0
        %3181 = vmatprep.subr.bf16.mxu0 0
        %3182 = vmatpush1.bf16.msra.mxu0 0
        %3183 = vmatprep.subr.bf16.mxu0 0
        %3184 = vmatpush1.bf16.msra.mxu0 0
        %3185 = vmatprep.subr.bf16.mxu0 0
        %3186 = vmatpush1.bf16.msra.mxu0 0
        %3187 = vmatprep.subr.bf16.mxu0 0
        %3188 = vmatpush1.bf16.msra.mxu0 0
        %3189 = vmatprep.subr.bf16.mxu0 0
        %3190 = vmatpush1.bf16.msra.mxu0 0
        %3191 = vmatprep.mubr.bf16.mxu0 0
        %3192 = vmatmul.mubr.bf16.gmra.mrb[0].mxu0 %v3110
        %v3193 = vpop.f32.mrb[0].mxu0
        %v3194 = vadd.f32 %v3109, %v3193
        %v3195 = vpop.f32.mrb[0].mxu0
        %v3196 = vpop.f32.mrb[0].mxu0
        %v3197 = vpop.f32.mrb[0].mxu0
        %3198 = vdwg.mxu0
        %v3199 = vadd.f32 %v2377, %v3194
        %v3200 = vld [vmem:[#allocation11 + $0x2] ss:$0 sm:$0xff]
        %v3201 = vld [vmem:[#allocation11 + $0x3] ss:$0 sm:$0xff]
        %3202 = vadd.xlane.f32.xlu0 %v3199
        %v3203 = vpop.xlane.xlu0 %3202
        %v3204 = vmul.f32 %v3203, %v1369
        %v3205 = vsub.f32 %v3199, %v3204
        %v3206 = vmul.f32 %v3205, %v3205
        %3207 = vadd.xlane.f32.xlu0 %v3206
        %v3208 = vpop.xlane.xlu0 %3207
        %v3209 = vmul.f32 %v3208, %v1369
        %v3210 = vadd.f32 %v3209, 1e-05
        %v3211 = vrsqrt.pop %v3210
        %v3212 = vmul.f32 %v3205, %v3211
        %v3213 = vmul.f32 %v3212, %v3200
        %v3214 = vadd.f32 %v3213, %v3201
        %v3215 = vld [vmem:[#allocation8 + $0x10] sm:$0xf]
        %v3216 = vld [vmem:[#allocation8 + $0x38] sm:$0xf]
        %v3217 = vld [vmem:[#allocation8 + $0x60] sm:$0xf]
        %v3218 = vld [vmem:[#allocation8 + $0x88] sm:$0xf]
        %v3219 = vld [vmem:[#allocation8 + $0xb0] sm:$0xf]
        %v3220 = vld [vmem:[#allocation8 + $0xd8] sm:$0xf]
        %v3221 = vld [vmem:[#allocation8 + $0x100] sm:$0xf]
        %v3222 = vld [vmem:[#allocation8 + $0x128] sm:$0xf]
        %v3223 = vld [vmem:[#allocation8 + $0x150] sm:$0xf]
        %v3224 = vld [vmem:[#allocation8 + $0x178] sm:$0xf]
        %v3225 = vld [vmem:[#allocation8 + $0x1a0] sm:$0xf]
        %v3226 = vld [vmem:[#allocation8 + $0x1c8] sm:$0xf]
        %v3227 = vld [vmem:[#allocation8 + $0x1f0] sm:$0xf]
        %v3228 = vld [vmem:[#allocation8 + $0x218] sm:$0xf]
        %v3229 = vld [vmem:[#allocation8 + $0x240] sm:$0xf]
        %v3230 = vld [vmem:[#allocation8 + $0x268] sm:$0xf]
        %v3231 = vld [vmem:[#allocation11 + $0x4] ss:$0 sm:$0xff]
        %v3232 = vpack.c.bf16 %v3214, %v3214
        %v3249 = vunpack.c.l.b16 %v3215
        %v3250 = vunpack.c.l.b16 %v3216
        %v3251 = vunpack.c.l.b16 %v3217
        %v3252 = vunpack.c.l.b16 %v3218
        %v3253 = vunpack.c.l.b16 %v3219
        %v3254 = vunpack.c.l.b16 %v3220
        %v3255 = vunpack.c.l.b16 %v3221
        %v3256 = vunpack.c.l.b16 %v3222
        %v3257 = vunpack.c.l.b16 %v3223
        %v3258 = vunpack.c.l.b16 %v3224
        %v3259 = vunpack.c.l.b16 %v3225
        %v3260 = vunpack.c.l.b16 %v3226
        %v3261 = vunpack.c.l.b16 %v3227
        %v3262 = vunpack.c.l.b16 %v3228
        %v3263 = vunpack.c.l.b16 %v3229
        %v3264 = vunpack.c.l.b16 %v3230
        %v3265 = vpack.c.b16 %v3250, %v3249
        %v3266 = vpack.c.b16 %v3252, %v3251
        %v3267 = vpack.c.b16 %v3254, %v3253
        %v3268 = vpack.c.b16 %v3256, %v3255
        %v3269 = vpack.c.b16 %v3258, %v3257
        %v3270 = vpack.c.b16 %v3260, %v3259
        %v3271 = vpack.c.b16 %v3262, %v3261
        %v3272 = vpack.c.b16 %v3264, %v3263
        %3281 = vmatprep.subr.bf16.mxu0 0
        %3282 = vmatpush1.bf16.msra.mxu0 %v3265
        %3283 = vmatprep.subr.bf16.mxu0 0
        %3284 = vmatpush1.bf16.msra.mxu0 %v3266
        %3285 = vmatprep.subr.bf16.mxu0 0
        %3286 = vmatpush1.bf16.msra.mxu0 %v3267
        %3287 = vmatprep.subr.bf16.mxu0 0
        %3288 = vmatpush1.bf16.msra.mxu0 %v3268
        %3289 = vmatprep.subr.bf16.mxu0 0
        %3290 = vmatpush1.bf16.msra.mxu0 %v3269
        %3291 = vmatprep.subr.bf16.mxu0 0
        %3292 = vmatpush1.bf16.msra.mxu0 %v3270
        %3293 = vmatprep.subr.bf16.mxu0 0
        %3294 = vmatpush1.bf16.msra.mxu0 %v3271
        %3295 = vmatprep.subr.bf16.mxu0 0
        %3296 = vmatpush1.bf16.msra.mxu0 %v3272
        %3297 = vmatprep.subr.bf16.mxu0 0
        %3298 = vmatpush1.bf16.msra.mxu0 0
        %3299 = vmatprep.subr.bf16.mxu0 0
        %3300 = vmatpush1.bf16.msra.mxu0 0
        %3301 = vmatprep.subr.bf16.mxu0 0
        %3302 = vmatpush1.bf16.msra.mxu0 0
        %3303 = vmatprep.subr.bf16.mxu0 0
        %3304 = vmatpush1.bf16.msra.mxu0 0
        %3305 = vmatprep.subr.bf16.mxu0 0
        %3306 = vmatpush1.bf16.msra.mxu0 0
        %3307 = vmatprep.subr.bf16.mxu0 0
        %3308 = vmatpush1.bf16.msra.mxu0 0
        %3309 = vmatprep.subr.bf16.mxu0 0
        %3310 = vmatpush1.bf16.msra.mxu0 0
        %3311 = vmatprep.subr.bf16.mxu0 0
        %3312 = vmatpush1.bf16.msra.mxu0 0
        %3313 = vmatprep.mubr.bf16.mxu0 0
        %3314 = vmatmul.mubr.bf16.gmra.mrb[0].mxu0 %v3232
        %v3315 = vpop.f32.mrb[0].mxu0
        %v3316 = vadd.f32 %v3231, %v3315
        %v3317 = vpop.f32.mrb[0].mxu0
        %v3318 = vpop.f32.mrb[0].mxu0
        %v3319 = vpop.f32.mrb[0].mxu0
        %3320 = vdwg.mxu0
        %v3321 = vmul.f32 %v3316, 0.17677669
        %v3322 = vpack.c.bf16 %v3321, %v3321
        %3324 = vrot.lane.b32.xlu0 %v3322, 96
        %v3325 = vpop.permute.xlu0 %3324
        %3326 = vrot.lane.b32.xlu0 %v3322, 64
        %v3327 = vpop.permute.xlu0 %3326
        %3328 = vrot.lane.b32.xlu0 %v3322, 32
        %v3329 = vpop.permute.xlu0 %3328
        %v3331 = vsel %vm822, %v3322, 0
        %3333 = vmatprep.subr.bf16.mxu0 0
        %3334 = vmatpush1.bf16.xpose.msra.mxu0 %v1500
        %3335 = vmatprep.subr.bf16.mxu0 0
        %3336 = vmatpush1.bf16.xpose.msra.mxu0 0
        %3337 = vmatprep.subr.bf16.mxu0 0
        %3338 = vmatpush1.bf16.xpose.msra.mxu0 0
        %3339 = vmatprep.subr.bf16.mxu0 0
        %3340 = vmatpush1.bf16.xpose.msra.mxu0 0
        %3341 = vmatprep.subr.bf16.mxu0 0
        %3342 = vmatpush1.bf16.xpose.msra.mxu0 0
        %3343 = vmatprep.subr.bf16.mxu0 0
        %3344 = vmatpush1.bf16.xpose.msra.mxu0 0
        %3345 = vmatprep.subr.bf16.mxu0 0
        %3346 = vmatpush1.bf16.xpose.msra.mxu0 0
        %3347 = vmatprep.subr.bf16.mxu0 0
        %3348 = vmatpush1.bf16.xpose.msra.mxu0 0
        %3349 = vmatprep.subr.bf16.mxu0 0
        %3350 = vmatpush1.bf16.xpose.msra.mxu0 0
        %3351 = vmatprep.subr.bf16.mxu0 0
        %3352 = vmatpush1.bf16.xpose.msra.mxu0 0
        %3353 = vmatprep.subr.bf16.mxu0 0
        %3354 = vmatpush1.bf16.xpose.msra.mxu0 0
        %3355 = vmatprep.subr.bf16.mxu0 0
        %3356 = vmatpush1.bf16.xpose.msra.mxu0 0
        %3357 = vmatprep.subr.bf16.mxu0 0
        %3358 = vmatpush1.bf16.xpose.msra.mxu0 0
        %3359 = vmatprep.subr.bf16.mxu0 0
        %3360 = vmatpush1.bf16.xpose.msra.mxu0 0
        %3361 = vmatprep.subr.bf16.mxu0 0
        %3362 = vmatpush1.bf16.xpose.msra.mxu0 0
        %3363 = vmatprep.subr.bf16.mxu0 0
        %3364 = vmatpush1.bf16.xpose.msra.mxu0 0
        %3365 = vmatprep.mubr.bf16.mxu0 0
        %3366 = vmatmul.mubr.bf16.gmra.mrb[0].mxu0 %v3331
        %v3367 = vpop.f32.mrb[0].mxu0
        %v3368 = vadd.f32 0.0, %v3367
        %v3369 = vpop.f32.mrb[0].mxu0
        %v3370 = vpop.f32.mrb[0].mxu0
        %v3371 = vpop.f32.mrb[0].mxu0
        %3372 = vdwg.mxu0
        %v3374 = vsel %vm822, %v3325, 0
        %3376 = vmatprep.subr.bf16.mxu0 0
        %3377 = vmatpush1.bf16.xpose.msra.mxu0 %v1546
        %3378 = vmatprep.subr.bf16.mxu0 0
        %3379 = vmatpush1.bf16.xpose.msra.mxu0 0
        %3380 = vmatprep.subr.bf16.mxu0 0
        %3381 = vmatpush1.bf16.xpose.msra.mxu0 0
        %3382 = vmatprep.subr.bf16.mxu0 0
        %3383 = vmatpush1.bf16.xpose.msra.mxu0 0
        %3384 = vmatprep.subr.bf16.mxu0 0
        %3385 = vmatpush1.bf16.xpose.msra.mxu0 0
        %3386 = vmatprep.subr.bf16.mxu0 0
        %3387 = vmatpush1.bf16.xpose.msra.mxu0 0
        %3388 = vmatprep.subr.bf16.mxu0 0
        %3389 = vmatpush1.bf16.xpose.msra.mxu0 0
        %3390 = vmatprep.subr.bf16.mxu0 0
        %3391 = vmatpush1.bf16.xpose.msra.mxu0 0
        %3392 = vmatprep.subr.bf16.mxu0 0
        %3393 = vmatpush1.bf16.xpose.msra.mxu0 0
        %3394 = vmatprep.subr.bf16.mxu0 0
        %3395 = vmatpush1.bf16.xpose.msra.mxu0 0
        %3396 = vmatprep.subr.bf16.mxu0 0
        %3397 = vmatpush1.bf16.xpose.msra.mxu0 0
        %3398 = vmatprep.subr.bf16.mxu0 0
        %3399 = vmatpush1.bf16.xpose.msra.mxu0 0
        %3400 = vmatprep.subr.bf16.mxu0 0
        %3401 = vmatpush1.bf16.xpose.msra.mxu0 0
        %3402 = vmatprep.subr.bf16.mxu0 0
        %3403 = vmatpush1.bf16.xpose.msra.mxu0 0
        %3404 = vmatprep.subr.bf16.mxu0 0
        %3405 = vmatpush1.bf16.xpose.msra.mxu0 0
        %3406 = vmatprep.subr.bf16.mxu0 0
        %3407 = vmatpush1.bf16.xpose.msra.mxu0 0
        %3408 = vmatprep.mubr.bf16.mxu0 0
        %3409 = vmatmul.mubr.bf16.gmra.mrb[0].mxu0 %v3374
        %v3410 = vpop.f32.mrb[0].mxu0
        %v3411 = vadd.f32 0.0, %v3410
        %v3412 = vpop.f32.mrb[0].mxu0
        %v3413 = vpop.f32.mrb[0].mxu0
        %v3414 = vpop.f32.mrb[0].mxu0
        %3415 = vdwg.mxu0
        %v3417 = vsel %vm822, %v3327, 0
        %3419 = vmatprep.subr.bf16.mxu0 0
        %3420 = vmatpush1.bf16.xpose.msra.mxu0 %v1592
        %3421 = vmatprep.subr.bf16.mxu0 0
        %3422 = vmatpush1.bf16.xpose.msra.mxu0 0
        %3423 = vmatprep.subr.bf16.mxu0 0
        %3424 = vmatpush1.bf16.xpose.msra.mxu0 0
        %3425 = vmatprep.subr.bf16.mxu0 0
        %3426 = vmatpush1.bf16.xpose.msra.mxu0 0
        %3427 = vmatprep.subr.bf16.mxu0 0
        %3428 = vmatpush1.bf16.xpose.msra.mxu0 0
        %3429 = vmatprep.subr.bf16.mxu0 0
        %3430 = vmatpush1.bf16.xpose.msra.mxu0 0
        %3431 = vmatprep.subr.bf16.mxu0 0
        %3432 = vmatpush1.bf16.xpose.msra.mxu0 0
        %3433 = vmatprep.subr.bf16.mxu0 0
        %3434 = vmatpush1.bf16.xpose.msra.mxu0 0
        %3435 = vmatprep.subr.bf16.mxu0 0
        %3436 = vmatpush1.bf16.xpose.msra.mxu0 0
        %3437 = vmatprep.subr.bf16.mxu0 0
        %3438 = vmatpush1.bf16.xpose.msra.mxu0 0
        %3439 = vmatprep.subr.bf16.mxu0 0
        %3440 = vmatpush1.bf16.xpose.msra.mxu0 0
        %3441 = vmatprep.subr.bf16.mxu0 0
        %3442 = vmatpush1.bf16.xpose.msra.mxu0 0
        %3443 = vmatprep.subr.bf16.mxu0 0
        %3444 = vmatpush1.bf16.xpose.msra.mxu0 0
        %3445 = vmatprep.subr.bf16.mxu0 0
        %3446 = vmatpush1.bf16.xpose.msra.mxu0 0
        %3447 = vmatprep.subr.bf16.mxu0 0
        %3448 = vmatpush1.bf16.xpose.msra.mxu0 0
        %3449 = vmatprep.subr.bf16.mxu0 0
        %3450 = vmatpush1.bf16.xpose.msra.mxu0 0
        %3451 = vmatprep.mubr.bf16.mxu0 0
        %3452 = vmatmul.mubr.bf16.gmra.mrb[0].mxu0 %v3417
        %v3453 = vpop.f32.mrb[0].mxu0
        %v3454 = vadd.f32 0.0, %v3453
        %v3455 = vpop.f32.mrb[0].mxu0
        %v3456 = vpop.f32.mrb[0].mxu0
        %v3457 = vpop.f32.mrb[0].mxu0
        %3458 = vdwg.mxu0
        %v3460 = vsel %vm822, %v3329, 0
        %3462 = vmatprep.subr.bf16.mxu0 0
        %3463 = vmatpush1.bf16.xpose.msra.mxu0 %v1638
        %3464 = vmatprep.subr.bf16.mxu0 0
        %3465 = vmatpush1.bf16.xpose.msra.mxu0 0
        %3466 = vmatprep.subr.bf16.mxu0 0
        %3467 = vmatpush1.bf16.xpose.msra.mxu0 0
        %3468 = vmatprep.subr.bf16.mxu0 0
        %3469 = vmatpush1.bf16.xpose.msra.mxu0 0
        %3470 = vmatprep.subr.bf16.mxu0 0
        %3471 = vmatpush1.bf16.xpose.msra.mxu0 0
        %3472 = vmatprep.subr.bf16.mxu0 0
        %3473 = vmatpush1.bf16.xpose.msra.mxu0 0
        %3474 = vmatprep.subr.bf16.mxu0 0
        %3475 = vmatpush1.bf16.xpose.msra.mxu0 0
        %3476 = vmatprep.subr.bf16.mxu0 0
        %3477 = vmatpush1.bf16.xpose.msra.mxu0 0
        %3478 = vmatprep.subr.bf16.mxu0 0
        %3479 = vmatpush1.bf16.xpose.msra.mxu0 0
        %3480 = vmatprep.subr.bf16.mxu0 0
        %3481 = vmatpush1.bf16.xpose.msra.mxu0 0
        %3482 = vmatprep.subr.bf16.mxu0 0
        %3483 = vmatpush1.bf16.xpose.msra.mxu0 0
        %3484 = vmatprep.subr.bf16.mxu0 0
        %3485 = vmatpush1.bf16.xpose.msra.mxu0 0
        %3486 = vmatprep.subr.bf16.mxu0 0
        %3487 = vmatpush1.bf16.xpose.msra.mxu0 0
        %3488 = vmatprep.subr.bf16.mxu0 0
        %3489 = vmatpush1.bf16.xpose.msra.mxu0 0
        %3490 = vmatprep.subr.bf16.mxu0 0
        %3491 = vmatpush1.bf16.xpose.msra.mxu0 0
        %3492 = vmatprep.subr.bf16.mxu0 0
        %3493 = vmatpush1.bf16.xpose.msra.mxu0 0
        %3494 = vmatprep.mubr.bf16.mxu0 0
        %3495 = vmatmul.mubr.bf16.gmra.mrb[0].mxu0 %v3460
        %v3496 = vpop.f32.mrb[0].mxu0
        %v3497 = vadd.f32 0.0, %v3496
        %v3498 = vpop.f32.mrb[0].mxu0
        %v3499 = vpop.f32.mrb[0].mxu0
        %v3500 = vpop.f32.mrb[0].mxu0
        %3501 = vdwg.mxu0
        %v3502 = vsel %vm1680, %v3368, -inf
        %3503 = vmax.xlane.f32.xlu0 %v3502
        %v3504 = vpop.xlane.xlu0 %3503
        %v3505 = vsel %vm1680, %v3411, -inf
        %3506 = vmax.xlane.f32.xlu0 %v3505
        %v3507 = vpop.xlane.xlu0 %3506
        %v3508 = vsel %vm1680, %v3454, -inf
        %3509 = vmax.xlane.f32.xlu0 %v3508
        %v3510 = vpop.xlane.xlu0 %3509
        %v3511 = vsel %vm1680, %v3497, -inf
        %3512 = vmax.xlane.f32.xlu0 %v3511
        %v3513 = vpop.xlane.xlu0 %3512
        %v3514 = vsub.f32 %v3368, %v3504
        %v3515 = vsub.f32 %v3411, %v3507
        %v3516 = vsub.f32 %v3454, %v3510
        %v3517 = vsub.f32 %v3497, %v3513
        %v3518 = vmul.f32 %v3514, 1.442695
        %v3519 = vpow.pop %v3518
        %v3520 = vmul.f32 %v3515, 1.442695
        %v3521 = vpow.pop %v3520
        %v3522 = vmul.f32 %v3516, 1.442695
        %v3523 = vpow.pop %v3522
        %v3524 = vmul.f32 %v3517, 1.442695
        %v3525 = vpow.pop %v3524
        %v3526 = vsel %vm1680, %v3519, 0.0
        %3527 = vadd.xlane.f32.xlu0 %v3526
        %v3528 = vpop.xlane.xlu0 %3527
        %v3529 = vsel %vm1680, %v3521, 0.0
        %3530 = vadd.xlane.f32.xlu0 %v3529
        %v3531 = vpop.xlane.xlu0 %3530
        %v3532 = vsel %vm1680, %v3523, 0.0
        %3533 = vadd.xlane.f32.xlu0 %v3532
        %v3534 = vpop.xlane.xlu0 %3533
        %v3535 = vsel %vm1680, %v3525, 0.0
        %3536 = vadd.xlane.f32.xlu0 %v3535
        %v3537 = vpop.xlane.xlu0 %3536
        %v3538 = vrcp.pop %v3528
        %v3539 = vrcp.pop %v3531
        %v3540 = vrcp.pop %v3534
        %v3541 = vrcp.pop %v3537
        %v3542 = vmul.f32 %v3519, %v3538
        %v3543 = vmul.f32 %v3521, %v3539
        %v3544 = vmul.f32 %v3523, %v3540
        %v3545 = vmul.f32 %v3525, %v3541
        %v3546 = vpack.c.bf16 %v3542, %v3542
        %v3547 = vpack.c.bf16 %v3543, %v3543
        %v3548 = vpack.c.bf16 %v3544, %v3544
        %v3549 = vpack.c.bf16 %v3545, %v3545
        %v3551 = vsel %vm1680, %v3546, 0
        %3553 = vmatprep.subr.bf16.mxu0 0
        %3554 = vmatpush1.bf16.msra.mxu0 %v526
        %3555 = vmatprep.subr.bf16.mxu0 0
        %3556 = vmatpush1.bf16.msra.mxu0 0
        %3557 = vmatprep.subr.bf16.mxu0 0
        %3558 = vmatpush1.bf16.msra.mxu0 0
        %3559 = vmatprep.subr.bf16.mxu0 0
        %3560 = vmatpush1.bf16.msra.mxu0 0
        %3561 = vmatprep.subr.bf16.mxu0 0
        %3562 = vmatpush1.bf16.msra.mxu0 0
        %3563 = vmatprep.subr.bf16.mxu0 0
        %3564 = vmatpush1.bf16.msra.mxu0 0
        %3565 = vmatprep.subr.bf16.mxu0 0
        %3566 = vmatpush1.bf16.msra.mxu0 0
        %3567 = vmatprep.subr.bf16.mxu0 0
        %3568 = vmatpush1.bf16.msra.mxu0 0
        %3569 = vmatprep.subr.bf16.mxu0 0
        %3570 = vmatpush1.bf16.msra.mxu0 0
        %3571 = vmatprep.subr.bf16.mxu0 0
        %3572 = vmatpush1.bf16.msra.mxu0 0
        %3573 = vmatprep.subr.bf16.mxu0 0
        %3574 = vmatpush1.bf16.msra.mxu0 0
        %3575 = vmatprep.subr.bf16.mxu0 0
        %3576 = vmatpush1.bf16.msra.mxu0 0
        %3577 = vmatprep.subr.bf16.mxu0 0
        %3578 = vmatpush1.bf16.msra.mxu0 0
        %3579 = vmatprep.subr.bf16.mxu0 0
        %3580 = vmatpush1.bf16.msra.mxu0 0
        %3581 = vmatprep.subr.bf16.mxu0 0
        %3582 = vmatpush1.bf16.msra.mxu0 0
        %3583 = vmatprep.subr.bf16.mxu0 0
        %3584 = vmatpush1.bf16.msra.mxu0 0
        %3585 = vmatprep.mubr.bf16.mxu0 0
        %3586 = vmatmul.mubr.bf16.gmra.mrb[0].mxu0 %v3551
        %v3587 = vpop.f32.mrb[0].mxu0
        %v3588 = vadd.f32 0.0, %v3587
        %v3589 = vpop.f32.mrb[0].mxu0
        %v3590 = vpop.f32.mrb[0].mxu0
        %v3591 = vpop.f32.mrb[0].mxu0
        %3592 = vdwg.mxu0
        %v3594 = vsel %vm1680, %v3547, 0
        %3596 = vmatprep.subr.bf16.mxu0 0
        %3597 = vmatpush1.bf16.msra.mxu0 %v529
        %3598 = vmatprep.subr.bf16.mxu0 0
        %3599 = vmatpush1.bf16.msra.mxu0 0
        %3600 = vmatprep.subr.bf16.mxu0 0
        %3601 = vmatpush1.bf16.msra.mxu0 0
        %3602 = vmatprep.subr.bf16.mxu0 0
        %3603 = vmatpush1.bf16.msra.mxu0 0
        %3604 = vmatprep.subr.bf16.mxu0 0
        %3605 = vmatpush1.bf16.msra.mxu0 0
        %3606 = vmatprep.subr.bf16.mxu0 0
        %3607 = vmatpush1.bf16.msra.mxu0 0
        %3608 = vmatprep.subr.bf16.mxu0 0
        %3609 = vmatpush1.bf16.msra.mxu0 0
        %3610 = vmatprep.subr.bf16.mxu0 0
        %3611 = vmatpush1.bf16.msra.mxu0 0
        %3612 = vmatprep.subr.bf16.mxu0 0
        %3613 = vmatpush1.bf16.msra.mxu0 0
        %3614 = vmatprep.subr.bf16.mxu0 0
        %3615 = vmatpush1.bf16.msra.mxu0 0
        %3616 = vmatprep.subr.bf16.mxu0 0
        %3617 = vmatpush1.bf16.msra.mxu0 0
        %3618 = vmatprep.subr.bf16.mxu0 0
        %3619 = vmatpush1.bf16.msra.mxu0 0
        %3620 = vmatprep.subr.bf16.mxu0 0
        %3621 = vmatpush1.bf16.msra.mxu0 0
        %3622 = vmatprep.subr.bf16.mxu0 0
        %3623 = vmatpush1.bf16.msra.mxu0 0
        %3624 = vmatprep.subr.bf16.mxu0 0
        %3625 = vmatpush1.bf16.msra.mxu0 0
        %3626 = vmatprep.subr.bf16.mxu0 0
        %3627 = vmatpush1.bf16.msra.mxu0 0
        %3628 = vmatprep.mubr.bf16.mxu0 0
        %3629 = vmatmul.mubr.bf16.gmra.mrb[0].mxu0 %v3594
        %v3630 = vpop.f32.mrb[0].mxu0
        %v3631 = vadd.f32 0.0, %v3630
        %v3632 = vpop.f32.mrb[0].mxu0
        %v3633 = vpop.f32.mrb[0].mxu0
        %v3634 = vpop.f32.mrb[0].mxu0
        %3635 = vdwg.mxu0
        %v3637 = vsel %vm1680, %v3548, 0
        %3639 = vmatprep.subr.bf16.mxu0 0
        %3640 = vmatpush1.bf16.msra.mxu0 %v532
        %3641 = vmatprep.subr.bf16.mxu0 0
        %3642 = vmatpush1.bf16.msra.mxu0 0
        %3643 = vmatprep.subr.bf16.mxu0 0
        %3644 = vmatpush1.bf16.msra.mxu0 0
        %3645 = vmatprep.subr.bf16.mxu0 0
        %3646 = vmatpush1.bf16.msra.mxu0 0
        %3647 = vmatprep.subr.bf16.mxu0 0
        %3648 = vmatpush1.bf16.msra.mxu0 0
        %3649 = vmatprep.subr.bf16.mxu0 0
        %3650 = vmatpush1.bf16.msra.mxu0 0
        %3651 = vmatprep.subr.bf16.mxu0 0
        %3652 = vmatpush1.bf16.msra.mxu0 0
        %3653 = vmatprep.subr.bf16.mxu0 0
        %3654 = vmatpush1.bf16.msra.mxu0 0
        %3655 = vmatprep.subr.bf16.mxu0 0
        %3656 = vmatpush1.bf16.msra.mxu0 0
        %3657 = vmatprep.subr.bf16.mxu0 0
        %3658 = vmatpush1.bf16.msra.mxu0 0
        %3659 = vmatprep.subr.bf16.mxu0 0
        %3660 = vmatpush1.bf16.msra.mxu0 0
        %3661 = vmatprep.subr.bf16.mxu0 0
        %3662 = vmatpush1.bf16.msra.mxu0 0
        %3663 = vmatprep.subr.bf16.mxu0 0
        %3664 = vmatpush1.bf16.msra.mxu0 0
        %3665 = vmatprep.subr.bf16.mxu0 0
        %3666 = vmatpush1.bf16.msra.mxu0 0
        %3667 = vmatprep.subr.bf16.mxu0 0
        %3668 = vmatpush1.bf16.msra.mxu0 0
        %3669 = vmatprep.subr.bf16.mxu0 0
        %3670 = vmatpush1.bf16.msra.mxu0 0
        %3671 = vmatprep.mubr.bf16.mxu0 0
        %3672 = vmatmul.mubr.bf16.gmra.mrb[0].mxu0 %v3637
        %v3673 = vpop.f32.mrb[0].mxu0
        %v3674 = vadd.f32 0.0, %v3673
        %v3675 = vpop.f32.mrb[0].mxu0
        %v3676 = vpop.f32.mrb[0].mxu0
        %v3677 = vpop.f32.mrb[0].mxu0
        %3678 = vdwg.mxu0
        %v3680 = vsel %vm1680, %v3549, 0
        %3682 = vmatprep.subr.bf16.mxu0 0
        %3683 = vmatpush1.bf16.msra.mxu0 %v535
        %3684 = vmatprep.subr.bf16.mxu0 0
        %3685 = vmatpush1.bf16.msra.mxu0 0
        %3686 = vmatprep.subr.bf16.mxu0 0
        %3687 = vmatpush1.bf16.msra.mxu0 0
        %3688 = vmatprep.subr.bf16.mxu0 0
        %3689 = vmatpush1.bf16.msra.mxu0 0
        %3690 = vmatprep.subr.bf16.mxu0 0
        %3691 = vmatpush1.bf16.msra.mxu0 0
        %3692 = vmatprep.subr.bf16.mxu0 0
        %3693 = vmatpush1.bf16.msra.mxu0 0
        %3694 = vmatprep.subr.bf16.mxu0 0
        %3695 = vmatpush1.bf16.msra.mxu0 0
        %3696 = vmatprep.subr.bf16.mxu0 0
        %3697 = vmatpush1.bf16.msra.mxu0 0
        %3698 = vmatprep.subr.bf16.mxu0 0
        %3699 = vmatpush1.bf16.msra.mxu0 0
        %3700 = vmatprep.subr.bf16.mxu0 0
        %3701 = vmatpush1.bf16.msra.mxu0 0
        %3702 = vmatprep.subr.bf16.mxu0 0
        %3703 = vmatpush1.bf16.msra.mxu0 0
        %3704 = vmatprep.subr.bf16.mxu0 0
        %3705 = vmatpush1.bf16.msra.mxu0 0
        %3706 = vmatprep.subr.bf16.mxu0 0
        %3707 = vmatpush1.bf16.msra.mxu0 0
        %3708 = vmatprep.subr.bf16.mxu0 0
        %3709 = vmatpush1.bf16.msra.mxu0 0
        %3710 = vmatprep.subr.bf16.mxu0 0
        %3711 = vmatpush1.bf16.msra.mxu0 0
        %3712 = vmatprep.subr.bf16.mxu0 0
        %3713 = vmatpush1.bf16.msra.mxu0 0
        %3714 = vmatprep.mubr.bf16.mxu0 0
        %3715 = vmatmul.mubr.bf16.gmra.mrb[0].mxu0 %v3680
        %v3716 = vpop.f32.mrb[0].mxu0
        %v3717 = vadd.f32 0.0, %v3716
        %v3718 = vpop.f32.mrb[0].mxu0
        %v3719 = vpop.f32.mrb[0].mxu0
        %v3720 = vpop.f32.mrb[0].mxu0
        %3721 = vdwg.mxu0
        %3723 = vrot.lane.b32.xlu0 %v3631, 32
        %v3724 = vpop.permute.xlu0 %3723
        %3727 = vrot.lane.b32.xlu0 %v3674, 64
        %v3728 = vpop.permute.xlu0 %3727
        %3731 = vrot.lane.b32.xlu0 %v3717, 96
        %v3732 = vpop.permute.xlu0 %3731
        %v3734 = vsel %vm822, %v3588, %v3724
        %v3735 = vsel %vm1254, %v3734, %v3728
        %v3736 = vsel %vm1256, %v3735, %v3732
        %v3737 = vld [vmem:[#allocation8 + $0x1c] sm:$0xf]
        %v3738 = vld [vmem:[#allocation8 + $0x44] sm:$0xf]
        %v3739 = vld [vmem:[#allocation8 + $0x6c] sm:$0xf]
        %v3740 = vld [vmem:[#allocation8 + $0x94] sm:$0xf]
        %v3741 = vld [vmem:[#allocation8 + $0xbc] sm:$0xf]
        %v3742 = vld [vmem:[#allocation8 + $0xe4] sm:$0xf]
        %v3743 = vld [vmem:[#allocation8 + $0x10c] sm:$0xf]
        %v3744 = vld [vmem:[#allocation8 + $0x134] sm:$0xf]
        %v3745 = vld [vmem:[#allocation8 + $0x15c] sm:$0xf]
        %v3746 = vld [vmem:[#allocation8 + $0x184] sm:$0xf]
        %v3747 = vld [vmem:[#allocation8 + $0x1ac] sm:$0xf]
        %v3748 = vld [vmem:[#allocation8 + $0x1d4] sm:$0xf]
        %v3749 = vld [vmem:[#allocation8 + $0x1fc] sm:$0xf]
        %v3750 = vld [vmem:[#allocation8 + $0x224] sm:$0xf]
        %v3751 = vld [vmem:[#allocation8 + $0x24c] sm:$0xf]
        %v3752 = vld [vmem:[#allocation8 + $0x274] sm:$0xf]
        %v3753 = vld [vmem:[#allocation11 + $0x6] ss:$0 sm:$0xff]
        %v3754 = vpack.c.bf16 %v3736, %v3736
        %v3771 = vunpack.c.l.b16 %v3737
        %v3772 = vunpack.c.l.b16 %v3738
        %v3773 = vunpack.c.l.b16 %v3739
        %v3774 = vunpack.c.l.b16 %v3740
        %v3775 = vunpack.c.l.b16 %v3741
        %v3776 = vunpack.c.l.b16 %v3742
        %v3777 = vunpack.c.l.b16 %v3743
        %v3778 = vunpack.c.l.b16 %v3744
        %v3779 = vunpack.c.l.b16 %v3745
        %v3780 = vunpack.c.l.b16 %v3746
        %v3781 = vunpack.c.l.b16 %v3747
        %v3782 = vunpack.c.l.b16 %v3748
        %v3783 = vunpack.c.l.b16 %v3749
        %v3784 = vunpack.c.l.b16 %v3750
        %v3785 = vunpack.c.l.b16 %v3751
        %v3786 = vunpack.c.l.b16 %v3752
        %v3787 = vpack.c.b16 %v3772, %v3771
        %v3788 = vpack.c.b16 %v3774, %v3773
        %v3789 = vpack.c.b16 %v3776, %v3775
        %v3790 = vpack.c.b16 %v3778, %v3777
        %v3791 = vpack.c.b16 %v3780, %v3779
        %v3792 = vpack.c.b16 %v3782, %v3781
        %v3793 = vpack.c.b16 %v3784, %v3783
        %v3794 = vpack.c.b16 %v3786, %v3785
        %3803 = vmatprep.subr.bf16.mxu0 0
        %3804 = vmatpush1.bf16.msra.mxu0 %v3787
        %3805 = vmatprep.subr.bf16.mxu0 0
        %3806 = vmatpush1.bf16.msra.mxu0 %v3788
        %3807 = vmatprep.subr.bf16.mxu0 0
        %3808 = vmatpush1.bf16.msra.mxu0 %v3789
        %3809 = vmatprep.subr.bf16.mxu0 0
        %3810 = vmatpush1.bf16.msra.mxu0 %v3790
        %3811 = vmatprep.subr.bf16.mxu0 0
        %3812 = vmatpush1.bf16.msra.mxu0 %v3791
        %3813 = vmatprep.subr.bf16.mxu0 0
        %3814 = vmatpush1.bf16.msra.mxu0 %v3792
        %3815 = vmatprep.subr.bf16.mxu0 0
        %3816 = vmatpush1.bf16.msra.mxu0 %v3793
        %3817 = vmatprep.subr.bf16.mxu0 0
        %3818 = vmatpush1.bf16.msra.mxu0 %v3794
        %3819 = vmatprep.subr.bf16.mxu0 0
        %3820 = vmatpush1.bf16.msra.mxu0 0
        %3821 = vmatprep.subr.bf16.mxu0 0
        %3822 = vmatpush1.bf16.msra.mxu0 0
        %3823 = vmatprep.subr.bf16.mxu0 0
        %3824 = vmatpush1.bf16.msra.mxu0 0
        %3825 = vmatprep.subr.bf16.mxu0 0
        %3826 = vmatpush1.bf16.msra.mxu0 0
        %3827 = vmatprep.subr.bf16.mxu0 0
        %3828 = vmatpush1.bf16.msra.mxu0 0
        %3829 = vmatprep.subr.bf16.mxu0 0
        %3830 = vmatpush1.bf16.msra.mxu0 0
        %3831 = vmatprep.subr.bf16.mxu0 0
        %3832 = vmatpush1.bf16.msra.mxu0 0
        %3833 = vmatprep.subr.bf16.mxu0 0
        %3834 = vmatpush1.bf16.msra.mxu0 0
        %3835 = vmatprep.mubr.bf16.mxu0 0
        %3836 = vmatmul.mubr.bf16.gmra.mrb[0].mxu0 %v3754
        %v3837 = vpop.f32.mrb[0].mxu0
        %v3838 = vadd.f32 %v3753, %v3837
        %v3839 = vpop.f32.mrb[0].mxu0
        %v3840 = vpop.f32.mrb[0].mxu0
        %v3841 = vpop.f32.mrb[0].mxu0
        %3842 = vdwg.mxu0
        %v3843 = vadd.f32 %v3214, %v3838
        %v3844 = vld [vmem:[#allocation11 + $0x7] ss:$0 sm:$0xff]
        %v3845 = vld [vmem:[#allocation11 + $0x18] ss:$0 sm:$0xff]
        %3846 = vadd.xlane.f32.xlu0 %v3843
        %v3847 = vpop.xlane.xlu0 %3846
        %v3848 = vmul.f32 %v3847, %v1369
        %v3849 = vsub.f32 %v3843, %v3848
        %v3850 = vmul.f32 %v3849, %v3849
        %3851 = vadd.xlane.f32.xlu0 %v3850
        %v3852 = vpop.xlane.xlu0 %3851
        %v3853 = vmul.f32 %v3852, %v1369
        %v3854 = vadd.f32 %v3853, 1e-05
        %v3855 = vrsqrt.pop %v3854
        %v3856 = vmul.f32 %v3849, %v3855
        %v3857 = vmul.f32 %v3856, %v3844
        %v3858 = vadd.f32 %v3857, %v3845
        %v3859 = vld [vmem:[#allocation8 + $0x20] sm:$0xff]
        %v3860 = vld [vmem:[#allocation8 + $0x48] sm:$0xff]
        %v3861 = vld [vmem:[#allocation8 + $0x70] sm:$0xff]
        %v3862 = vld [vmem:[#allocation8 + $0x98] sm:$0xff]
        %v3863 = vld [vmem:[#allocation8 + $0xc0] sm:$0xff]
        %v3864 = vld [vmem:[#allocation8 + $0xe8] sm:$0xff]
        %v3865 = vld [vmem:[#allocation8 + $0x110] sm:$0xff]
        %v3866 = vld [vmem:[#allocation8 + $0x138] sm:$0xff]
        %v3867 = vld [vmem:[#allocation8 + $0x160] sm:$0xff]
        %v3868 = vld [vmem:[#allocation8 + $0x188] sm:$0xff]
        %v3869 = vld [vmem:[#allocation8 + $0x1b0] sm:$0xff]
        %v3870 = vld [vmem:[#allocation8 + $0x1d8] sm:$0xff]
        %v3871 = vld [vmem:[#allocation8 + $0x200] sm:$0xff]
        %v3872 = vld [vmem:[#allocation8 + $0x228] sm:$0xff]
        %v3873 = vld [vmem:[#allocation8 + $0x250] sm:$0xff]
        %v3874 = vld [vmem:[#allocation8 + $0x278] sm:$0xff]
        %v3875 = vld [vmem:[%s2054] ss:$8 sm:$0x3]
        %v3876 = vpack.c.bf16 %v3858, %v3858
        %v3878 = vlaneseq
        %v3879 = vshrl.u32 %v3878, 7
        %v3880 = vsub.s32 0, %v3879
        %v3881 = vrot.slane %v3875, %v3880
        %v3882 = vlaneseq
        %v3883 = vshrl.u32 %v3882, 7
        %v3884 = vsub.s32 1, %v3883
        %v3885 = vrot.slane %v3875, %v3884
        %v3904 = vunpack.c.l.b16 %v3859
        %v3905 = vunpack.c.h.b16 %v3859
        %v3906 = vunpack.c.l.b16 %v3860
        %v3907 = vunpack.c.h.b16 %v3860
        %v3908 = vunpack.c.l.b16 %v3861
        %v3909 = vunpack.c.h.b16 %v3861
        %v3910 = vunpack.c.l.b16 %v3862
        %v3911 = vunpack.c.h.b16 %v3862
        %v3912 = vunpack.c.l.b16 %v3863
        %v3913 = vunpack.c.h.b16 %v3863
        %v3914 = vunpack.c.l.b16 %v3864
        %v3915 = vunpack.c.h.b16 %v3864
        %v3916 = vunpack.c.l.b16 %v3865
        %v3917 = vunpack.c.h.b16 %v3865
        %v3918 = vunpack.c.l.b16 %v3866
        %v3919 = vunpack.c.h.b16 %v3866
        %v3920 = vunpack.c.l.b16 %v3867
        %v3921 = vunpack.c.h.b16 %v3867
        %v3922 = vunpack.c.l.b16 %v3868
        %v3923 = vunpack.c.h.b16 %v3868
        %v3924 = vunpack.c.l.b16 %v3869
        %v3925 = vunpack.c.h.b16 %v3869
        %v3926 = vunpack.c.l.b16 %v3870
        %v3927 = vunpack.c.h.b16 %v3870
        %v3928 = vunpack.c.l.b16 %v3871
        %v3929 = vunpack.c.h.b16 %v3871
        %v3930 = vunpack.c.l.b16 %v3872
        %v3931 = vunpack.c.h.b16 %v3872
        %v3932 = vunpack.c.l.b16 %v3873
        %v3933 = vunpack.c.h.b16 %v3873
        %v3934 = vunpack.c.l.b16 %v3874
        %v3935 = vunpack.c.h.b16 %v3874
        %v3936 = vpack.c.b16 %v3906, %v3904
        %v3937 = vpack.c.b16 %v3907, %v3905
        %v3938 = vpack.c.b16 %v3910, %v3908
        %v3939 = vpack.c.b16 %v3911, %v3909
        %v3940 = vpack.c.b16 %v3914, %v3912
        %v3941 = vpack.c.b16 %v3915, %v3913
        %v3942 = vpack.c.b16 %v3918, %v3916
        %v3943 = vpack.c.b16 %v3919, %v3917
        %v3944 = vpack.c.b16 %v3922, %v3920
        %v3945 = vpack.c.b16 %v3923, %v3921
        %v3946 = vpack.c.b16 %v3926, %v3924
        %v3947 = vpack.c.b16 %v3927, %v3925
        %v3948 = vpack.c.b16 %v3930, %v3928
        %v3949 = vpack.c.b16 %v3931, %v3929
        %v3950 = vpack.c.b16 %v3934, %v3932
        %v3951 = vpack.c.b16 %v3935, %v3933
        %3968 = vmatprep.subr.bf16.mxu0 %v3937
        %3969 = vmatpush1.bf16.msra.mxu0 %v3936
        %3970 = vmatprep.subr.bf16.mxu0 %v3939
        %3971 = vmatpush1.bf16.msra.mxu0 %v3938
        %3972 = vmatprep.subr.bf16.mxu0 %v3941
        %3973 = vmatpush1.bf16.msra.mxu0 %v3940
        %3974 = vmatprep.subr.bf16.mxu0 %v3943
        %3975 = vmatpush1.bf16.msra.mxu0 %v3942
        %3976 = vmatprep.subr.bf16.mxu0 %v3945
        %3977 = vmatpush1.bf16.msra.mxu0 %v3944
        %3978 = vmatprep.subr.bf16.mxu0 %v3947
        %3979 = vmatpush1.bf16.msra.mxu0 %v3946
        %3980 = vmatprep.subr.bf16.mxu0 %v3949
        %3981 = vmatpush1.bf16.msra.mxu0 %v3948
        %3982 = vmatprep.subr.bf16.mxu0 %v3951
        %3983 = vmatpush1.bf16.msra.mxu0 %v3950
        %3984 = vmatprep.subr.bf16.mxu0 0
        %3985 = vmatpush1.bf16.msra.mxu0 0
        %3986 = vmatprep.subr.bf16.mxu0 0
        %3987 = vmatpush1.bf16.msra.mxu0 0
        %3988 = vmatprep.subr.bf16.mxu0 0
        %3989 = vmatpush1.bf16.msra.mxu0 0
        %3990 = vmatprep.subr.bf16.mxu0 0
        %3991 = vmatpush1.bf16.msra.mxu0 0
        %3992 = vmatprep.subr.bf16.mxu0 0
        %3993 = vmatpush1.bf16.msra.mxu0 0
        %3994 = vmatprep.subr.bf16.mxu0 0
        %3995 = vmatpush1.bf16.msra.mxu0 0
        %3996 = vmatprep.subr.bf16.mxu0 0
        %3997 = vmatpush1.bf16.msra.mxu0 0
        %3998 = vmatprep.subr.bf16.mxu0 0
        %3999 = vmatpush1.bf16.msra.mxu0 0
        %4000 = vmatprep.mubr.bf16.mxu0 0
        %4001 = vmatmul.mubr.bf16.gmra.mrb[0].mxu0 %v3876
        %v4002 = vpop.f32.mrb[0].mxu0
        %v4003 = vadd.f32 %v3881, %v4002
        %v4004 = vpop.f32.mrb[0].mxu0
        %v4005 = vadd.f32 %v3885, %v4004
        %v4006 = vpop.f32.mrb[0].mxu0
        %v4007 = vpop.f32.mrb[0].mxu0
        %4008 = vdwg.mxu0
        %v4009 = vmax.f32 %v4003, 0.0
        %v4010 = vmax.f32 %v4005, 0.0
        %v4011 = vld [vmem:[#allocation10] sm:$0xf]
        %v4012 = vld [vmem:[#allocation10 + $0x4] sm:$0xf]
        %v4013 = vld [vmem:[#allocation10 + $0x8] sm:$0xf]
        %v4014 = vld [vmem:[#allocation10 + $0xc] sm:$0xf]
        %v4015 = vld [vmem:[#allocation10 + $0x10] sm:$0xf]
        %v4016 = vld [vmem:[#allocation10 + $0x14] sm:$0xf]
        %v4017 = vld [vmem:[#allocation10 + $0x18] sm:$0xf]
        %v4018 = vld [vmem:[#allocation10 + $0x1c] sm:$0xf]
        %v4019 = vld [vmem:[#allocation10 + $0x20] sm:$0xf]
        %v4020 = vld [vmem:[#allocation10 + $0x24] sm:$0xf]
        %v4021 = vld [vmem:[#allocation10 + $0x28] sm:$0xf]
        %v4022 = vld [vmem:[#allocation10 + $0x2c] sm:$0xf]
        %v4023 = vld [vmem:[#allocation10 + $0x30] sm:$0xf]
        %v4024 = vld [vmem:[#allocation10 + $0x34] sm:$0xf]
        %v4025 = vld [vmem:[#allocation10 + $0x38] sm:$0xf]
        %v4026 = vld [vmem:[#allocation10 + $0x3c] sm:$0xf]
        %v4027 = vld [vmem:[#allocation10 + $0x40] sm:$0xf]
        %v4028 = vld [vmem:[#allocation10 + $0x44] sm:$0xf]
        %v4029 = vld [vmem:[#allocation10 + $0x48] sm:$0xf]
        %v4030 = vld [vmem:[#allocation10 + $0x4c] sm:$0xf]
        %v4031 = vld [vmem:[#allocation10 + $0x50] sm:$0xf]
        %v4032 = vld [vmem:[#allocation10 + $0x54] sm:$0xf]
        %v4033 = vld [vmem:[#allocation10 + $0x58] sm:$0xf]
        %v4034 = vld [vmem:[#allocation10 + $0x5c] sm:$0xf]
        %v4035 = vld [vmem:[#allocation10 + $0x60] sm:$0xf]
        %v4036 = vld [vmem:[#allocation10 + $0x64] sm:$0xf]
        %v4037 = vld [vmem:[#allocation10 + $0x68] sm:$0xf]
        %v4038 = vld [vmem:[#allocation10 + $0x6c] sm:$0xf]
        %v4039 = vld [vmem:[#allocation10 + $0x70] sm:$0xf]
        %v4040 = vld [vmem:[#allocation10 + $0x74] sm:$0xf]
        %v4041 = vld [vmem:[#allocation10 + $0x78] sm:$0xf]
        %v4042 = vld [vmem:[#allocation10 + $0x7c] sm:$0xf]
        %v4043 = vld [vmem:[#allocation11 + $0x1a] ss:$0 sm:$0xff]
        %v4044 = vpack.c.bf16 %v4009, %v4009
        %v4045 = vpack.c.bf16 %v4010, %v4010
        %v4078 = vunpack.c.l.b16 %v4011
        %v4079 = vunpack.c.l.b16 %v4012
        %v4080 = vunpack.c.l.b16 %v4013
        %v4081 = vunpack.c.l.b16 %v4014
        %v4082 = vunpack.c.l.b16 %v4015
        %v4083 = vunpack.c.l.b16 %v4016
        %v4084 = vunpack.c.l.b16 %v4017
        %v4085 = vunpack.c.l.b16 %v4018
        %v4086 = vunpack.c.l.b16 %v4019
        %v4087 = vunpack.c.l.b16 %v4020
        %v4088 = vunpack.c.l.b16 %v4021
        %v4089 = vunpack.c.l.b16 %v4022
        %v4090 = vunpack.c.l.b16 %v4023
        %v4091 = vunpack.c.l.b16 %v4024
        %v4092 = vunpack.c.l.b16 %v4025
        %v4093 = vunpack.c.l.b16 %v4026
        %v4094 = vunpack.c.l.b16 %v4027
        %v4095 = vunpack.c.l.b16 %v4028
        %v4096 = vunpack.c.l.b16 %v4029
        %v4097 = vunpack.c.l.b16 %v4030
        %v4098 = vunpack.c.l.b16 %v4031
        %v4099 = vunpack.c.l.b16 %v4032
        %v4100 = vunpack.c.l.b16 %v4033
        %v4101 = vunpack.c.l.b16 %v4034
        %v4102 = vunpack.c.l.b16 %v4035
        %v4103 = vunpack.c.l.b16 %v4036
        %v4104 = vunpack.c.l.b16 %v4037
        %v4105 = vunpack.c.l.b16 %v4038
        %v4106 = vunpack.c.l.b16 %v4039
        %v4107 = vunpack.c.l.b16 %v4040
        %v4108 = vunpack.c.l.b16 %v4041
        %v4109 = vunpack.c.l.b16 %v4042
        %v4110 = vpack.c.b16 %v4079, %v4078
        %v4111 = vpack.c.b16 %v4081, %v4080
        %v4112 = vpack.c.b16 %v4083, %v4082
        %v4113 = vpack.c.b16 %v4085, %v4084
        %v4114 = vpack.c.b16 %v4087, %v4086
        %v4115 = vpack.c.b16 %v4089, %v4088
        %v4116 = vpack.c.b16 %v4091, %v4090
        %v4117 = vpack.c.b16 %v4093, %v4092
        %v4118 = vpack.c.b16 %v4095, %v4094
        %v4119 = vpack.c.b16 %v4097, %v4096
        %v4120 = vpack.c.b16 %v4099, %v4098
        %v4121 = vpack.c.b16 %v4101, %v4100
        %v4122 = vpack.c.b16 %v4103, %v4102
        %v4123 = vpack.c.b16 %v4105, %v4104
        %v4124 = vpack.c.b16 %v4107, %v4106
        %v4125 = vpack.c.b16 %v4109, %v4108
        %4142 = vmatprep.subr.bf16.mxu0 0
        %4143 = vmatpush1.bf16.msra.mxu0 %v4110
        %4144 = vmatprep.subr.bf16.mxu0 0
        %4145 = vmatpush1.bf16.msra.mxu0 %v4111
        %4146 = vmatprep.subr.bf16.mxu0 0
        %4147 = vmatpush1.bf16.msra.mxu0 %v4112
        %4148 = vmatprep.subr.bf16.mxu0 0
        %4149 = vmatpush1.bf16.msra.mxu0 %v4113
        %4150 = vmatprep.subr.bf16.mxu0 0
        %4151 = vmatpush1.bf16.msra.mxu0 %v4114
        %4152 = vmatprep.subr.bf16.mxu0 0
        %4153 = vmatpush1.bf16.msra.mxu0 %v4115
        %4154 = vmatprep.subr.bf16.mxu0 0
        %4155 = vmatpush1.bf16.msra.mxu0 %v4116
        %4156 = vmatprep.subr.bf16.mxu0 0
        %4157 = vmatpush1.bf16.msra.mxu0 %v4117
        %4158 = vmatprep.subr.bf16.mxu0 0
        %4159 = vmatpush1.bf16.msra.mxu0 %v4118
        %4160 = vmatprep.subr.bf16.mxu0 0
        %4161 = vmatpush1.bf16.msra.mxu0 %v4119
        %4162 = vmatprep.subr.bf16.mxu0 0
        %4163 = vmatpush1.bf16.msra.mxu0 %v4120
        %4164 = vmatprep.subr.bf16.mxu0 0
        %4165 = vmatpush1.bf16.msra.mxu0 %v4121
        %4166 = vmatprep.subr.bf16.mxu0 0
        %4167 = vmatpush1.bf16.msra.mxu0 %v4122
        %4168 = vmatprep.subr.bf16.mxu0 0
        %4169 = vmatpush1.bf16.msra.mxu0 %v4123
        %4170 = vmatprep.subr.bf16.mxu0 0
        %4171 = vmatpush1.bf16.msra.mxu0 %v4124
        %4172 = vmatprep.subr.bf16.mxu0 0
        %4173 = vmatpush1.bf16.msra.mxu0 %v4125
        %4174 = vmatprep.mubr.bf16.mxu0 %v4045
        %4175 = vmatmul.mubr.bf16.gmra.mrb[0].mxu0 %v4044
        %v4176 = vpop.f32.mrb[0].mxu0
        %v4177 = vadd.f32 %v4043, %v4176
        %v4178 = vpop.f32.mrb[0].mxu0
        %v4179 = vpop.f32.mrb[0].mxu0
        %v4180 = vpop.f32.mrb[0].mxu0
        %4181 = vdwg.mxu0
        %v4182 = vadd.f32 %v3858, %v4177
        %v4183 = vld [vmem:[#allocation11 + $0x1b] ss:$0 sm:$0xff]
        %v4184 = vld [vmem:[#allocation11 + $0x1c] ss:$0 sm:$0xff]
        %4185 = vadd.xlane.f32.xlu0 %v4182
        %v4186 = vpop.xlane.xlu0 %4185
        %v4187 = vmul.f32 %v4186, %v1369
        %v4188 = vsub.f32 %v4182, %v4187
        %v4189 = vmul.f32 %v4188, %v4188
        %4190 = vadd.xlane.f32.xlu0 %v4189
        %v4191 = vpop.xlane.xlu0 %4190
        %v4192 = vmul.f32 %v4191, %v1369
        %v4193 = vadd.f32 %v4192, 1e-05
        %v4194 = vrsqrt.pop %v4193
        %v4195 = vmul.f32 %v4188, %v4194
        %v4196 = vmul.f32 %v4195, %v4183
        %v4197 = vadd.f32 %v4196, %v4184
        %4198 = vst [vmem:[%s360] sm:$0xff] %v4197
        %s4199 = sand.u32 %s170, 1
        %s4200 = scalar_lea.sflag [#allocation4], %s4199
        %s4201 = sand.u32 %s170, 1
        %s4202 = smul.addr %s4201, 8
        %s4203 = scalar_lea.vmem [#allocation13], %s4202
        // Predicated region
        $region69: #{tpu_custom_call.1} parent=43 // pred_check
          %p4204 = pneg %p180
        $region70: #{tpu_custom_call.1} parent=43 // pred_check_branch
          %4206 = sbr.rel (%p4204) target = $region72
        $region71: #{tpu_custom_call.1} parent=43 // pred_region
          %s4208 = ssub.s32 128, 128
          %4209 = vsyncadd %s4200, %s4208
          %s4210 = smul.addr %s26, 128
          %s4211 = scalar_lea.hbm %s6, %s4210
          %s4213 = sshll.u32 %s4203, 4
          %s4214 = int_to_ptr.vmem [resolvable:$true] %s4213
          %4216 = dma.vmem_to_hbm [thread:$0]  %s4214, 128, %s4211, %s4200
        $region72: #{tpu_custom_call.1} parent=43 // pred_fallthru
          _
      $region44: #{tpu_custom_call.1} parent=5 // pred_fallthru
        _
      %p4217 = scmp.le.s32.totalorder 2, %s21
      // Predicated region
      $region73: #{tpu_custom_call.1} parent=5 // pred_check
        %p4218 = pneg %p4217
      $region74: #{tpu_custom_call.1} parent=5 // pred_check_branch
        %4220 = sbr.rel (%p4218) target = $region76
      $region75: #{tpu_custom_call.1} parent=5 // pred_region
        %s4221 = ssub.s32 %s21, 2
        // Predicated region
        $region77: #{tpu_custom_call.1} parent=75 // pred_check
          %p4222 = pneg %p186
        $region78: #{tpu_custom_call.1} parent=75 // pred_check_branch
          %4224 = sbr.rel (%p4222) target = $region80
        $region79: #{tpu_custom_call.1} parent=75 // pred_region
          %s4225 = sand.u32 %s171, 1
          %s4226 = scalar_lea.sflag [#allocation4], %s4225
          %s4227 = sand.u32 %s171, 1
          %s4228 = smul.addr %s4227, 8
          %s4229 = scalar_lea.vmem [#allocation13], %s4228
          %4230 = dma.done %s4226, 128
        $region80: #{tpu_custom_call.1} parent=75 // pred_fallthru
          _
      $region76: #{tpu_custom_call.1} parent=5 // pred_fallthru
        _
    $region6: #{tpu_custom_call.1} parent=1 // loop_footer
      %s25 = sadd.s32 1, %s21
    $region7: #{tpu_custom_call.1} parent=1 // loop_footer_branch
      %20 = sbr.rel target = $region3
    $region8: #{tpu_custom_call.1} parent=1 // loop_exit
      _
    %4231 = vsyncpa [#allocation3], 1
    %s4232 = scalar_lea.sflag [#allocation3], 1
    %4233 = vsyncpa %s4232, 1
    %4234 = vsyncpa [#allocation6], 1
    %s4235 = scalar_lea.sflag [#allocation6], 1
    %4236 = vsyncpa %s4235, 1
    %4237 = vsyncpa [#allocation9], 1
    %4238 = vsyncpa [#allocation12], 1
    %4239 = vsyncpa [#allocation4], 1
    %s4240 = scalar_lea.sflag [#allocation4], 1
    %4241 = vsyncpa %s4240, 1

</llo_original>
